<compile_context>
chip_gen: v7x
topology: tpu7x:2x2x1
jax: 0.10.0
libtpu: 0.0.40
codegen_flags: <defaults>
</compile_context>

<pallas_src>
import jax
import jax.numpy as jnp
from jax import lax
from jax.experimental import pallas as pl
from jax.experimental.pallas import tpu as pltpu


def retain_kernel(x_ref, mask_ref, selT_ref, sel_ref,
                  w_emb_ref,
                  wih_r_ref, wih_z_ref, wih_n_ref,
                  b_r_ref, b_z_ref, b_nx_ref,
                  whh_r_ref, whh_z_ref, whh_n_ref, b_nh_ref,
                  w_alpha_ref, b_alpha_ref,
                  w_beta_ref, b_beta_ref,
                  w_out_ref, b_out_ref,
                  logit_ref, alpha_ref, beta_ref,
                  emb_s, gxr_s, gxz_s, gxn_s, hist_s):
    TB, _E = emb_s.shape
    H2 = hist_s.shape[1]
    BB = logit_ref.shape[0]
    T = TB // BB

    # ---- embedding (Dropout == identity) + hoisted input projections ----
    x = x_ref[...]                                                    # (T*BB, Din)
    emb = jnp.dot(x, w_emb_ref[...], preferred_element_type=jnp.float32)
    emb_s[...] = emb
    gxr_s[...] = jnp.dot(emb, wih_r_ref[...],
                         preferred_element_type=jnp.float32) + b_r_ref[...]
    gxz_s[...] = jnp.dot(emb, wih_z_ref[...],
                         preferred_element_type=jnp.float32) + b_z_ref[...]
    gxn_s[...] = jnp.dot(emb, wih_n_ref[...],
                         preferred_element_type=jnp.float32) + b_nx_ref[...]

    # ---- fused GRU recurrence: h = [h_alpha | h_beta], block-diag gate weights ----
    whh_r = whh_r_ref[...]
    whh_z = whh_z_ref[...]
    whh_n = whh_n_ref[...]
    b_nh = b_nh_ref[...]

    def body(t, h):
        row = pl.multiple_of(t * BB, BB)
        ghr = jnp.dot(h, whh_r, preferred_element_type=jnp.float32)
        ghz = jnp.dot(h, whh_z, preferred_element_type=jnp.float32)
        ghn = jnp.dot(h, whh_n, preferred_element_type=jnp.float32) + b_nh
        r = jax.nn.sigmoid(gxr_s[pl.ds(row, BB), :] + ghr)
        z = jax.nn.sigmoid(gxz_s[pl.ds(row, BB), :] + ghz)
        n = jnp.tanh(gxn_s[pl.ds(row, BB), :] + r * ghn)
        h_new = (1.0 - z) * n + z * h
        hist_s[pl.ds(row, BB), :] = h_new
        return h_new

    h0 = jnp.zeros((BB, H2), jnp.float32)
    if T <= 32:
        # Straight-line unroll: gives the LLO scheduler full visibility so the
        # per-step MXU pushes overlap with the previous step's gate math.
        h = h0
        for t in range(T):
            h = body(t, h)
    else:
        lax.fori_loop(0, T, body, h0)

    hist = hist_s[...]                                                # (T*BB, H2)
    mask = mask_ref[...]                                              # (T*BB, 1)

    # ---- alpha: masked softmax over time (w_alpha zero-padded over beta half) ----
    e = jnp.sum(hist * w_alpha_ref[...], axis=-1, keepdims=True) + b_alpha_ref[...]
    exp_e = jnp.exp(e) * mask                                         # (T*BB, 1)
    denom = jnp.dot(selT_ref[...], exp_e,
                    preferred_element_type=jnp.float32)               # (BB, 1)
    denom_rows = jnp.dot(sel_ref[...], denom,
                         preferred_element_type=jnp.float32) + 1e-30  # (T*BB, 1)
    alpha = exp_e * pl.reciprocal(denom_rows, approx=True)
    alpha_ref[...] = alpha

    # ---- beta: tanh(beta_fc(h_beta) * mask) (w_beta zero-padded over alpha half) ----
    beta = jnp.tanh((jnp.dot(hist, w_beta_ref[...],
                             preferred_element_type=jnp.float32)
                     + b_beta_ref[...]) * mask)                       # (T*BB, E)
    beta_ref[...] = beta

    # ---- context = sum_t alpha * beta * emb (per batch), output Linear ----
    ctx = jnp.dot(selT_ref[...], alpha * beta * emb,
                  preferred_element_type=jnp.float32)                 # (BB, E)
    logit_ref[...] = (jnp.dot(ctx, w_out_ref[...],
                              preferred_element_type=jnp.float32) + b_out_ref[...])


def retain_forward(x, lengths, p, block_batch=8):
    f32 = jnp.float32
    B, T, Din = x.shape
    E = p["w_emb"].shape[0]
    Ha = p["whh_a"].shape[1]
    Hb = p["whh_b"].shape[1]
    H2 = Ha + Hb
    n_out = p["w_out"].shape[0]

    BB = block_batch
    G = -(-B // BB)                    # batch groups (grid size)
    B_pad = G * BB

    x = x.astype(f32)
    if B_pad != B:
        x = jnp.concatenate([x, jnp.zeros((B_pad - B, T, Din), f32)], axis=0)
        lengths = jnp.concatenate(
            [lengths, jnp.zeros((B_pad - B,), lengths.dtype)], axis=0)

    # grouped, time-major-within-group flattening: row = t*BB + b_local
    x_g = x.reshape(G, BB, T, Din).transpose(0, 2, 1, 3).reshape(G, T * BB, Din)
    mask = (jnp.arange(T)[None, :] < lengths[:, None]).astype(f32)    # (B_pad, T)
    mask_g = mask.reshape(G, BB, T).transpose(0, 2, 1).reshape(G, T * BB, 1)

    # batch-selection matrices (row t*BB+b  <->  local batch b); same for all groups
    rows_b = jnp.arange(T * BB) % BB
    sel = (rows_b[:, None] == jnp.arange(BB)[None, :]).astype(f32)    # (T*BB, BB)
    selT = sel.T                                                      # (BB, T*BB)

    # ---- weight preprocessing: transpose / gate-split / concat / block-diag ----
    def split3(w, H):
        return w[:H], w[H:2 * H], w[2 * H:3 * H]

    wir_a, wiz_a, win_a = split3(p["wih_a"], Ha)
    wir_b, wiz_b, win_b = split3(p["wih_b"], Hb)
    whr_a, whz_a, whn_a = split3(p["whh_a"], Ha)
    whr_b, whz_b, whn_b = split3(p["whh_b"], Hb)
    bir_a, biz_a, bin_a = split3(p["bih_a"], Ha)
    bir_b, biz_b, bin_b = split3(p["bih_b"], Hb)
    bhr_a, bhz_a, bhn_a = split3(p["bhh_a"], Ha)
    bhr_b, bhz_b, bhn_b = split3(p["bhh_b"], Hb)

    wih_r_t = jnp.concatenate([wir_a.T, wir_b.T], axis=1)             # (E, H2)
    wih_z_t = jnp.concatenate([wiz_a.T, wiz_b.T], axis=1)
    wih_n_t = jnp.concatenate([win_a.T, win_b.T], axis=1)

    # fold bih (+ bhh for r,z gates) into the hoisted GX; only bhh_n stays in-loop
    b_r = jnp.concatenate([bir_a + bhr_a, bir_b + bhr_b]).reshape(1, H2)
    b_z = jnp.concatenate([biz_a + bhz_a, biz_b + bhz_b]).reshape(1, H2)
    b_nx = jnp.concatenate([bin_a, bin_b]).reshape(1, H2)
    b_nh = jnp.concatenate([bhn_a, bhn_b]).reshape(1, H2)

    def blkdiag_t(wa, wb):
        top = jnp.concatenate([wa.T, jnp.zeros((Ha, Hb), f32)], axis=1)
        bot = jnp.concatenate([jnp.zeros((Hb, Ha), f32), wb.T], axis=1)
        return jnp.concatenate([top, bot], axis=0)                    # (H2, H2)

    whh_r_t = blkdiag_t(whr_a, whr_b)
    whh_z_t = blkdiag_t(whz_a, whz_b)
    whh_n_t = blkdiag_t(whn_a, whn_b)

    w_alpha_pad = jnp.concatenate(
        [p["w_alpha"].reshape(Ha), jnp.zeros((Hb,), f32)]).reshape(1, H2)
    w_beta_t_pad = jnp.concatenate(
        [jnp.zeros((Ha, E), f32), p["w_beta"].T], axis=0)             # (H2, E)
    w_emb_t = p["w_emb"].T                                            # (Din, E)
    w_out_t = p["w_out"].T                                            # (E, n_out)

    inputs = (x_g, mask_g, selT, sel,
              w_emb_t,
              wih_r_t, wih_z_t, wih_n_t,
              b_r, b_z, b_nx,
              whh_r_t, whh_z_t, whh_n_t, b_nh,
              w_alpha_pad, p["b_alpha"].reshape(1, 1),
              w_beta_t_pad, p["b_beta"].reshape(1, E),
              w_out_t, p["b_out"].reshape(1, n_out))

    def full2(a):
        return pl.BlockSpec(a.shape, lambda g: (0, 0))

    def grouped(last_dims):
        return pl.BlockSpec((None,) + last_dims, lambda g: (g, 0, 0))

    in_specs = ([grouped((T * BB, Din)), grouped((T * BB, 1))]
                + [full2(a) for a in inputs[2:]])

    out_shapes = (jax.ShapeDtypeStruct((B_pad, n_out), f32),
                  jax.ShapeDtypeStruct((G, T * BB, 1), f32),
                  jax.ShapeDtypeStruct((G, T * BB, E), f32))
    out_specs = (pl.BlockSpec((BB, n_out), lambda g: (g, 0)),
                 grouped((T * BB, 1)),
                 grouped((T * BB, E)))

    scratch = [pltpu.VMEM((T * BB, E), f32),    # emb
               pltpu.VMEM((T * BB, H2), f32),   # gx_r
               pltpu.VMEM((T * BB, H2), f32),   # gx_z
               pltpu.VMEM((T * BB, H2), f32),   # gx_n
               pltpu.VMEM((T * BB, H2), f32)]   # hidden history [h_alpha | h_beta]

    # explicit VMEM budget (fits v7x's 64 MiB; above v5e's 16 MiB default)
    def _sz(*shape):
        n = 4
        for s in shape:
            n *= int(s)
        return n
    block_io = (_sz(T * BB, Din) + _sz(T * BB, 1) + 2 * _sz(BB, T * BB)
                + _sz(Din, E) + 3 * _sz(E, H2) + 3 * _sz(H2, H2)
                + _sz(H2, E) + _sz(E, n_out) + 6 * _sz(1, H2)
                + _sz(BB, n_out) + _sz(T * BB, 1) + _sz(T * BB, E))
    scratch_b = _sz(T * BB, E) + 4 * _sz(T * BB, H2)
    vmem_limit = int(min(48 * 2**20, max(32 * 2**20, 4 * (2 * block_io + scratch_b))))

    logit_pad, alpha_g, beta_g = pl.pallas_call(
        retain_kernel,
        out_shape=out_shapes,
        grid=(G,),
        in_specs=in_specs,
        out_specs=out_specs,
        scratch_shapes=scratch,
        compiler_params=pltpu.CompilerParams(
            dimension_semantics=("parallel",),
            vmem_limit_bytes=vmem_limit),
    )(*inputs)

    logit = logit_pad[:B]
    alpha = (alpha_g.reshape(G, T, BB).transpose(0, 2, 1)
             .reshape(B_pad, T, 1)[:B])
    beta = (beta_g.reshape(G, T, BB, E).transpose(0, 2, 1, 3)
            .reshape(B_pad, T, E)[:B])
    return logit, alpha, beta


def init_params(key, dim_input, dim_emb, dim_alpha, dim_beta, dim_output):
    keys = jax.random.split(key, 12)

    def xavier(k, shape, gain=1.0):
        fan_out, fan_in = shape
        std = gain * (2.0 / (fan_in + fan_out)) ** 0.5
        return std * jax.random.normal(k, shape, jnp.float32)

    def gru_init(k, shape, hidden):
        bound = 1.0 / (hidden ** 0.5)
        return jax.random.uniform(k, shape, jnp.float32, -bound, bound)

    tanh_gain = 5.0 / 3.0
    return dict(
        w_emb=xavier(keys[0], (dim_emb, dim_input)),
        wih_a=gru_init(keys[1], (3 * dim_alpha, dim_emb), dim_alpha),
        whh_a=gru_init(keys[2], (3 * dim_alpha, dim_alpha), dim_alpha),
        bih_a=gru_init(keys[3], (3 * dim_alpha,), dim_alpha),
        bhh_a=gru_init(keys[4], (3 * dim_alpha,), dim_alpha),
        w_alpha=xavier(keys[5], (1, dim_alpha)),
        b_alpha=jnp.zeros((1,), jnp.float32),
        wih_b=gru_init(keys[6], (3 * dim_beta, dim_emb), dim_beta),
        whh_b=gru_init(keys[7], (3 * dim_beta, dim_beta), dim_beta),
        bih_b=gru_init(keys[8], (3 * dim_beta,), dim_beta),
        bhh_b=gru_init(keys[9], (3 * dim_beta,), dim_beta),
        w_beta=xavier(keys[10], (dim_emb, dim_beta), gain=tanh_gain),
        b_beta=jnp.zeros((dim_emb,), jnp.float32),
        w_out=xavier(keys[11], (dim_output, dim_emb)),
        b_out=jnp.zeros((dim_output,), jnp.float32),
    )


def retain_reference(x, lengths, p):
    """Pure-JAX reference with identical semantics (for correctness check)."""
    B, T, _ = x.shape
    emb = x @ p["w_emb"].T                                   # (B, T, E)
    mask = (jnp.arange(T)[None, :] < lengths[:, None]).astype(jnp.float32)[..., None]

    def gru(inp, wih, whh, bih, bhh):
        H = whh.shape[1]

        def step(h, x_t):
            gx = x_t @ wih.T + bih
            gh = h @ whh.T + bhh
            r = jax.nn.sigmoid(gx[:, :H] + gh[:, :H])
            z = jax.nn.sigmoid(gx[:, H:2 * H] + gh[:, H:2 * H])
            n = jnp.tanh(gx[:, 2 * H:] + r * gh[:, 2 * H:])
            h_new = (1.0 - z) * n + z * h
            return h_new, h_new

        _, hs = lax.scan(step, jnp.zeros((B, H), jnp.float32),
                         jnp.transpose(inp, (1, 0, 2)))
        return jnp.transpose(hs, (1, 0, 2))                  # (B, T, H)

    g = gru(emb, p["wih_a"], p["whh_a"], p["bih_a"], p["bhh_a"])
    hb = gru(emb, p["wih_b"], p["whh_b"], p["bih_b"], p["bhh_b"])
    e = g @ p["w_alpha"].T + p["b_alpha"]
    exp_e = jnp.exp(e) * mask
    alpha = exp_e / jnp.sum(exp_e, axis=1, keepdims=True)
    beta = jnp.tanh((hb @ p["w_beta"].T + p["b_beta"]) * mask)
    context = jnp.einsum("btx,bte->be", alpha, beta * emb)
    logit = context @ p["w_out"].T + p["b_out"]
    return logit, alpha, beta


if __name__ == "__main__":
    B, T, D_IN = 2, 8, 16
    D_EMB = D_ALPHA = D_BETA = 32
    D_OUT = 2

    key = jax.random.PRNGKey(0)
    k_x, k_p = jax.random.split(key)
    x = jax.random.normal(k_x, (B, T, D_IN), jnp.float32)
    lengths = jnp.array([8, 5], jnp.int32)   # sorted descending (pack_padded_sequence)
    params = init_params(k_p, D_IN, D_EMB, D_ALPHA, D_BETA, D_OUT)

    logit, alpha, beta = retain_forward(x, lengths, params)
    jax.block_until_ready((logit, alpha, beta))

    ref_logit, ref_alpha, ref_beta = retain_reference(x, lengths, params)
    assert jnp.allclose(logit, ref_logit, atol=2e-2, rtol=2e-2)
    assert jnp.allclose(alpha, ref_alpha, atol=2e-2, rtol=2e-2)
    assert jnp.allclose(beta, ref_beta, atol=2e-2, rtol=2e-2)
    assert logit.shape == (B, D_OUT)
    assert alpha.shape == (B, T, 1)
    assert beta.shape == (B, T, D_EMB)

    print("KERNEL_OK")
</pallas_src>

<mosaic_0001>
module attributes {stable_mosaic.version = 11 : i64} {
  func.func @retain_kernel(%arg0: i32, %arg1: memref<1x64x16xf32, #tpu.memory_space<vmem>>, %arg2: memref<1x64x1xf32, #tpu.memory_space<vmem>>, %arg3: memref<8x64xf32, #tpu.memory_space<vmem>>, %arg4: memref<64x8xf32, #tpu.memory_space<vmem>>, %arg5: memref<16x32xf32, #tpu.memory_space<vmem>>, %arg6: memref<32x64xf32, #tpu.memory_space<vmem>>, %arg7: memref<32x64xf32, #tpu.memory_space<vmem>>, %arg8: memref<32x64xf32, #tpu.memory_space<vmem>>, %arg9: memref<1x64xf32, #tpu.memory_space<vmem>>, %arg10: memref<1x64xf32, #tpu.memory_space<vmem>>, %arg11: memref<1x64xf32, #tpu.memory_space<vmem>>, %arg12: memref<64x64xf32, #tpu.memory_space<vmem>>, %arg13: memref<64x64xf32, #tpu.memory_space<vmem>>, %arg14: memref<64x64xf32, #tpu.memory_space<vmem>>, %arg15: memref<1x64xf32, #tpu.memory_space<vmem>>, %arg16: memref<1x64xf32, #tpu.memory_space<vmem>>, %arg17: memref<1x1xf32, #tpu.memory_space<vmem>>, %arg18: memref<64x32xf32, #tpu.memory_space<vmem>>, %arg19: memref<1x32xf32, #tpu.memory_space<vmem>>, %arg20: memref<32x2xf32, #tpu.memory_space<vmem>>, %arg21: memref<1x2xf32, #tpu.memory_space<vmem>>, %arg22: memref<8x2xf32, #tpu.memory_space<vmem>>, %arg23: memref<1x64x1xf32, #tpu.memory_space<vmem>>, %arg24: memref<1x64x32xf32, #tpu.memory_space<vmem>>, %arg25: memref<64x32xf32, #tpu.memory_space<vmem>>, %arg26: memref<64x64xf32, #tpu.memory_space<vmem>>, %arg27: memref<64x64xf32, #tpu.memory_space<vmem>>, %arg28: memref<64x64xf32, #tpu.memory_space<vmem>>, %arg29: memref<64x64xf32, #tpu.memory_space<vmem>>) attributes {dimension_semantics = [#tpu.dimension_semantics<parallel>], iteration_bounds = array<i64: 1>, scalar_prefetch = 0 : i64, scratch_operands = 5 : i64, tpu.core_type = #tpu.core_type<tc>, window_params = [{transform_indices = @transform_0, window_bounds = array<i64: 1, 64, 16>}, {transform_indices = @transform_1, window_bounds = array<i64: 1, 64, 1>}, {pipeline_mode = #tpu.pipeline_mode<synchronous>, transform_indices = @transform_2, window_bounds = array<i64: 8, 64>}, {pipeline_mode = #tpu.pipeline_mode<synchronous>, transform_indices = @transform_3, window_bounds = array<i64: 64, 8>}, {pipeline_mode = #tpu.pipeline_mode<synchronous>, transform_indices = @transform_4, window_bounds = array<i64: 16, 32>}, {pipeline_mode = #tpu.pipeline_mode<synchronous>, transform_indices = @transform_5, window_bounds = array<i64: 32, 64>}, {pipeline_mode = #tpu.pipeline_mode<synchronous>, transform_indices = @transform_6, window_bounds = array<i64: 32, 64>}, {pipeline_mode = #tpu.pipeline_mode<synchronous>, transform_indices = @transform_7, window_bounds = array<i64: 32, 64>}, {pipeline_mode = #tpu.pipeline_mode<synchronous>, transform_indices = @transform_8, window_bounds = array<i64: 1, 64>}, {pipeline_mode = #tpu.pipeline_mode<synchronous>, transform_indices = @transform_9, window_bounds = array<i64: 1, 64>}, {pipeline_mode = #tpu.pipeline_mode<synchronous>, transform_indices = @transform_10, window_bounds = array<i64: 1, 64>}, {pipeline_mode = #tpu.pipeline_mode<synchronous>, transform_indices = @transform_11, window_bounds = array<i64: 64, 64>}, {pipeline_mode = #tpu.pipeline_mode<synchronous>, transform_indices = @transform_12, window_bounds = array<i64: 64, 64>}, {pipeline_mode = #tpu.pipeline_mode<synchronous>, transform_indices = @transform_13, window_bounds = array<i64: 64, 64>}, {pipeline_mode = #tpu.pipeline_mode<synchronous>, transform_indices = @transform_14, window_bounds = array<i64: 1, 64>}, {pipeline_mode = #tpu.pipeline_mode<synchronous>, transform_indices = @transform_15, window_bounds = array<i64: 1, 64>}, {pipeline_mode = #tpu.pipeline_mode<synchronous>, transform_indices = @transform_16, window_bounds = array<i64: 1, 1>}, {pipeline_mode = #tpu.pipeline_mode<synchronous>, transform_indices = @transform_17, window_bounds = array<i64: 64, 32>}, {pipeline_mode = #tpu.pipeline_mode<synchronous>, transform_indices = @transform_18, window_bounds = array<i64: 1, 32>}, {pipeline_mode = #tpu.pipeline_mode<synchronous>, transform_indices = @transform_19, window_bounds = array<i64: 32, 2>}, {pipeline_mode = #tpu.pipeline_mode<synchronous>, transform_indices = @transform_20, window_bounds = array<i64: 1, 2>}, {transform_indices = @transform_21, window_bounds = array<i64: 8, 2>}, {transform_indices = @transform_22, window_bounds = array<i64: 1, 64, 1>}, {transform_indices = @transform_23, window_bounds = array<i64: 1, 64, 32>}]} {
    %c0 = arith.constant 0 : index
    %c0_0 = arith.constant 0 : index
    %c0_1 = arith.constant 0 : index
    %0 = vector.load %arg1[%c0, %c0_0, %c0_1] : memref<1x64x16xf32, #tpu.memory_space<vmem>>, vector<1x64x16xf32>
    %1 = vector.shape_cast %0 : vector<1x64x16xf32> to vector<64x16xf32>
    %c0_2 = arith.constant 0 : index
    %c0_3 = arith.constant 0 : index
    %2 = vector.load %arg5[%c0_2, %c0_3] : memref<16x32xf32, #tpu.memory_space<vmem>>, vector<16x32xf32>
    %cst = arith.constant dense<0.000000e+00> : vector<64x32xf32>
    %3 = tpu.matmul %1, %2, %cst {dimension_numbers = #tpu.dot_dimension_numbers<[1], [0], [0], [1], [0, 0, 1, 1], [], []>} : vector<64x16xf32>, vector<16x32xf32>, vector<64x32xf32> -> vector<64x32xf32>
    %c0_4 = arith.constant 0 : index
    %c0_5 = arith.constant 0 : index
    %4 = vector.load %arg25[%c0_4, %c0_5] : memref<64x32xf32, #tpu.memory_space<vmem>>, vector<64x32xf32>
    tpu.vector_store %arg25[%c0_4, %c0_5], %3 {strides = array<i32>} : memref<64x32xf32, #tpu.memory_space<vmem>>, vector<64x32xf32>,
    %c0_6 = arith.constant 0 : index
    %c0_7 = arith.constant 0 : index
    %5 = vector.load %arg6[%c0_6, %c0_7] : memref<32x64xf32, #tpu.memory_space<vmem>>, vector<32x64xf32>
    %cst_8 = arith.constant dense<0.000000e+00> : vector<64x64xf32>
    %6 = tpu.matmul %3, %5, %cst_8 {dimension_numbers = #tpu.dot_dimension_numbers<[1], [0], [0], [1], [0, 0, 1, 1], [], []>} : vector<64x32xf32>, vector<32x64xf32>, vector<64x64xf32> -> vector<64x64xf32>
    %c0_9 = arith.constant 0 : index
    %c0_10 = arith.constant 0 : index
    %7 = vector.load %arg9[%c0_9, %c0_10] : memref<1x64xf32, #tpu.memory_space<vmem>>, vector<1x64xf32>
    %8 = vector.broadcast %7 : vector<1x64xf32> to vector<64x64xf32>
    %9 = arith.addf %6, %8 : vector<64x64xf32>
    %c0_11 = arith.constant 0 : index
    %c0_12 = arith.constant 0 : index
    %10 = vector.load %arg26[%c0_11, %c0_12] : memref<64x64xf32, #tpu.memory_space<vmem>>, vector<64x64xf32>
    tpu.vector_store %arg26[%c0_11, %c0_12], %9 {strides = array<i32>} : memref<64x64xf32, #tpu.memory_space<vmem>>, vector<64x64xf32>,
    %c0_13 = arith.constant 0 : index
    %c0_14 = arith.constant 0 : index
    %11 = vector.load %arg7[%c0_13, %c0_14] : memref<32x64xf32, #tpu.memory_space<vmem>>, vector<32x64xf32>
    %cst_15 = arith.constant dense<0.000000e+00> : vector<64x64xf32>
    %12 = tpu.matmul %3, %11, %cst_15 {dimension_numbers = #tpu.dot_dimension_numbers<[1], [0], [0], [1], [0, 0, 1, 1], [], []>} : vector<64x32xf32>, vector<32x64xf32>, vector<64x64xf32> -> vector<64x64xf32>
    %c0_16 = arith.constant 0 : index
    %c0_17 = arith.constant 0 : index
    %13 = vector.load %arg10[%c0_16, %c0_17] : memref<1x64xf32, #tpu.memory_space<vmem>>, vector<1x64xf32>
    %14 = vector.broadcast %13 : vector<1x64xf32> to vector<64x64xf32>
    %15 = arith.addf %12, %14 : vector<64x64xf32>
    %c0_18 = arith.constant 0 : index
    %c0_19 = arith.constant 0 : index
    %16 = vector.load %arg27[%c0_18, %c0_19] : memref<64x64xf32, #tpu.memory_space<vmem>>, vector<64x64xf32>
    tpu.vector_store %arg27[%c0_18, %c0_19], %15 {strides = array<i32>} : memref<64x64xf32, #tpu.memory_space<vmem>>, vector<64x64xf32>,
    %c0_20 = arith.constant 0 : index
    %c0_21 = arith.constant 0 : index
    %17 = vector.load %arg8[%c0_20, %c0_21] : memref<32x64xf32, #tpu.memory_space<vmem>>, vector<32x64xf32>
    %cst_22 = arith.constant dense<0.000000e+00> : vector<64x64xf32>
    %18 = tpu.matmul %3, %17, %cst_22 {dimension_numbers = #tpu.dot_dimension_numbers<[1], [0], [0], [1], [0, 0, 1, 1], [], []>} : vector<64x32xf32>, vector<32x64xf32>, vector<64x64xf32> -> vector<64x64xf32>
    %c0_23 = arith.constant 0 : index
    %c0_24 = arith.constant 0 : index
    %19 = vector.load %arg11[%c0_23, %c0_24] : memref<1x64xf32, #tpu.memory_space<vmem>>, vector<1x64xf32>
    %20 = vector.broadcast %19 : vector<1x64xf32> to vector<64x64xf32>
    %21 = arith.addf %18, %20 : vector<64x64xf32>
    %c0_25 = arith.constant 0 : index
    %c0_26 = arith.constant 0 : index
    %22 = vector.load %arg28[%c0_25, %c0_26] : memref<64x64xf32, #tpu.memory_space<vmem>>, vector<64x64xf32>
    tpu.vector_store %arg28[%c0_25, %c0_26], %21 {strides = array<i32>} : memref<64x64xf32, #tpu.memory_space<vmem>>, vector<64x64xf32>,
    %c0_27 = arith.constant 0 : index
    %c0_28 = arith.constant 0 : index
    %23 = vector.load %arg12[%c0_27, %c0_28] : memref<64x64xf32, #tpu.memory_space<vmem>>, vector<64x64xf32>
    %c0_29 = arith.constant 0 : index
    %c0_30 = arith.constant 0 : index
    %24 = vector.load %arg13[%c0_29, %c0_30] : memref<64x64xf32, #tpu.memory_space<vmem>>, vector<64x64xf32>
    %c0_31 = arith.constant 0 : index
    %c0_32 = arith.constant 0 : index
    %25 = vector.load %arg14[%c0_31, %c0_32] : memref<64x64xf32, #tpu.memory_space<vmem>>, vector<64x64xf32>
    %c0_33 = arith.constant 0 : index
    %c0_34 = arith.constant 0 : index
    %26 = vector.load %arg15[%c0_33, %c0_34] : memref<1x64xf32, #tpu.memory_space<vmem>>, vector<1x64xf32>
    %cst_35 = arith.constant 0.000000e+00 : f32
    %27 = vector.broadcast %cst_35 : f32 to vector<8x64xf32>
    %c0_i32 = arith.constant 0 : i32
    %28 = tpu.assume_multiple %c0_i32, 8 : i32
    %cst_36 = arith.constant dense<0.000000e+00> : vector<8x64xf32>
    %29 = tpu.matmul %27, %23, %cst_36 {dimension_numbers = #tpu.dot_dimension_numbers<[1], [0], [0], [1], [0, 0, 1, 1], [], []>} : vector<8x64xf32>, vector<64x64xf32>, vector<8x64xf32> -> vector<8x64xf32>
    %cst_37 = arith.constant dense<0.000000e+00> : vector<8x64xf32>
    %30 = tpu.matmul %27, %24, %cst_37 {dimension_numbers = #tpu.dot_dimension_numbers<[1], [0], [0], [1], [0, 0, 1, 1], [], []>} : vector<8x64xf32>, vector<64x64xf32>, vector<8x64xf32> -> vector<8x64xf32>
    %cst_38 = arith.constant dense<0.000000e+00> : vector<8x64xf32>
    %31 = tpu.matmul %27, %25, %cst_38 {dimension_numbers = #tpu.dot_dimension_numbers<[1], [0], [0], [1], [0, 0, 1, 1], [], []>} : vector<8x64xf32>, vector<64x64xf32>, vector<8x64xf32> -> vector<8x64xf32>
    %32 = vector.broadcast %26 : vector<1x64xf32> to vector<8x64xf32>
    %33 = arith.addf %31, %32 : vector<8x64xf32>
    %34 = arith.index_cast %28 : i32 to index
    %c0_39 = arith.constant 0 : index
    %35 = vector.load %arg26[%34, %c0_39] : memref<64x64xf32, #tpu.memory_space<vmem>>, vector<8x64xf32>
    %36 = arith.addf %35, %29 : vector<8x64xf32>
    %37 = arith.negf %36 : vector<8x64xf32>
    %38 = math.exp %37 : vector<8x64xf32>
    %cst_40 = arith.constant 1.000000e+00 : f32
    %39 = vector.broadcast %cst_40 : f32 to vector<8x64xf32>
    %40 = arith.addf %39, %38 : vector<8x64xf32>
    %41 = arith.divf %39, %40 : vector<8x64xf32>
    %42 = arith.index_cast %28 : i32 to index
    %c0_41 = arith.constant 0 : index
    %43 = vector.load %arg27[%42, %c0_41] : memref<64x64xf32, #tpu.memory_space<vmem>>, vector<8x64xf32>
    %44 = arith.addf %43, %30 : vector<8x64xf32>
    %45 = arith.negf %44 : vector<8x64xf32>
    %46 = math.exp %45 : vector<8x64xf32>
    %cst_42 = arith.constant 1.000000e+00 : f32
    %47 = vector.broadcast %cst_42 : f32 to vector<8x64xf32>
    %48 = arith.addf %47, %46 : vector<8x64xf32>
    %49 = arith.divf %47, %48 : vector<8x64xf32>
    %50 = arith.index_cast %28 : i32 to index
    %c0_43 = arith.constant 0 : index
    %51 = vector.load %arg28[%50, %c0_43] : memref<64x64xf32, #tpu.memory_space<vmem>>, vector<8x64xf32>
    %52 = arith.mulf %41, %33 : vector<8x64xf32>
    %53 = arith.addf %51, %52 : vector<8x64xf32>
    %54 = math.tanh %53 : vector<8x64xf32>
    %cst_44 = arith.constant 1.000000e+00 : f32
    %55 = vector.broadcast %cst_44 : f32 to vector<8x64xf32>
    %56 = arith.subf %55, %49 : vector<8x64xf32>
    %57 = arith.mulf %56, %54 : vector<8x64xf32>
    %58 = arith.mulf %49, %27 : vector<8x64xf32>
    %59 = arith.addf %57, %58 : vector<8x64xf32>
    %60 = arith.index_cast %28 : i32 to index
    %c0_45 = arith.constant 0 : index
    %61 = vector.load %arg29[%60, %c0_45] : memref<64x64xf32, #tpu.memory_space<vmem>>, vector<8x64xf32>
    tpu.vector_store %arg29[%60, %c0_45], %59 {strides = array<i32>} : memref<64x64xf32, #tpu.memory_space<vmem>>, vector<8x64xf32>,
    %c8_i32 = arith.constant 8 : i32
    %62 = tpu.assume_multiple %c8_i32, 8 : i32
    %cst_46 = arith.constant dense<0.000000e+00> : vector<8x64xf32>
    %63 = tpu.matmul %59, %23, %cst_46 {dimension_numbers = #tpu.dot_dimension_numbers<[1], [0], [0], [1], [0, 0, 1, 1], [], []>} : vector<8x64xf32>, vector<64x64xf32>, vector<8x64xf32> -> vector<8x64xf32>
    %cst_47 = arith.constant dense<0.000000e+00> : vector<8x64xf32>
    %64 = tpu.matmul %59, %24, %cst_47 {dimension_numbers = #tpu.dot_dimension_numbers<[1], [0], [0], [1], [0, 0, 1, 1], [], []>} : vector<8x64xf32>, vector<64x64xf32>, vector<8x64xf32> -> vector<8x64xf32>
    %cst_48 = arith.constant dense<0.000000e+00> : vector<8x64xf32>
    %65 = tpu.matmul %59, %25, %cst_48 {dimension_numbers = #tpu.dot_dimension_numbers<[1], [0], [0], [1], [0, 0, 1, 1], [], []>} : vector<8x64xf32>, vector<64x64xf32>, vector<8x64xf32> -> vector<8x64xf32>
    %66 = vector.broadcast %26 : vector<1x64xf32> to vector<8x64xf32>
    %67 = arith.addf %65, %66 : vector<8x64xf32>
    %68 = arith.index_cast %62 : i32 to index
    %c0_49 = arith.constant 0 : index
    %69 = vector.load %arg26[%68, %c0_49] : memref<64x64xf32, #tpu.memory_space<vmem>>, vector<8x64xf32>
    %70 = arith.addf %69, %63 : vector<8x64xf32>
    %71 = arith.negf %70 : vector<8x64xf32>
    %72 = math.exp %71 : vector<8x64xf32>
    %cst_50 = arith.constant 1.000000e+00 : f32
    %73 = vector.broadcast %cst_50 : f32 to vector<8x64xf32>
    %74 = arith.addf %73, %72 : vector<8x64xf32>
    %75 = arith.divf %73, %74 : vector<8x64xf32>
    %76 = arith.index_cast %62 : i32 to index
    %c0_51 = arith.constant 0 : index
    %77 = vector.load %arg27[%76, %c0_51] : memref<64x64xf32, #tpu.memory_space<vmem>>, vector<8x64xf32>
    %78 = arith.addf %77, %64 : vector<8x64xf32>
    %79 = arith.negf %78 : vector<8x64xf32>
    %80 = math.exp %79 : vector<8x64xf32>
    %cst_52 = arith.constant 1.000000e+00 : f32
    %81 = vector.broadcast %cst_52 : f32 to vector<8x64xf32>
    %82 = arith.addf %81, %80 : vector<8x64xf32>
    %83 = arith.divf %81, %82 : vector<8x64xf32>
    %84 = arith.index_cast %62 : i32 to index
    %c0_53 = arith.constant 0 : index
    %85 = vector.load %arg28[%84, %c0_53] : memref<64x64xf32, #tpu.memory_space<vmem>>, vector<8x64xf32>
    %86 = arith.mulf %75, %67 : vector<8x64xf32>
    %87 = arith.addf %85, %86 : vector<8x64xf32>
    %88 = math.tanh %87 : vector<8x64xf32>
    %cst_54 = arith.constant 1.000000e+00 : f32
    %89 = vector.broadcast %cst_54 : f32 to vector<8x64xf32>
    %90 = arith.subf %89, %83 : vector<8x64xf32>
    %91 = arith.mulf %90, %88 : vector<8x64xf32>
    %92 = arith.mulf %83, %59 : vector<8x64xf32>
    %93 = arith.addf %91, %92 : vector<8x64xf32>
    %94 = arith.index_cast %62 : i32 to index
    %c0_55 = arith.constant 0 : index
    %95 = vector.load %arg29[%94, %c0_55] : memref<64x64xf32, #tpu.memory_space<vmem>>, vector<8x64xf32>
    tpu.vector_store %arg29[%94, %c0_55], %93 {strides = array<i32>} : memref<64x64xf32, #tpu.memory_space<vmem>>, vector<8x64xf32>,
    %c16_i32 = arith.constant 16 : i32
    %96 = tpu.assume_multiple %c16_i32, 8 : i32
    %cst_56 = arith.constant dense<0.000000e+00> : vector<8x64xf32>
    %97 = tpu.matmul %93, %23, %cst_56 {dimension_numbers = #tpu.dot_dimension_numbers<[1], [0], [0], [1], [0, 0, 1, 1], [], []>} : vector<8x64xf32>, vector<64x64xf32>, vector<8x64xf32> -> vector<8x64xf32>
    %cst_57 = arith.constant dense<0.000000e+00> : vector<8x64xf32>
    %98 = tpu.matmul %93, %24, %cst_57 {dimension_numbers = #tpu.dot_dimension_numbers<[1], [0], [0], [1], [0, 0, 1, 1], [], []>} : vector<8x64xf32>, vector<64x64xf32>, vector<8x64xf32> -> vector<8x64xf32>
    %cst_58 = arith.constant dense<0.000000e+00> : vector<8x64xf32>
    %99 = tpu.matmul %93, %25, %cst_58 {dimension_numbers = #tpu.dot_dimension_numbers<[1], [0], [0], [1], [0, 0, 1, 1], [], []>} : vector<8x64xf32>, vector<64x64xf32>, vector<8x64xf32> -> vector<8x64xf32>
    %100 = vector.broadcast %26 : vector<1x64xf32> to vector<8x64xf32>
    %101 = arith.addf %99, %100 : vector<8x64xf32>
    %102 = arith.index_cast %96 : i32 to index
    %c0_59 = arith.constant 0 : index
    %103 = vector.load %arg26[%102, %c0_59] : memref<64x64xf32, #tpu.memory_space<vmem>>, vector<8x64xf32>
    %104 = arith.addf %103, %97 : vector<8x64xf32>
    %105 = arith.negf %104 : vector<8x64xf32>
    %106 = math.exp %105 : vector<8x64xf32>
    %cst_60 = arith.constant 1.000000e+00 : f32
    %107 = vector.broadcast %cst_60 : f32 to vector<8x64xf32>
    %108 = arith.addf %107, %106 : vector<8x64xf32>
    %109 = arith.divf %107, %108 : vector<8x64xf32>
    %110 = arith.index_cast %96 : i32 to index
    %c0_61 = arith.constant 0 : index
    %111 = vector.load %arg27[%110, %c0_61] : memref<64x64xf32, #tpu.memory_space<vmem>>, vector<8x64xf32>
    %112 = arith.addf %111, %98 : vector<8x64xf32>
    %113 = arith.negf %112 : vector<8x64xf32>
    %114 = math.exp %113 : vector<8x64xf32>
    %cst_62 = arith.constant 1.000000e+00 : f32
    %115 = vector.broadcast %cst_62 : f32 to vector<8x64xf32>
    %116 = arith.addf %115, %114 : vector<8x64xf32>
    %117 = arith.divf %115, %116 : vector<8x64xf32>
    %118 = arith.index_cast %96 : i32 to index
    %c0_63 = arith.constant 0 : index
    %119 = vector.load %arg28[%118, %c0_63] : memref<64x64xf32, #tpu.memory_space<vmem>>, vector<8x64xf32>
    %120 = arith.mulf %109, %101 : vector<8x64xf32>
    %121 = arith.addf %119, %120 : vector<8x64xf32>
    %122 = math.tanh %121 : vector<8x64xf32>
    %cst_64 = arith.constant 1.000000e+00 : f32
    %123 = vector.broadcast %cst_64 : f32 to vector<8x64xf32>
    %124 = arith.subf %123, %117 : vector<8x64xf32>
    %125 = arith.mulf %124, %122 : vector<8x64xf32>
    %126 = arith.mulf %117, %93 : vector<8x64xf32>
    %127 = arith.addf %125, %126 : vector<8x64xf32>
    %128 = arith.index_cast %96 : i32 to index
    %c0_65 = arith.constant 0 : index
    %129 = vector.load %arg29[%128, %c0_65] : memref<64x64xf32, #tpu.memory_space<vmem>>, vector<8x64xf32>
    tpu.vector_store %arg29[%128, %c0_65], %127 {strides = array<i32>} : memref<64x64xf32, #tpu.memory_space<vmem>>, vector<8x64xf32>,
    %c24_i32 = arith.constant 24 : i32
    %130 = tpu.assume_multiple %c24_i32, 8 : i32
    %cst_66 = arith.constant dense<0.000000e+00> : vector<8x64xf32>
    %131 = tpu.matmul %127, %23, %cst_66 {dimension_numbers = #tpu.dot_dimension_numbers<[1], [0], [0], [1], [0, 0, 1, 1], [], []>} : vector<8x64xf32>, vector<64x64xf32>, vector<8x64xf32> -> vector<8x64xf32>
    %cst_67 = arith.constant dense<0.000000e+00> : vector<8x64xf32>
    %132 = tpu.matmul %127, %24, %cst_67 {dimension_numbers = #tpu.dot_dimension_numbers<[1], [0], [0], [1], [0, 0, 1, 1], [], []>} : vector<8x64xf32>, vector<64x64xf32>, vector<8x64xf32> -> vector<8x64xf32>
    %cst_68 = arith.constant dense<0.000000e+00> : vector<8x64xf32>
    %133 = tpu.matmul %127, %25, %cst_68 {dimension_numbers = #tpu.dot_dimension_numbers<[1], [0], [0], [1], [0, 0, 1, 1], [], []>} : vector<8x64xf32>, vector<64x64xf32>, vector<8x64xf32> -> vector<8x64xf32>
    %134 = vector.broadcast %26 : vector<1x64xf32> to vector<8x64xf32>
    %135 = arith.addf %133, %134 : vector<8x64xf32>
    %136 = arith.index_cast %130 : i32 to index
    %c0_69 = arith.constant 0 : index
    %137 = vector.load %arg26[%136, %c0_69] : memref<64x64xf32, #tpu.memory_space<vmem>>, vector<8x64xf32>
    %138 = arith.addf %137, %131 : vector<8x64xf32>
    %139 = arith.negf %138 : vector<8x64xf32>
    %140 = math.exp %139 : vector<8x64xf32>
    %cst_70 = arith.constant 1.000000e+00 : f32
    %141 = vector.broadcast %cst_70 : f32 to vector<8x64xf32>
    %142 = arith.addf %141, %140 : vector<8x64xf32>
    %143 = arith.divf %141, %142 : vector<8x64xf32>
    %144 = arith.index_cast %130 : i32 to index
    %c0_71 = arith.constant 0 : index
    %145 = vector.load %arg27[%144, %c0_71] : memref<64x64xf32, #tpu.memory_space<vmem>>, vector<8x64xf32>
    %146 = arith.addf %145, %132 : vector<8x64xf32>
    %147 = arith.negf %146 : vector<8x64xf32>
    %148 = math.exp %147 : vector<8x64xf32>
    %cst_72 = arith.constant 1.000000e+00 : f32
    %149 = vector.broadcast %cst_72 : f32 to vector<8x64xf32>
    %150 = arith.addf %149, %148 : vector<8x64xf32>
    %151 = arith.divf %149, %150 : vector<8x64xf32>
    %152 = arith.index_cast %130 : i32 to index
    %c0_73 = arith.constant 0 : index
    %153 = vector.load %arg28[%152, %c0_73] : memref<64x64xf32, #tpu.memory_space<vmem>>, vector<8x64xf32>
    %154 = arith.mulf %143, %135 : vector<8x64xf32>
    %155 = arith.addf %153, %154 : vector<8x64xf32>
    %156 = math.tanh %155 : vector<8x64xf32>
    %cst_74 = arith.constant 1.000000e+00 : f32
    %157 = vector.broadcast %cst_74 : f32 to vector<8x64xf32>
    %158 = arith.subf %157, %151 : vector<8x64xf32>
    %159 = arith.mulf %158, %156 : vector<8x64xf32>
    %160 = arith.mulf %151, %127 : vector<8x64xf32>
    %161 = arith.addf %159, %160 : vector<8x64xf32>
    %162 = arith.index_cast %130 : i32 to index
    %c0_75 = arith.constant 0 : index
    %163 = vector.load %arg29[%162, %c0_75] : memref<64x64xf32, #tpu.memory_space<vmem>>, vector<8x64xf32>
    tpu.vector_store %arg29[%162, %c0_75], %161 {strides = array<i32>} : memref<64x64xf32, #tpu.memory_space<vmem>>, vector<8x64xf32>,
    %c32_i32 = arith.constant 32 : i32
    %164 = tpu.assume_multiple %c32_i32, 8 : i32
    %cst_76 = arith.constant dense<0.000000e+00> : vector<8x64xf32>
    %165 = tpu.matmul %161, %23, %cst_76 {dimension_numbers = #tpu.dot_dimension_numbers<[1], [0], [0], [1], [0, 0, 1, 1], [], []>} : vector<8x64xf32>, vector<64x64xf32>, vector<8x64xf32> -> vector<8x64xf32>
    %cst_77 = arith.constant dense<0.000000e+00> : vector<8x64xf32>
    %166 = tpu.matmul %161, %24, %cst_77 {dimension_numbers = #tpu.dot_dimension_numbers<[1], [0], [0], [1], [0, 0, 1, 1], [], []>} : vector<8x64xf32>, vector<64x64xf32>, vector<8x64xf32> -> vector<8x64xf32>
    %cst_78 = arith.constant dense<0.000000e+00> : vector<8x64xf32>
    %167 = tpu.matmul %161, %25, %cst_78 {dimension_numbers = #tpu.dot_dimension_numbers<[1], [0], [0], [1], [0, 0, 1, 1], [], []>} : vector<8x64xf32>, vector<64x64xf32>, vector<8x64xf32> -> vector<8x64xf32>
    %168 = vector.broadcast %26 : vector<1x64xf32> to vector<8x64xf32>
    %169 = arith.addf %167, %168 : vector<8x64xf32>
    %170 = arith.index_cast %164 : i32 to index
    %c0_79 = arith.constant 0 : index
    %171 = vector.load %arg26[%170, %c0_79] : memref<64x64xf32, #tpu.memory_space<vmem>>, vector<8x64xf32>
    %172 = arith.addf %171, %165 : vector<8x64xf32>
    %173 = arith.negf %172 : vector<8x64xf32>
    %174 = math.exp %173 : vector<8x64xf32>
    %cst_80 = arith.constant 1.000000e+00 : f32
    %175 = vector.broadcast %cst_80 : f32 to vector<8x64xf32>
    %176 = arith.addf %175, %174 : vector<8x64xf32>
    %177 = arith.divf %175, %176 : vector<8x64xf32>
    %178 = arith.index_cast %164 : i32 to index
    %c0_81 = arith.constant 0 : index
    %179 = vector.load %arg27[%178, %c0_81] : memref<64x64xf32, #tpu.memory_space<vmem>>, vector<8x64xf32>
    %180 = arith.addf %179, %166 : vector<8x64xf32>
    %181 = arith.negf %180 : vector<8x64xf32>
    %182 = math.exp %181 : vector<8x64xf32>
    %cst_82 = arith.constant 1.000000e+00 : f32
    %183 = vector.broadcast %cst_82 : f32 to vector<8x64xf32>
    %184 = arith.addf %183, %182 : vector<8x64xf32>
    %185 = arith.divf %183, %184 : vector<8x64xf32>
    %186 = arith.index_cast %164 : i32 to index
    %c0_83 = arith.constant 0 : index
    %187 = vector.load %arg28[%186, %c0_83] : memref<64x64xf32, #tpu.memory_space<vmem>>, vector<8x64xf32>
    %188 = arith.mulf %177, %169 : vector<8x64xf32>
    %189 = arith.addf %187, %188 : vector<8x64xf32>
    %190 = math.tanh %189 : vector<8x64xf32>
    %cst_84 = arith.constant 1.000000e+00 : f32
    %191 = vector.broadcast %cst_84 : f32 to vector<8x64xf32>
    %192 = arith.subf %191, %185 : vector<8x64xf32>
    %193 = arith.mulf %192, %190 : vector<8x64xf32>
    %194 = arith.mulf %185, %161 : vector<8x64xf32>
    %195 = arith.addf %193, %194 : vector<8x64xf32>
    %196 = arith.index_cast %164 : i32 to index
    %c0_85 = arith.constant 0 : index
    %197 = vector.load %arg29[%196, %c0_85] : memref<64x64xf32, #tpu.memory_space<vmem>>, vector<8x64xf32>
    tpu.vector_store %arg29[%196, %c0_85], %195 {strides = array<i32>} : memref<64x64xf32, #tpu.memory_space<vmem>>, vector<8x64xf32>,
    %c40_i32 = arith.constant 40 : i32
    %198 = tpu.assume_multiple %c40_i32, 8 : i32
    %cst_86 = arith.constant dense<0.000000e+00> : vector<8x64xf32>
    %199 = tpu.matmul %195, %23, %cst_86 {dimension_numbers = #tpu.dot_dimension_numbers<[1], [0], [0], [1], [0, 0, 1, 1], [], []>} : vector<8x64xf32>, vector<64x64xf32>, vector<8x64xf32> -> vector<8x64xf32>
    %cst_87 = arith.constant dense<0.000000e+00> : vector<8x64xf32>
    %200 = tpu.matmul %195, %24, %cst_87 {dimension_numbers = #tpu.dot_dimension_numbers<[1], [0], [0], [1], [0, 0, 1, 1], [], []>} : vector<8x64xf32>, vector<64x64xf32>, vector<8x64xf32> -> vector<8x64xf32>
    %cst_88 = arith.constant dense<0.000000e+00> : vector<8x64xf32>
    %201 = tpu.matmul %195, %25, %cst_88 {dimension_numbers = #tpu.dot_dimension_numbers<[1], [0], [0], [1], [0, 0, 1, 1], [], []>} : vector<8x64xf32>, vector<64x64xf32>, vector<8x64xf32> -> vector<8x64xf32>
    %202 = vector.broadcast %26 : vector<1x64xf32> to vector<8x64xf32>
    %203 = arith.addf %201, %202 : vector<8x64xf32>
    %204 = arith.index_cast %198 : i32 to index
    %c0_89 = arith.constant 0 : index
    %205 = vector.load %arg26[%204, %c0_89] : memref<64x64xf32, #tpu.memory_space<vmem>>, vector<8x64xf32>
    %206 = arith.addf %205, %199 : vector<8x64xf32>
    %207 = arith.negf %206 : vector<8x64xf32>
    %208 = math.exp %207 : vector<8x64xf32>
    %cst_90 = arith.constant 1.000000e+00 : f32
    %209 = vector.broadcast %cst_90 : f32 to vector<8x64xf32>
    %210 = arith.addf %209, %208 : vector<8x64xf32>
    %211 = arith.divf %209, %210 : vector<8x64xf32>
    %212 = arith.index_cast %198 : i32 to index
    %c0_91 = arith.constant 0 : index
    %213 = vector.load %arg27[%212, %c0_91] : memref<64x64xf32, #tpu.memory_space<vmem>>, vector<8x64xf32>
    %214 = arith.addf %213, %200 : vector<8x64xf32>
    %215 = arith.negf %214 : vector<8x64xf32>
    %216 = math.exp %215 : vector<8x64xf32>
    %cst_92 = arith.constant 1.000000e+00 : f32
    %217 = vector.broadcast %cst_92 : f32 to vector<8x64xf32>
    %218 = arith.addf %217, %216 : vector<8x64xf32>
    %219 = arith.divf %217, %218 : vector<8x64xf32>
    %220 = arith.index_cast %198 : i32 to index
    %c0_93 = arith.constant 0 : index
    %221 = vector.load %arg28[%220, %c0_93] : memref<64x64xf32, #tpu.memory_space<vmem>>, vector<8x64xf32>
    %222 = arith.mulf %211, %203 : vector<8x64xf32>
    %223 = arith.addf %221, %222 : vector<8x64xf32>
    %224 = math.tanh %223 : vector<8x64xf32>
    %cst_94 = arith.constant 1.000000e+00 : f32
    %225 = vector.broadcast %cst_94 : f32 to vector<8x64xf32>
    %226 = arith.subf %225, %219 : vector<8x64xf32>
    %227 = arith.mulf %226, %224 : vector<8x64xf32>
    %228 = arith.mulf %219, %195 : vector<8x64xf32>
    %229 = arith.addf %227, %228 : vector<8x64xf32>
    %230 = arith.index_cast %198 : i32 to index
    %c0_95 = arith.constant 0 : index
    %231 = vector.load %arg29[%230, %c0_95] : memref<64x64xf32, #tpu.memory_space<vmem>>, vector<8x64xf32>
    tpu.vector_store %arg29[%230, %c0_95], %229 {strides = array<i32>} : memref<64x64xf32, #tpu.memory_space<vmem>>, vector<8x64xf32>,
    %c48_i32 = arith.constant 48 : i32
    %232 = tpu.assume_multiple %c48_i32, 8 : i32
    %cst_96 = arith.constant dense<0.000000e+00> : vector<8x64xf32>
    %233 = tpu.matmul %229, %23, %cst_96 {dimension_numbers = #tpu.dot_dimension_numbers<[1], [0], [0], [1], [0, 0, 1, 1], [], []>} : vector<8x64xf32>, vector<64x64xf32>, vector<8x64xf32> -> vector<8x64xf32>
    %cst_97 = arith.constant dense<0.000000e+00> : vector<8x64xf32>
    %234 = tpu.matmul %229, %24, %cst_97 {dimension_numbers = #tpu.dot_dimension_numbers<[1], [0], [0], [1], [0, 0, 1, 1], [], []>} : vector<8x64xf32>, vector<64x64xf32>, vector<8x64xf32> -> vector<8x64xf32>
    %cst_98 = arith.constant dense<0.000000e+00> : vector<8x64xf32>
    %235 = tpu.matmul %229, %25, %cst_98 {dimension_numbers = #tpu.dot_dimension_numbers<[1], [0], [0], [1], [0, 0, 1, 1], [], []>} : vector<8x64xf32>, vector<64x64xf32>, vector<8x64xf32> -> vector<8x64xf32>
    %236 = vector.broadcast %26 : vector<1x64xf32> to vector<8x64xf32>
    %237 = arith.addf %235, %236 : vector<8x64xf32>
    %238 = arith.index_cast %232 : i32 to index
    %c0_99 = arith.constant 0 : index
    %239 = vector.load %arg26[%238, %c0_99] : memref<64x64xf32, #tpu.memory_space<vmem>>, vector<8x64xf32>
    %240 = arith.addf %239, %233 : vector<8x64xf32>
    %241 = arith.negf %240 : vector<8x64xf32>
    %242 = math.exp %241 : vector<8x64xf32>
    %cst_100 = arith.constant 1.000000e+00 : f32
    %243 = vector.broadcast %cst_100 : f32 to vector<8x64xf32>
    %244 = arith.addf %243, %242 : vector<8x64xf32>
    %245 = arith.divf %243, %244 : vector<8x64xf32>
    %246 = arith.index_cast %232 : i32 to index
    %c0_101 = arith.constant 0 : index
    %247 = vector.load %arg27[%246, %c0_101] : memref<64x64xf32, #tpu.memory_space<vmem>>, vector<8x64xf32>
    %248 = arith.addf %247, %234 : vector<8x64xf32>
    %249 = arith.negf %248 : vector<8x64xf32>
    %250 = math.exp %249 : vector<8x64xf32>
    %cst_102 = arith.constant 1.000000e+00 : f32
    %251 = vector.broadcast %cst_102 : f32 to vector<8x64xf32>
    %252 = arith.addf %251, %250 : vector<8x64xf32>
    %253 = arith.divf %251, %252 : vector<8x64xf32>
    %254 = arith.index_cast %232 : i32 to index
    %c0_103 = arith.constant 0 : index
    %255 = vector.load %arg28[%254, %c0_103] : memref<64x64xf32, #tpu.memory_space<vmem>>, vector<8x64xf32>
    %256 = arith.mulf %245, %237 : vector<8x64xf32>
    %257 = arith.addf %255, %256 : vector<8x64xf32>
    %258 = math.tanh %257 : vector<8x64xf32>
    %cst_104 = arith.constant 1.000000e+00 : f32
    %259 = vector.broadcast %cst_104 : f32 to vector<8x64xf32>
    %260 = arith.subf %259, %253 : vector<8x64xf32>
    %261 = arith.mulf %260, %258 : vector<8x64xf32>
    %262 = arith.mulf %253, %229 : vector<8x64xf32>
    %263 = arith.addf %261, %262 : vector<8x64xf32>
    %264 = arith.index_cast %232 : i32 to index
    %c0_105 = arith.constant 0 : index
    %265 = vector.load %arg29[%264, %c0_105] : memref<64x64xf32, #tpu.memory_space<vmem>>, vector<8x64xf32>
    tpu.vector_store %arg29[%264, %c0_105], %263 {strides = array<i32>} : memref<64x64xf32, #tpu.memory_space<vmem>>, vector<8x64xf32>,
    %c56_i32 = arith.constant 56 : i32
    %266 = tpu.assume_multiple %c56_i32, 8 : i32
    %cst_106 = arith.constant dense<0.000000e+00> : vector<8x64xf32>
    %267 = tpu.matmul %263, %23, %cst_106 {dimension_numbers = #tpu.dot_dimension_numbers<[1], [0], [0], [1], [0, 0, 1, 1], [], []>} : vector<8x64xf32>, vector<64x64xf32>, vector<8x64xf32> -> vector<8x64xf32>
    %cst_107 = arith.constant dense<0.000000e+00> : vector<8x64xf32>
    %268 = tpu.matmul %263, %24, %cst_107 {dimension_numbers = #tpu.dot_dimension_numbers<[1], [0], [0], [1], [0, 0, 1, 1], [], []>} : vector<8x64xf32>, vector<64x64xf32>, vector<8x64xf32> -> vector<8x64xf32>
    %cst_108 = arith.constant dense<0.000000e+00> : vector<8x64xf32>
    %269 = tpu.matmul %263, %25, %cst_108 {dimension_numbers = #tpu.dot_dimension_numbers<[1], [0], [0], [1], [0, 0, 1, 1], [], []>} : vector<8x64xf32>, vector<64x64xf32>, vector<8x64xf32> -> vector<8x64xf32>
    %270 = vector.broadcast %26 : vector<1x64xf32> to vector<8x64xf32>
    %271 = arith.addf %269, %270 : vector<8x64xf32>
    %272 = arith.index_cast %266 : i32 to index
    %c0_109 = arith.constant 0 : index
    %273 = vector.load %arg26[%272, %c0_109] : memref<64x64xf32, #tpu.memory_space<vmem>>, vector<8x64xf32>
    %274 = arith.addf %273, %267 : vector<8x64xf32>
    %275 = arith.negf %274 : vector<8x64xf32>
    %276 = math.exp %275 : vector<8x64xf32>
    %cst_110 = arith.constant 1.000000e+00 : f32
    %277 = vector.broadcast %cst_110 : f32 to vector<8x64xf32>
    %278 = arith.addf %277, %276 : vector<8x64xf32>
    %279 = arith.divf %277, %278 : vector<8x64xf32>
    %280 = arith.index_cast %266 : i32 to index
    %c0_111 = arith.constant 0 : index
    %281 = vector.load %arg27[%280, %c0_111] : memref<64x64xf32, #tpu.memory_space<vmem>>, vector<8x64xf32>
    %282 = arith.addf %281, %268 : vector<8x64xf32>
    %283 = arith.negf %282 : vector<8x64xf32>
    %284 = math.exp %283 : vector<8x64xf32>
    %cst_112 = arith.constant 1.000000e+00 : f32
    %285 = vector.broadcast %cst_112 : f32 to vector<8x64xf32>
    %286 = arith.addf %285, %284 : vector<8x64xf32>
    %287 = arith.divf %285, %286 : vector<8x64xf32>
    %288 = arith.index_cast %266 : i32 to index
    %c0_113 = arith.constant 0 : index
    %289 = vector.load %arg28[%288, %c0_113] : memref<64x64xf32, #tpu.memory_space<vmem>>, vector<8x64xf32>
    %290 = arith.mulf %279, %271 : vector<8x64xf32>
    %291 = arith.addf %289, %290 : vector<8x64xf32>
    %292 = math.tanh %291 : vector<8x64xf32>
    %cst_114 = arith.constant 1.000000e+00 : f32
    %293 = vector.broadcast %cst_114 : f32 to vector<8x64xf32>
    %294 = arith.subf %293, %287 : vector<8x64xf32>
    %295 = arith.mulf %294, %292 : vector<8x64xf32>
    %296 = arith.mulf %287, %263 : vector<8x64xf32>
    %297 = arith.addf %295, %296 : vector<8x64xf32>
    %298 = arith.index_cast %266 : i32 to index
    %c0_115 = arith.constant 0 : index
    %299 = vector.load %arg29[%298, %c0_115] : memref<64x64xf32, #tpu.memory_space<vmem>>, vector<8x64xf32>
    tpu.vector_store %arg29[%298, %c0_115], %297 {strides = array<i32>} : memref<64x64xf32, #tpu.memory_space<vmem>>, vector<8x64xf32>,
    %c0_116 = arith.constant 0 : index
    %c0_117 = arith.constant 0 : index
    %300 = vector.load %arg29[%c0_116, %c0_117] : memref<64x64xf32, #tpu.memory_space<vmem>>, vector<64x64xf32>
    %c0_118 = arith.constant 0 : index
    %c0_119 = arith.constant 0 : index
    %c0_120 = arith.constant 0 : index
    %301 = vector.load %arg2[%c0_118, %c0_119, %c0_120] : memref<1x64x1xf32, #tpu.memory_space<vmem>>, vector<1x64x1xf32>
    %302 = vector.shape_cast %301 : vector<1x64x1xf32> to vector<64x1xf32>
    %c0_121 = arith.constant 0 : index
    %c0_122 = arith.constant 0 : index
    %303 = vector.load %arg16[%c0_121, %c0_122] : memref<1x64xf32, #tpu.memory_space<vmem>>, vector<1x64xf32>
    %304 = vector.broadcast %303 : vector<1x64xf32> to vector<64x64xf32>
    %305 = arith.mulf %300, %304 : vector<64x64xf32>
    %cst_123 = arith.constant dense<0.000000e+00> : vector<64xf32>
    %306 = vector.multi_reduction <add>, %305, %cst_123 [1] : vector<64x64xf32> to vector<64xf32>
    %307 = vector.shape_cast %306 : vector<64xf32> to vector<64x1xf32>
    %c0_124 = arith.constant 0 : index
    %c0_125 = arith.constant 0 : index
    %308 = vector.load %arg17[%c0_124, %c0_125] : memref<1x1xf32, #tpu.memory_space<vmem>>, vector<1x1xf32>
    %309 = vector.broadcast %308 : vector<1x1xf32> to vector<64x1xf32>
    %310 = arith.addf %307, %309 : vector<64x1xf32>
    %311 = math.exp %310 : vector<64x1xf32>
    %312 = arith.mulf %311, %302 : vector<64x1xf32>
    %c0_126 = arith.constant 0 : index
    %c0_127 = arith.constant 0 : index
    %313 = vector.load %arg3[%c0_126, %c0_127] : memref<8x64xf32, #tpu.memory_space<vmem>>, vector<8x64xf32>
    %cst_128 = arith.constant dense<0.000000e+00> : vector<8x1xf32>
    %314 = tpu.matmul %313, %312, %cst_128 {dimension_numbers = #tpu.dot_dimension_numbers<[1], [0], [0], [1], [0, 0, 1, 1], [], []>} : vector<8x64xf32>, vector<64x1xf32>, vector<8x1xf32> -> vector<8x1xf32>
    %c0_129 = arith.constant 0 : index
    %c0_130 = arith.constant 0 : index
    %315 = vector.load %arg4[%c0_129, %c0_130] : memref<64x8xf32, #tpu.memory_space<vmem>>, vector<64x8xf32>
    %cst_131 = arith.constant dense<0.000000e+00> : vector<64x1xf32>
    %316 = tpu.matmul %315, %314, %cst_131 {dimension_numbers = #tpu.dot_dimension_numbers<[1], [0], [0], [1], [0, 0, 1, 1], [], []>} : vector<64x8xf32>, vector<8x1xf32>, vector<64x1xf32> -> vector<64x1xf32>
    %cst_132 = arith.constant 1.000000e-30 : f32
    %317 = vector.broadcast %cst_132 : f32 to vector<64x1xf32>
    %318 = arith.addf %316, %317 : vector<64x1xf32>
    %319 = tpu.reciprocal %318 {approx = true} : vector<64x1xf32> -> vector<64x1xf32>
    %320 = arith.mulf %312, %319 : vector<64x1xf32>
    %c0_133 = arith.constant 0 : index
    %c0_134 = arith.constant 0 : index
    %c0_135 = arith.constant 0 : index
    %321 = vector.load %arg23[%c0_133, %c0_134, %c0_135] : memref<1x64x1xf32, #tpu.memory_space<vmem>>, vector<1x64x1xf32>
    %322 = vector.shape_cast %321 : vector<1x64x1xf32> to vector<64x1xf32>
    %323 = vector.shape_cast %320 : vector<64x1xf32> to vector<1x64x1xf32>
    tpu.vector_store %arg23[%c0_133, %c0_134, %c0_135], %323 {strides = array<i32>} : memref<1x64x1xf32, #tpu.memory_space<vmem>>, vector<1x64x1xf32>,
    %c0_136 = arith.constant 0 : index
    %c0_137 = arith.constant 0 : index
    %324 = vector.load %arg18[%c0_136, %c0_137] : memref<64x32xf32, #tpu.memory_space<vmem>>, vector<64x32xf32>
    %cst_138 = arith.constant dense<0.000000e+00> : vector<64x32xf32>
    %325 = tpu.matmul %300, %324, %cst_138 {dimension_numbers = #tpu.dot_dimension_numbers<[1], [0], [0], [1], [0, 0, 1, 1], [], []>} : vector<64x64xf32>, vector<64x32xf32>, vector<64x32xf32> -> vector<64x32xf32>
    %c0_139 = arith.constant 0 : index
    %c0_140 = arith.constant 0 : index
    %326 = vector.load %arg19[%c0_139, %c0_140] : memref<1x32xf32, #tpu.memory_space<vmem>>, vector<1x32xf32>
    %327 = vector.broadcast %326 : vector<1x32xf32> to vector<64x32xf32>
    %328 = arith.addf %325, %327 : vector<64x32xf32>
    %329 = vector.broadcast %302 : vector<64x1xf32> to vector<64x32xf32>
    %330 = arith.mulf %328, %329 : vector<64x32xf32>
    %331 = math.tanh %330 : vector<64x32xf32>
    %c0_141 = arith.constant 0 : index
    %c0_142 = arith.constant 0 : index
    %c0_143 = arith.constant 0 : index
    %332 = vector.load %arg24[%c0_141, %c0_142, %c0_143] : memref<1x64x32xf32, #tpu.memory_space<vmem>>, vector<1x64x32xf32>
    %333 = vector.shape_cast %332 : vector<1x64x32xf32> to vector<64x32xf32>
    %334 = vector.shape_cast %331 : vector<64x32xf32> to vector<1x64x32xf32>
    tpu.vector_store %arg24[%c0_141, %c0_142, %c0_143], %334 {strides = array<i32>} : memref<1x64x32xf32, #tpu.memory_space<vmem>>, vector<1x64x32xf32>,
    %c0_144 = arith.constant 0 : index
    %c0_145 = arith.constant 0 : index
    %335 = vector.load %arg3[%c0_144, %c0_145] : memref<8x64xf32, #tpu.memory_space<vmem>>, vector<8x64xf32>
    %336 = vector.broadcast %320 : vector<64x1xf32> to vector<64x32xf32>
    %337 = arith.mulf %336, %331 : vector<64x32xf32>
    %338 = arith.mulf %337, %3 : vector<64x32xf32>
    %cst_146 = arith.constant dense<0.000000e+00> : vector<8x32xf32>
    %339 = tpu.matmul %335, %338, %cst_146 {dimension_numbers = #tpu.dot_dimension_numbers<[1], [0], [0], [1], [0, 0, 1, 1], [], []>} : vector<8x64xf32>, vector<64x32xf32>, vector<8x32xf32> -> vector<8x32xf32>
    %c0_147 = arith.constant 0 : index
    %c0_148 = arith.constant 0 : index
    %340 = vector.load %arg20[%c0_147, %c0_148] : memref<32x2xf32, #tpu.memory_space<vmem>>, vector<32x2xf32>
    %cst_149 = arith.constant dense<0.000000e+00> : vector<8x2xf32>
    %341 = tpu.matmul %339, %340, %cst_149 {dimension_numbers = #tpu.dot_dimension_numbers<[1], [0], [0], [1], [0, 0, 1, 1], [], []>} : vector<8x32xf32>, vector<32x2xf32>, vector<8x2xf32> -> vector<8x2xf32>
    %c0_150 = arith.constant 0 : index
    %c0_151 = arith.constant 0 : index
    %342 = vector.load %arg21[%c0_150, %c0_151] : memref<1x2xf32, #tpu.memory_space<vmem>>, vector<1x2xf32>
    %343 = vector.broadcast %342 : vector<1x2xf32> to vector<8x2xf32>
    %344 = arith.addf %341, %343 : vector<8x2xf32>
    %c0_152 = arith.constant 0 : index
    %c0_153 = arith.constant 0 : index
    %345 = vector.load %arg22[%c0_152, %c0_153] : memref<8x2xf32, #tpu.memory_space<vmem>>, vector<8x2xf32>
    tpu.vector_store %arg22[%c0_152, %c0_153], %344 {strides = array<i32>} : memref<8x2xf32, #tpu.memory_space<vmem>>, vector<8x2xf32>,
    return
  }
  func.func @transform_0(%arg0: i32) -> (i32, i32, i32) {
    %c0_i32 = arith.constant 0 : i32
    %c0_i32_0 = arith.constant 0 : i32
    %c0_i32_1 = arith.constant 0 : i32
    return %arg0, %c0_i32, %c0_i32_0 : i32, i32, i32
  }
  func.func @transform_1(%arg0: i32) -> (i32, i32, i32) {
    %c0_i32 = arith.constant 0 : i32
    %c0_i32_0 = arith.constant 0 : i32
    %c0_i32_1 = arith.constant 0 : i32
    return %arg0, %c0_i32, %c0_i32_0 : i32, i32, i32
  }
  func.func @transform_2(%arg0: i32) -> (i32, i32) {
    %c0_i32 = arith.constant 0 : i32
    %c0_i32_0 = arith.constant 0 : i32
    %c0_i32_1 = arith.constant 0 : i32
    return %c0_i32, %c0_i32_0 : i32, i32
  }
  func.func @transform_3(%arg0: i32) -> (i32, i32) {
    %c0_i32 = arith.constant 0 : i32
    %c0_i32_0 = arith.constant 0 : i32
    %c0_i32_1 = arith.constant 0 : i32
    return %c0_i32, %c0_i32_0 : i32, i32
  }
  func.func @transform_4(%arg0: i32) -> (i32, i32) {
    %c0_i32 = arith.constant 0 : i32
    %c0_i32_0 = arith.constant 0 : i32
    %c0_i32_1 = arith.constant 0 : i32
    return %c0_i32, %c0_i32_0 : i32, i32
  }
  func.func @transform_5(%arg0: i32) -> (i32, i32) {
    %c0_i32 = arith.constant 0 : i32
    %c0_i32_0 = arith.constant 0 : i32
    %c0_i32_1 = arith.constant 0 : i32
    return %c0_i32, %c0_i32_0 : i32, i32
  }
  func.func @transform_6(%arg0: i32) -> (i32, i32) {
    %c0_i32 = arith.constant 0 : i32
    %c0_i32_0 = arith.constant 0 : i32
    %c0_i32_1 = arith.constant 0 : i32
    return %c0_i32, %c0_i32_0 : i32, i32
  }
  func.func @transform_7(%arg0: i32) -> (i32, i32) {
    %c0_i32 = arith.constant 0 : i32
    %c0_i32_0 = arith.constant 0 : i32
    %c0_i32_1 = arith.constant 0 : i32
    return %c0_i32, %c0_i32_0 : i32, i32
  }
  func.func @transform_8(%arg0: i32) -> (i32, i32) {
    %c0_i32 = arith.constant 0 : i32
    %c0_i32_0 = arith.constant 0 : i32
    %c0_i32_1 = arith.constant 0 : i32
    return %c0_i32, %c0_i32_0 : i32, i32
  }
  func.func @transform_9(%arg0: i32) -> (i32, i32) {
    %c0_i32 = arith.constant 0 : i32
    %c0_i32_0 = arith.constant 0 : i32
    %c0_i32_1 = arith.constant 0 : i32
    return %c0_i32, %c0_i32_0 : i32, i32
  }
  func.func @transform_10(%arg0: i32) -> (i32, i32) {
    %c0_i32 = arith.constant 0 : i32
    %c0_i32_0 = arith.constant 0 : i32
    %c0_i32_1 = arith.constant 0 : i32
    return %c0_i32, %c0_i32_0 : i32, i32
  }
  func.func @transform_11(%arg0: i32) -> (i32, i32) {
    %c0_i32 = arith.constant 0 : i32
    %c0_i32_0 = arith.constant 0 : i32
    %c0_i32_1 = arith.constant 0 : i32
    return %c0_i32, %c0_i32_0 : i32, i32
  }
  func.func @transform_12(%arg0: i32) -> (i32, i32) {
    %c0_i32 = arith.constant 0 : i32
    %c0_i32_0 = arith.constant 0 : i32
    %c0_i32_1 = arith.constant 0 : i32
    return %c0_i32, %c0_i32_0 : i32, i32
  }
  func.func @transform_13(%arg0: i32) -> (i32, i32) {
    %c0_i32 = arith.constant 0 : i32
    %c0_i32_0 = arith.constant 0 : i32
    %c0_i32_1 = arith.constant 0 : i32
    return %c0_i32, %c0_i32_0 : i32, i32
  }
  func.func @transform_14(%arg0: i32) -> (i32, i32) {
    %c0_i32 = arith.constant 0 : i32
    %c0_i32_0 = arith.constant 0 : i32
    %c0_i32_1 = arith.constant 0 : i32
    return %c0_i32, %c0_i32_0 : i32, i32
  }
  func.func @transform_15(%arg0: i32) -> (i32, i32) {
    %c0_i32 = arith.constant 0 : i32
    %c0_i32_0 = arith.constant 0 : i32
    %c0_i32_1 = arith.constant 0 : i32
    return %c0_i32, %c0_i32_0 : i32, i32
  }
  func.func @transform_16(%arg0: i32) -> (i32, i32) {
    %c0_i32 = arith.constant 0 : i32
    %c0_i32_0 = arith.constant 0 : i32
    %c0_i32_1 = arith.constant 0 : i32
    return %c0_i32, %c0_i32_0 : i32, i32
  }
  func.func @transform_17(%arg0: i32) -> (i32, i32) {
    %c0_i32 = arith.constant 0 : i32
    %c0_i32_0 = arith.constant 0 : i32
    %c0_i32_1 = arith.constant 0 : i32
    return %c0_i32, %c0_i32_0 : i32, i32
  }
  func.func @transform_18(%arg0: i32) -> (i32, i32) {
    %c0_i32 = arith.constant 0 : i32
    %c0_i32_0 = arith.constant 0 : i32
    %c0_i32_1 = arith.constant 0 : i32
    return %c0_i32, %c0_i32_0 : i32, i32
  }
  func.func @transform_19(%arg0: i32) -> (i32, i32) {
    %c0_i32 = arith.constant 0 : i32
    %c0_i32_0 = arith.constant 0 : i32
    %c0_i32_1 = arith.constant 0 : i32
    return %c0_i32, %c0_i32_0 : i32, i32
  }
  func.func @transform_20(%arg0: i32) -> (i32, i32) {
    %c0_i32 = arith.constant 0 : i32
    %c0_i32_0 = arith.constant 0 : i32
    %c0_i32_1 = arith.constant 0 : i32
    return %c0_i32, %c0_i32_0 : i32, i32
  }
  func.func @transform_21(%arg0: i32) -> (i32, i32) {
    %c0_i32 = arith.constant 0 : i32
    %c0_i32_0 = arith.constant 0 : i32
    return %arg0, %c0_i32 : i32, i32
  }
  func.func @transform_22(%arg0: i32) -> (i32, i32, i32) {
    %c0_i32 = arith.constant 0 : i32
    %c0_i32_0 = arith.constant 0 : i32
    %c0_i32_1 = arith.constant 0 : i32
    return %arg0, %c0_i32, %c0_i32_0 : i32, i32, i32
  }
  func.func @transform_23(%arg0: i32) -> (i32, i32, i32) {
    %c0_i32 = arith.constant 0 : i32
    %c0_i32_0 = arith.constant 0 : i32
    %c0_i32_1 = arith.constant 0 : i32
    return %arg0, %c0_i32, %c0_i32_0 : i32, i32, i32
  }
}

</mosaic_0001>

<llo_original>
// kernel: tpu_custom_call.1
$region0: #{tpu_custom_call.1}
  #allocation0 [shape = 'u32[]', space=smem, size = 0x4, offset = 0x4, fixed_abs, tag = 'smem constant byte address 0x4 - core index']
  #allocation1 [shape = 'u32[144,128]{1,0:T(1,128)}', space=vmem, size = 0x12000, scoped, tag = 'internal scratch']
  #allocation2 [shape = 'f32[64,32]{1,0:T(8,128)}', space=vmem, size = 0x8000, scoped, tag = 'scratch operand']
  #allocation3 [shape = 'f32[64,64]{1,0:T(8,128)}', space=vmem, size = 0x8000, scoped, tag = 'scratch operand']
  #allocation4 [shape = 'f32[64,64]{1,0:T(8,128)}', space=vmem, size = 0x8000, scoped, tag = 'scratch operand']
  #allocation5 [shape = 'f32[64,64]{1,0:T(8,128)}', space=vmem, size = 0x8000, scoped, tag = 'scratch operand']
  #allocation6 [shape = 'f32[64,64]{1,0:T(8,128)}', space=vmem, size = 0x8000, scoped, tag = 'scratch operand']
  #allocation7 [shape = 'f32[1,1]{1,0:T(1,128)S(1)}', space=vmem, size = 0x200, scoped, tag = 'scoped memory for tpu_custom_call.1']
  %s0 = inlined_call_operand.vmem [shape: f32[1,64,16], index: 0, kind: input, shape index: {}]
  %s1 = inlined_call_operand.vmem [shape: f32[1,64,1], index: 1, kind: input, shape index: {}]
  %s2 = inlined_call_operand.hbm [shape: f32[8,64], index: 2, kind: input, shape index: {}]
  %s3 = inlined_call_operand.vmem [shape: f32[64,8], index: 3, kind: input, shape index: {}]
  %s4 = inlined_call_operand.vmem [shape: f32[16,32], index: 4, kind: input, shape index: {}]
  %s5 = inlined_call_operand.vmem [shape: f32[32,64], index: 5, kind: input, shape index: {}]
  %s6 = inlined_call_operand.vmem [shape: f32[32,64], index: 6, kind: input, shape index: {}]
  %s7 = inlined_call_operand.vmem [shape: f32[32,64], index: 7, kind: input, shape index: {}]
  %s8 = inlined_call_operand.vmem [shape: f32[1,64], index: 8, kind: input, shape index: {}]
  %s9 = inlined_call_operand.vmem [shape: f32[1,64], index: 9, kind: input, shape index: {}]
  %s10 = inlined_call_operand.vmem [shape: f32[1,64], index: 10, kind: input, shape index: {}]
  %s11 = inlined_call_operand.vmem [shape: f32[64,64], index: 11, kind: input, shape index: {}]
  %s12 = inlined_call_operand.vmem [shape: f32[64,64], index: 12, kind: input, shape index: {}]
  %s13 = inlined_call_operand.vmem [shape: f32[64,64], index: 13, kind: input, shape index: {}]
  %s14 = inlined_call_operand.vmem [shape: f32[1,64], index: 14, kind: input, shape index: {}]
  %s15 = inlined_call_operand.vmem [shape: f32[1,64], index: 15, kind: input, shape index: {}]
  %s16 = inlined_call_operand.<no memory space> [shape: f32[1,1], index: 16, kind: input, shape index: {}]
  %s17 = inlined_call_operand.vmem [shape: f32[64,32], index: 17, kind: input, shape index: {}]
  %s18 = inlined_call_operand.vmem [shape: f32[1,32], index: 18, kind: input, shape index: {}]
  %s19 = inlined_call_operand.vmem [shape: f32[32,2], index: 19, kind: input, shape index: {}]
  %s20 = inlined_call_operand.vmem [shape: f32[1,2], index: 20, kind: input, shape index: {}]
  %s21 = inlined_call_operand.vmem [shape: f32[8,2], index: 21, kind: output, shape index: {0}]
  %s22 = inlined_call_operand.vmem [shape: f32[1,64,1], index: 22, kind: output, shape index: {1}]
  %s23 = inlined_call_operand.vmem [shape: f32[1,64,32], index: 23, kind: output, shape index: {2}]
  %24 = xla_tuple %s21, %s22, %s23
  %s25 = sld [smem:[#allocation0]]
  $region114: #{tpu_custom_call.1} parent=0
    _
  %s27 = ssub.s32 1, %s25
  %s28 = scalar_select 0, %s27, %s25
  %v29 = vstv %s16
  %30 = vst [vmem:[#allocation7] sm:$0x1] %v29
  $region1: #{tpu_custom_call.1} parent=0
    #allocation8 [shape = 'u8[4096]{0}', space=vmem, size = 0x1000, scoped, tag = 'input window, operand 2, single buffered']
    #allocation9 [shape = 's32[1]{0}', space=sflag, size = 0x4, scoped, tag = 'scoped memory for tpu_custom_call.1']
    %31 = vsyncpa [#allocation9], 0
    // Predicated region
    $region2: #{tpu_custom_call.1} parent=1 // pred_check
      _
    $region3: #{tpu_custom_call.1} parent=1 // pred_check_branch
      %33 = sbr.rel (0) target = $region5
    $region4: #{tpu_custom_call.1} parent=1 // pred_region
      _
    $region5: #{tpu_custom_call.1} parent=1 // pred_fallthru
      _
    // Predicated region
    $region6: #{tpu_custom_call.1} parent=1 // pred_check
      _
    $region7: #{tpu_custom_call.1} parent=1 // pred_check_branch
      %35 = sbr.rel (0) target = $region9
    $region8: #{tpu_custom_call.1} parent=1 // pred_region
      _
    $region9: #{tpu_custom_call.1} parent=1 // pred_fallthru
      _
    // Predicated region
    $region10: #{tpu_custom_call.1} parent=1 // pred_check
      _
    $region11: #{tpu_custom_call.1} parent=1 // pred_check_branch
      %37 = sbr.rel (0) target = $region13
    $region12: #{tpu_custom_call.1} parent=1 // pred_region
      %s39 = ssub.s32 128, 128
      %40 = vsyncadd [#allocation9], %s39
      %s42 = sshll.u32 [#allocation8], 4
      %s43 = int_to_ptr.vmem [resolvable:$true] %s42
      %45 = dma.hbm_to_vmem [thread:$0]  %s2, 128, %s43, [#allocation9]
    $region13: #{tpu_custom_call.1} parent=1 // pred_fallthru
      _
    // Predicated region
    $region14: #{tpu_custom_call.1} parent=1 // pred_check
      _
    $region15: #{tpu_custom_call.1} parent=1 // pred_check_branch
      %47 = sbr.rel (0) target = $region17
    $region16: #{tpu_custom_call.1} parent=1 // pred_region
      _
    $region17: #{tpu_custom_call.1} parent=1 // pred_fallthru
      _
    // Predicated region
    $region18: #{tpu_custom_call.1} parent=1 // pred_check
      _
    $region19: #{tpu_custom_call.1} parent=1 // pred_check_branch
      %49 = sbr.rel (0) target = $region21
    $region20: #{tpu_custom_call.1} parent=1 // pred_region
      _
    $region21: #{tpu_custom_call.1} parent=1 // pred_fallthru
      _
    // Predicated region
    $region22: #{tpu_custom_call.1} parent=1 // pred_check
      _
    $region23: #{tpu_custom_call.1} parent=1 // pred_check_branch
      %51 = sbr.rel (0) target = $region25
    $region24: #{tpu_custom_call.1} parent=1 // pred_region
      _
    $region25: #{tpu_custom_call.1} parent=1 // pred_fallthru
      _
    // Predicated region
    $region26: #{tpu_custom_call.1} parent=1 // pred_check
      _
    $region27: #{tpu_custom_call.1} parent=1 // pred_check_branch
      %53 = sbr.rel (0) target = $region29
    $region28: #{tpu_custom_call.1} parent=1 // pred_region
      _
    $region29: #{tpu_custom_call.1} parent=1 // pred_fallthru
      _
    // Predicated region
    $region30: #{tpu_custom_call.1} parent=1 // pred_check
      _
    $region31: #{tpu_custom_call.1} parent=1 // pred_check_branch
      %55 = sbr.rel (0) target = $region33
    $region32: #{tpu_custom_call.1} parent=1 // pred_region
      _
    $region33: #{tpu_custom_call.1} parent=1 // pred_fallthru
      _
    // Predicated region
    $region34: #{tpu_custom_call.1} parent=1 // pred_check
      _
    $region35: #{tpu_custom_call.1} parent=1 // pred_check_branch
      %57 = sbr.rel (0) target = $region37
    $region36: #{tpu_custom_call.1} parent=1 // pred_region
      _
    $region37: #{tpu_custom_call.1} parent=1 // pred_fallthru
      _
    // Predicated region
    $region38: #{tpu_custom_call.1} parent=1 // pred_check
      _
    $region39: #{tpu_custom_call.1} parent=1 // pred_check_branch
      %59 = sbr.rel (0) target = $region41
    $region40: #{tpu_custom_call.1} parent=1 // pred_region
      _
    $region41: #{tpu_custom_call.1} parent=1 // pred_fallthru
      _
    // Predicated region
    $region42: #{tpu_custom_call.1} parent=1 // pred_check
      _
    $region43: #{tpu_custom_call.1} parent=1 // pred_check_branch
      %61 = sbr.rel (0) target = $region45
    $region44: #{tpu_custom_call.1} parent=1 // pred_region
      _
    $region45: #{tpu_custom_call.1} parent=1 // pred_fallthru
      _
    // Predicated region
    $region46: #{tpu_custom_call.1} parent=1 // pred_check
      _
    $region47: #{tpu_custom_call.1} parent=1 // pred_check_branch
      %63 = sbr.rel (0) target = $region49
    $region48: #{tpu_custom_call.1} parent=1 // pred_region
      _
    $region49: #{tpu_custom_call.1} parent=1 // pred_fallthru
      _
    // Predicated region
    $region50: #{tpu_custom_call.1} parent=1 // pred_check
      _
    $region51: #{tpu_custom_call.1} parent=1 // pred_check_branch
      %65 = sbr.rel (0) target = $region53
    $region52: #{tpu_custom_call.1} parent=1 // pred_region
      _
    $region53: #{tpu_custom_call.1} parent=1 // pred_fallthru
      _
    // Predicated region
    $region54: #{tpu_custom_call.1} parent=1 // pred_check
      _
    $region55: #{tpu_custom_call.1} parent=1 // pred_check_branch
      %67 = sbr.rel (0) target = $region57
    $region56: #{tpu_custom_call.1} parent=1 // pred_region
      _
    $region57: #{tpu_custom_call.1} parent=1 // pred_fallthru
      _
    // Predicated region
    $region58: #{tpu_custom_call.1} parent=1 // pred_check
      _
    $region59: #{tpu_custom_call.1} parent=1 // pred_check_branch
      %69 = sbr.rel (0) target = $region61
    $region60: #{tpu_custom_call.1} parent=1 // pred_region
      _
    $region61: #{tpu_custom_call.1} parent=1 // pred_fallthru
      _
    // Predicated region
    $region62: #{tpu_custom_call.1} parent=1 // pred_check
      _
    $region63: #{tpu_custom_call.1} parent=1 // pred_check_branch
      %71 = sbr.rel (0) target = $region65
    $region64: #{tpu_custom_call.1} parent=1 // pred_region
      _
    $region65: #{tpu_custom_call.1} parent=1 // pred_fallthru
      _
    // Predicated region
    $region66: #{tpu_custom_call.1} parent=1 // pred_check
      _
    $region67: #{tpu_custom_call.1} parent=1 // pred_check_branch
      %73 = sbr.rel (0) target = $region69
    $region68: #{tpu_custom_call.1} parent=1 // pred_region
      _
    $region69: #{tpu_custom_call.1} parent=1 // pred_fallthru
      _
    // Predicated region
    $region70: #{tpu_custom_call.1} parent=1 // pred_check
      _
    $region71: #{tpu_custom_call.1} parent=1 // pred_check_branch
      %75 = sbr.rel (0) target = $region73
    $region72: #{tpu_custom_call.1} parent=1 // pred_region
      _
    $region73: #{tpu_custom_call.1} parent=1 // pred_fallthru
      _
    // Predicated region
    $region74: #{tpu_custom_call.1} parent=1 // pred_check
      _
    $region75: #{tpu_custom_call.1} parent=1 // pred_check_branch
      %77 = sbr.rel (0) target = $region77
    $region76: #{tpu_custom_call.1} parent=1 // pred_region
      _
    $region77: #{tpu_custom_call.1} parent=1 // pred_fallthru
      _
    // Predicated region
    $region78: #{tpu_custom_call.1} parent=1 // pred_check
      _
    $region79: #{tpu_custom_call.1} parent=1 // pred_check_branch
      %79 = sbr.rel (0) target = $region81
    $region80: #{tpu_custom_call.1} parent=1 // pred_region
      _
    $region81: #{tpu_custom_call.1} parent=1 // pred_fallthru
      _
    // Predicated region
    $region82: #{tpu_custom_call.1} parent=1 // pred_check
      _
    $region83: #{tpu_custom_call.1} parent=1 // pred_check_branch
      %81 = sbr.rel (0) target = $region85
    $region84: #{tpu_custom_call.1} parent=1 // pred_region
      _
    $region85: #{tpu_custom_call.1} parent=1 // pred_fallthru
      _
    // Predicated region
    $region86: #{tpu_custom_call.1} parent=1 // pred_check
      _
    $region87: #{tpu_custom_call.1} parent=1 // pred_check_branch
      %83 = sbr.rel (0) target = $region89
    $region88: #{tpu_custom_call.1} parent=1 // pred_region
      %84 = dma.done [#allocation9], 128
    $region89: #{tpu_custom_call.1} parent=1 // pred_fallthru
      _
    %v85 = vld [vmem:[%s0] sm:$0xff]
    %v86 = vld [vmem:[%s0 + $0x8] sm:$0xff]
    %v87 = vld [vmem:[%s0 + $0x10] sm:$0xff]
    %v88 = vld [vmem:[%s0 + $0x18] sm:$0xff]
    %v89 = vld [vmem:[%s0 + $0x20] sm:$0xff]
    %v90 = vld [vmem:[%s0 + $0x28] sm:$0xff]
    %v91 = vld [vmem:[%s0 + $0x30] sm:$0xff]
    %v92 = vld [vmem:[%s0 + $0x38] sm:$0xff]
    %v93 = vld [vmem:[%s4] sm:$0xff]
    %v94 = vld [vmem:[%s4 + $0x8] sm:$0xff]
    %vm95 = vcmask 130048
    %v97 = vsel %vm95, %v85, 0
    %v100 = vsel %vm95, %v86, 0
    %v103 = vsel %vm95, %v87, 0
    %v106 = vsel %vm95, %v88, 0
    %v109 = vsel %vm95, %v89, 0
    %v112 = vsel %vm95, %v90, 0
    %v115 = vsel %vm95, %v91, 0
    %v118 = vsel %vm95, %v92, 0
    %120 = vmatprep.subr.mxu0 0.0
    %121 = vmatpush1.msra.mxu0 %v93
    %122 = vmatprep.subr.mxu0 0.0
    %123 = vmatpush1.msra.mxu0 %v94
    %124 = vmatprep.subr.mxu0 0.0
    %125 = vmatpush1.msra.mxu0 0.0
    %126 = vmatprep.subr.mxu0 0.0
    %127 = vmatpush1.msra.mxu0 0.0
    %128 = vmatprep.subr.mxu0 0.0
    %129 = vmatpush1.msra.mxu0 0.0
    %130 = vmatprep.subr.mxu0 0.0
    %131 = vmatpush1.msra.mxu0 0.0
    %132 = vmatprep.subr.mxu0 0.0
    %133 = vmatpush1.msra.mxu0 0.0
    %134 = vmatprep.subr.mxu0 0.0
    %135 = vmatpush1.msra.mxu0 0.0
    %136 = vmatprep.subr.mxu0 0.0
    %137 = vmatpush1.msra.mxu0 0.0
    %138 = vmatprep.subr.mxu0 0.0
    %139 = vmatpush1.msra.mxu0 0.0
    %140 = vmatprep.subr.mxu0 0.0
    %141 = vmatpush1.msra.mxu0 0.0
    %142 = vmatprep.subr.mxu0 0.0
    %143 = vmatpush1.msra.mxu0 0.0
    %144 = vmatprep.subr.mxu0 0.0
    %145 = vmatpush1.msra.mxu0 0.0
    %146 = vmatprep.subr.mxu0 0.0
    %147 = vmatpush1.msra.mxu0 0.0
    %148 = vmatprep.subr.mxu0 0.0
    %149 = vmatpush1.msra.mxu0 0.0
    %150 = vmatprep.subr.mxu0 0.0
    %151 = vmatpush1.msra.mxu0 0.0
    %152 = vmatprep.subr.mxu0 0.0
    %153 = vmatpush1.msra.mxu0 0.0
    %154 = vmatprep.subr.mxu0 0.0
    %155 = vmatpush1.msra.mxu0 0.0
    %156 = vmatprep.subr.mxu0 0.0
    %157 = vmatpush1.msra.mxu0 0.0
    %158 = vmatprep.subr.mxu0 0.0
    %159 = vmatpush1.msra.mxu0 0.0
    %160 = vmatprep.subr.mxu0 0.0
    %161 = vmatpush1.msra.mxu0 0.0
    %162 = vmatprep.subr.mxu0 0.0
    %163 = vmatpush1.msra.mxu0 0.0
    %164 = vmatprep.subr.mxu0 0.0
    %165 = vmatpush1.msra.mxu0 0.0
    %166 = vmatprep.subr.mxu0 0.0
    %167 = vmatpush1.msra.mxu0 0.0
    %168 = vmatprep.subr.mxu0 0.0
    %169 = vmatpush1.msra.mxu0 0.0
    %170 = vmatprep.subr.mxu0 0.0
    %171 = vmatpush1.msra.mxu0 0.0
    %172 = vmatprep.subr.mxu0 0.0
    %173 = vmatpush1.msra.mxu0 0.0
    %174 = vmatprep.subr.mxu0 0.0
    %175 = vmatpush1.msra.mxu0 0.0
    %176 = vmatprep.subr.mxu0 0.0
    %177 = vmatpush1.msra.mxu0 0.0
    %178 = vmatprep.subr.mxu0 0.0
    %179 = vmatpush1.msra.mxu0 0.0
    %180 = vmatprep.subr.mxu0 0.0
    %181 = vmatpush1.msra.mxu0 0.0
    %182 = vmatprep.subr.mxu0 0.0
    %183 = vmatpush1.msra.mxu0 0.0
    %184 = vmatprep.mubr.f32.mxu0 0.0
    %185 = vmatmul.mubr.f32.gmra.mrb[0].mxu0 %v97
    %v186 = vpop.f32.mrb[0].mxu0
    %v187 = vadd.f32 0.0, %v186
    %v188 = vpop.f32.mrb[0].mxu0
    %189 = vmatprep.mubr.f32.mxu0 0.0
    %190 = vmatmul.mubr.f32.gmra.mrb[0].mxu0 %v100
    %v191 = vpop.f32.mrb[0].mxu0
    %v192 = vadd.f32 0.0, %v191
    %v193 = vpop.f32.mrb[0].mxu0
    %194 = vmatprep.mubr.f32.mxu0 0.0
    %195 = vmatmul.mubr.f32.gmra.mrb[0].mxu0 %v103
    %v196 = vpop.f32.mrb[0].mxu0
    %v197 = vadd.f32 0.0, %v196
    %v198 = vpop.f32.mrb[0].mxu0
    %199 = vmatprep.mubr.f32.mxu0 0.0
    %200 = vmatmul.mubr.f32.gmra.mrb[0].mxu0 %v106
    %v201 = vpop.f32.mrb[0].mxu0
    %v202 = vadd.f32 0.0, %v201
    %v203 = vpop.f32.mrb[0].mxu0
    %204 = vmatprep.mubr.f32.mxu0 0.0
    %205 = vmatmul.mubr.f32.gmra.mrb[0].mxu0 %v109
    %v206 = vpop.f32.mrb[0].mxu0
    %v207 = vadd.f32 0.0, %v206
    %v208 = vpop.f32.mrb[0].mxu0
    %209 = vmatprep.mubr.f32.mxu0 0.0
    %210 = vmatmul.mubr.f32.gmra.mrb[0].mxu0 %v112
    %v211 = vpop.f32.mrb[0].mxu0
    %v212 = vadd.f32 0.0, %v211
    %v213 = vpop.f32.mrb[0].mxu0
    %214 = vmatprep.mubr.f32.mxu0 0.0
    %215 = vmatmul.mubr.f32.gmra.mrb[0].mxu0 %v115
    %v216 = vpop.f32.mrb[0].mxu0
    %v217 = vadd.f32 0.0, %v216
    %v218 = vpop.f32.mrb[0].mxu0
    %219 = vmatprep.mubr.f32.mxu0 0.0
    %220 = vmatmul.mubr.f32.gmra.mrb[0].mxu0 %v118
    %v221 = vpop.f32.mrb[0].mxu0
    %v222 = vadd.f32 0.0, %v221
    %v223 = vpop.f32.mrb[0].mxu0
    %224 = vdwg.mxu0
    %vm225 = vcmask 261120
    %226 = vst.msk [vmem:[#allocation2] sm:$0xff] %vm225, %v187
    %227 = vst.msk [vmem:[#allocation2 + $0x8] sm:$0xff] %vm225, %v192
    %228 = vst.msk [vmem:[#allocation2 + $0x10] sm:$0xff] %vm225, %v197
    %229 = vst.msk [vmem:[#allocation2 + $0x18] sm:$0xff] %vm225, %v202
    %230 = vst.msk [vmem:[#allocation2 + $0x20] sm:$0xff] %vm225, %v207
    %231 = vst.msk [vmem:[#allocation2 + $0x28] sm:$0xff] %vm225, %v212
    %232 = vst.msk [vmem:[#allocation2 + $0x30] sm:$0xff] %vm225, %v217
    %233 = vst.msk [vmem:[#allocation2 + $0x38] sm:$0xff] %vm225, %v222
    %v234 = vld [vmem:[%s5] sm:$0xff]
    %v235 = vld [vmem:[%s5 + $0x8] sm:$0xff]
    %v236 = vld [vmem:[%s5 + $0x10] sm:$0xff]
    %v237 = vld [vmem:[%s5 + $0x18] sm:$0xff]
    %v238 = vld [vmem:[%s8] sm:$0x1]
    %v240 = vlaneseq
    %v241 = vshrl.u32 %v240, 7
    %v242 = vsub.s32 0, %v241
    %v243 = vrot.slane %v238, %v242
    %v246 = vsel %vm225, %v187, 0
    %v249 = vsel %vm225, %v192, 0
    %v252 = vsel %vm225, %v197, 0
    %v255 = vsel %vm225, %v202, 0
    %v258 = vsel %vm225, %v207, 0
    %v261 = vsel %vm225, %v212, 0
    %v264 = vsel %vm225, %v217, 0
    %v267 = vsel %vm225, %v222, 0
    %269 = vmatprep.subr.mxu0 0.0
    %270 = vmatpush1.msra.mxu0 %v234
    %271 = vmatprep.subr.mxu0 0.0
    %272 = vmatpush1.msra.mxu0 %v235
    %273 = vmatprep.subr.mxu0 0.0
    %274 = vmatpush1.msra.mxu0 %v236
    %275 = vmatprep.subr.mxu0 0.0
    %276 = vmatpush1.msra.mxu0 %v237
    %277 = vmatprep.subr.mxu0 0.0
    %278 = vmatpush1.msra.mxu0 0.0
    %279 = vmatprep.subr.mxu0 0.0
    %280 = vmatpush1.msra.mxu0 0.0
    %281 = vmatprep.subr.mxu0 0.0
    %282 = vmatpush1.msra.mxu0 0.0
    %283 = vmatprep.subr.mxu0 0.0
    %284 = vmatpush1.msra.mxu0 0.0
    %285 = vmatprep.subr.mxu0 0.0
    %286 = vmatpush1.msra.mxu0 0.0
    %287 = vmatprep.subr.mxu0 0.0
    %288 = vmatpush1.msra.mxu0 0.0
    %289 = vmatprep.subr.mxu0 0.0
    %290 = vmatpush1.msra.mxu0 0.0
    %291 = vmatprep.subr.mxu0 0.0
    %292 = vmatpush1.msra.mxu0 0.0
    %293 = vmatprep.subr.mxu0 0.0
    %294 = vmatpush1.msra.mxu0 0.0
    %295 = vmatprep.subr.mxu0 0.0
    %296 = vmatpush1.msra.mxu0 0.0
    %297 = vmatprep.subr.mxu0 0.0
    %298 = vmatpush1.msra.mxu0 0.0
    %299 = vmatprep.subr.mxu0 0.0
    %300 = vmatpush1.msra.mxu0 0.0
    %301 = vmatprep.subr.mxu0 0.0
    %302 = vmatpush1.msra.mxu0 0.0
    %303 = vmatprep.subr.mxu0 0.0
    %304 = vmatpush1.msra.mxu0 0.0
    %305 = vmatprep.subr.mxu0 0.0
    %306 = vmatpush1.msra.mxu0 0.0
    %307 = vmatprep.subr.mxu0 0.0
    %308 = vmatpush1.msra.mxu0 0.0
    %309 = vmatprep.subr.mxu0 0.0
    %310 = vmatpush1.msra.mxu0 0.0
    %311 = vmatprep.subr.mxu0 0.0
    %312 = vmatpush1.msra.mxu0 0.0
    %313 = vmatprep.subr.mxu0 0.0
    %314 = vmatpush1.msra.mxu0 0.0
    %315 = vmatprep.subr.mxu0 0.0
    %316 = vmatpush1.msra.mxu0 0.0
    %317 = vmatprep.subr.mxu0 0.0
    %318 = vmatpush1.msra.mxu0 0.0
    %319 = vmatprep.subr.mxu0 0.0
    %320 = vmatpush1.msra.mxu0 0.0
    %321 = vmatprep.subr.mxu0 0.0
    %322 = vmatpush1.msra.mxu0 0.0
    %323 = vmatprep.subr.mxu0 0.0
    %324 = vmatpush1.msra.mxu0 0.0
    %325 = vmatprep.subr.mxu0 0.0
    %326 = vmatpush1.msra.mxu0 0.0
    %327 = vmatprep.subr.mxu0 0.0
    %328 = vmatpush1.msra.mxu0 0.0
    %329 = vmatprep.subr.mxu0 0.0
    %330 = vmatpush1.msra.mxu0 0.0
    %331 = vmatprep.subr.mxu0 0.0
    %332 = vmatpush1.msra.mxu0 0.0
    %333 = vmatprep.mubr.f32.mxu0 0.0
    %334 = vmatmul.mubr.f32.gmra.mrb[0].mxu0 %v246
    %v335 = vpop.f32.mrb[0].mxu0
    %v336 = vadd.f32 %v243, %v335
    %v337 = vpop.f32.mrb[0].mxu0
    %338 = vmatprep.mubr.f32.mxu0 0.0
    %339 = vmatmul.mubr.f32.gmra.mrb[0].mxu0 %v249
    %v340 = vpop.f32.mrb[0].mxu0
    %v341 = vadd.f32 %v243, %v340
    %v342 = vpop.f32.mrb[0].mxu0
    %343 = vmatprep.mubr.f32.mxu0 0.0
    %344 = vmatmul.mubr.f32.gmra.mrb[0].mxu0 %v252
    %v345 = vpop.f32.mrb[0].mxu0
    %v346 = vadd.f32 %v243, %v345
    %v347 = vpop.f32.mrb[0].mxu0
    %348 = vmatprep.mubr.f32.mxu0 0.0
    %349 = vmatmul.mubr.f32.gmra.mrb[0].mxu0 %v255
    %v350 = vpop.f32.mrb[0].mxu0
    %v351 = vadd.f32 %v243, %v350
    %v352 = vpop.f32.mrb[0].mxu0
    %353 = vmatprep.mubr.f32.mxu0 0.0
    %354 = vmatmul.mubr.f32.gmra.mrb[0].mxu0 %v258
    %v355 = vpop.f32.mrb[0].mxu0
    %v356 = vadd.f32 %v243, %v355
    %v357 = vpop.f32.mrb[0].mxu0
    %358 = vmatprep.mubr.f32.mxu0 0.0
    %359 = vmatmul.mubr.f32.gmra.mrb[0].mxu0 %v261
    %v360 = vpop.f32.mrb[0].mxu0
    %v361 = vadd.f32 %v243, %v360
    %v362 = vpop.f32.mrb[0].mxu0
    %363 = vmatprep.mubr.f32.mxu0 0.0
    %364 = vmatmul.mubr.f32.gmra.mrb[0].mxu0 %v264
    %v365 = vpop.f32.mrb[0].mxu0
    %v366 = vadd.f32 %v243, %v365
    %v367 = vpop.f32.mrb[0].mxu0
    %368 = vmatprep.mubr.f32.mxu0 0.0
    %369 = vmatmul.mubr.f32.gmra.mrb[0].mxu0 %v267
    %v370 = vpop.f32.mrb[0].mxu0
    %v371 = vadd.f32 %v243, %v370
    %v372 = vpop.f32.mrb[0].mxu0
    %373 = vdwg.mxu0
    %vm374 = vcmask 523264
    %375 = vst.msk [vmem:[#allocation3] sm:$0xff] %vm374, %v336
    %376 = vst.msk [vmem:[#allocation3 + $0x8] sm:$0xff] %vm374, %v341
    %377 = vst.msk [vmem:[#allocation3 + $0x10] sm:$0xff] %vm374, %v346
    %378 = vst.msk [vmem:[#allocation3 + $0x18] sm:$0xff] %vm374, %v351
    %379 = vst.msk [vmem:[#allocation3 + $0x20] sm:$0xff] %vm374, %v356
    %380 = vst.msk [vmem:[#allocation3 + $0x28] sm:$0xff] %vm374, %v361
    %381 = vst.msk [vmem:[#allocation3 + $0x30] sm:$0xff] %vm374, %v366
    %382 = vst.msk [vmem:[#allocation3 + $0x38] sm:$0xff] %vm374, %v371
    %v383 = vld [vmem:[%s6] sm:$0xff]
    %v384 = vld [vmem:[%s6 + $0x8] sm:$0xff]
    %v385 = vld [vmem:[%s6 + $0x10] sm:$0xff]
    %v386 = vld [vmem:[%s6 + $0x18] sm:$0xff]
    %v387 = vld [vmem:[%s9] sm:$0x1]
    %v389 = vlaneseq
    %v390 = vshrl.u32 %v389, 7
    %v391 = vsub.s32 0, %v390
    %v392 = vrot.slane %v387, %v391
    %394 = vmatprep.subr.mxu0 0.0
    %395 = vmatpush1.msra.mxu0 %v383
    %396 = vmatprep.subr.mxu0 0.0
    %397 = vmatpush1.msra.mxu0 %v384
    %398 = vmatprep.subr.mxu0 0.0
    %399 = vmatpush1.msra.mxu0 %v385
    %400 = vmatprep.subr.mxu0 0.0
    %401 = vmatpush1.msra.mxu0 %v386
    %402 = vmatprep.subr.mxu0 0.0
    %403 = vmatpush1.msra.mxu0 0.0
    %404 = vmatprep.subr.mxu0 0.0
    %405 = vmatpush1.msra.mxu0 0.0
    %406 = vmatprep.subr.mxu0 0.0
    %407 = vmatpush1.msra.mxu0 0.0
    %408 = vmatprep.subr.mxu0 0.0
    %409 = vmatpush1.msra.mxu0 0.0
    %410 = vmatprep.subr.mxu0 0.0
    %411 = vmatpush1.msra.mxu0 0.0
    %412 = vmatprep.subr.mxu0 0.0
    %413 = vmatpush1.msra.mxu0 0.0
    %414 = vmatprep.subr.mxu0 0.0
    %415 = vmatpush1.msra.mxu0 0.0
    %416 = vmatprep.subr.mxu0 0.0
    %417 = vmatpush1.msra.mxu0 0.0
    %418 = vmatprep.subr.mxu0 0.0
    %419 = vmatpush1.msra.mxu0 0.0
    %420 = vmatprep.subr.mxu0 0.0
    %421 = vmatpush1.msra.mxu0 0.0
    %422 = vmatprep.subr.mxu0 0.0
    %423 = vmatpush1.msra.mxu0 0.0
    %424 = vmatprep.subr.mxu0 0.0
    %425 = vmatpush1.msra.mxu0 0.0
    %426 = vmatprep.subr.mxu0 0.0
    %427 = vmatpush1.msra.mxu0 0.0
    %428 = vmatprep.subr.mxu0 0.0
    %429 = vmatpush1.msra.mxu0 0.0
    %430 = vmatprep.subr.mxu0 0.0
    %431 = vmatpush1.msra.mxu0 0.0
    %432 = vmatprep.subr.mxu0 0.0
    %433 = vmatpush1.msra.mxu0 0.0
    %434 = vmatprep.subr.mxu0 0.0
    %435 = vmatpush1.msra.mxu0 0.0
    %436 = vmatprep.subr.mxu0 0.0
    %437 = vmatpush1.msra.mxu0 0.0
    %438 = vmatprep.subr.mxu0 0.0
    %439 = vmatpush1.msra.mxu0 0.0
    %440 = vmatprep.subr.mxu0 0.0
    %441 = vmatpush1.msra.mxu0 0.0
    %442 = vmatprep.subr.mxu0 0.0
    %443 = vmatpush1.msra.mxu0 0.0
    %444 = vmatprep.subr.mxu0 0.0
    %445 = vmatpush1.msra.mxu0 0.0
    %446 = vmatprep.subr.mxu0 0.0
    %447 = vmatpush1.msra.mxu0 0.0
    %448 = vmatprep.subr.mxu0 0.0
    %449 = vmatpush1.msra.mxu0 0.0
    %450 = vmatprep.subr.mxu0 0.0
    %451 = vmatpush1.msra.mxu0 0.0
    %452 = vmatprep.subr.mxu0 0.0
    %453 = vmatpush1.msra.mxu0 0.0
    %454 = vmatprep.subr.mxu0 0.0
    %455 = vmatpush1.msra.mxu0 0.0
    %456 = vmatprep.subr.mxu0 0.0
    %457 = vmatpush1.msra.mxu0 0.0
    %458 = vmatprep.mubr.f32.mxu0 0.0
    %459 = vmatmul.mubr.f32.gmra.mrb[0].mxu0 %v246
    %v460 = vpop.f32.mrb[0].mxu0
    %v461 = vadd.f32 %v392, %v460
    %v462 = vpop.f32.mrb[0].mxu0
    %463 = vmatprep.mubr.f32.mxu0 0.0
    %464 = vmatmul.mubr.f32.gmra.mrb[0].mxu0 %v249
    %v465 = vpop.f32.mrb[0].mxu0
    %v466 = vadd.f32 %v392, %v465
    %v467 = vpop.f32.mrb[0].mxu0
    %468 = vmatprep.mubr.f32.mxu0 0.0
    %469 = vmatmul.mubr.f32.gmra.mrb[0].mxu0 %v252
    %v470 = vpop.f32.mrb[0].mxu0
    %v471 = vadd.f32 %v392, %v470
    %v472 = vpop.f32.mrb[0].mxu0
    %473 = vmatprep.mubr.f32.mxu0 0.0
    %474 = vmatmul.mubr.f32.gmra.mrb[0].mxu0 %v255
    %v475 = vpop.f32.mrb[0].mxu0
    %v476 = vadd.f32 %v392, %v475
    %v477 = vpop.f32.mrb[0].mxu0
    %478 = vmatprep.mubr.f32.mxu0 0.0
    %479 = vmatmul.mubr.f32.gmra.mrb[0].mxu0 %v258
    %v480 = vpop.f32.mrb[0].mxu0
    %v481 = vadd.f32 %v392, %v480
    %v482 = vpop.f32.mrb[0].mxu0
    %483 = vmatprep.mubr.f32.mxu0 0.0
    %484 = vmatmul.mubr.f32.gmra.mrb[0].mxu0 %v261
    %v485 = vpop.f32.mrb[0].mxu0
    %v486 = vadd.f32 %v392, %v485
    %v487 = vpop.f32.mrb[0].mxu0
    %488 = vmatprep.mubr.f32.mxu0 0.0
    %489 = vmatmul.mubr.f32.gmra.mrb[0].mxu0 %v264
    %v490 = vpop.f32.mrb[0].mxu0
    %v491 = vadd.f32 %v392, %v490
    %v492 = vpop.f32.mrb[0].mxu0
    %493 = vmatprep.mubr.f32.mxu0 0.0
    %494 = vmatmul.mubr.f32.gmra.mrb[0].mxu0 %v267
    %v495 = vpop.f32.mrb[0].mxu0
    %v496 = vadd.f32 %v392, %v495
    %v497 = vpop.f32.mrb[0].mxu0
    %498 = vdwg.mxu0
    %499 = vst.msk [vmem:[#allocation4] sm:$0xff] %vm374, %v461
    %500 = vst.msk [vmem:[#allocation4 + $0x8] sm:$0xff] %vm374, %v466
    %501 = vst.msk [vmem:[#allocation4 + $0x10] sm:$0xff] %vm374, %v471
    %502 = vst.msk [vmem:[#allocation4 + $0x18] sm:$0xff] %vm374, %v476
    %503 = vst.msk [vmem:[#allocation4 + $0x20] sm:$0xff] %vm374, %v481
    %504 = vst.msk [vmem:[#allocation4 + $0x28] sm:$0xff] %vm374, %v486
    %505 = vst.msk [vmem:[#allocation4 + $0x30] sm:$0xff] %vm374, %v491
    %506 = vst.msk [vmem:[#allocation4 + $0x38] sm:$0xff] %vm374, %v496
    %v507 = vld [vmem:[%s7] sm:$0xff]
    %v508 = vld [vmem:[%s7 + $0x8] sm:$0xff]
    %v509 = vld [vmem:[%s7 + $0x10] sm:$0xff]
    %v510 = vld [vmem:[%s7 + $0x18] sm:$0xff]
    %v511 = vld [vmem:[%s10] sm:$0x1]
    %v513 = vlaneseq
    %v514 = vshrl.u32 %v513, 7
    %v515 = vsub.s32 0, %v514
    %v516 = vrot.slane %v511, %v515
    %518 = vmatprep.subr.mxu0 0.0
    %519 = vmatpush1.msra.mxu0 %v507
    %520 = vmatprep.subr.mxu0 0.0
    %521 = vmatpush1.msra.mxu0 %v508
    %522 = vmatprep.subr.mxu0 0.0
    %523 = vmatpush1.msra.mxu0 %v509
    %524 = vmatprep.subr.mxu0 0.0
    %525 = vmatpush1.msra.mxu0 %v510
    %526 = vmatprep.subr.mxu0 0.0
    %527 = vmatpush1.msra.mxu0 0.0
    %528 = vmatprep.subr.mxu0 0.0
    %529 = vmatpush1.msra.mxu0 0.0
    %530 = vmatprep.subr.mxu0 0.0
    %531 = vmatpush1.msra.mxu0 0.0
    %532 = vmatprep.subr.mxu0 0.0
    %533 = vmatpush1.msra.mxu0 0.0
    %534 = vmatprep.subr.mxu0 0.0
    %535 = vmatpush1.msra.mxu0 0.0
    %536 = vmatprep.subr.mxu0 0.0
    %537 = vmatpush1.msra.mxu0 0.0
    %538 = vmatprep.subr.mxu0 0.0
    %539 = vmatpush1.msra.mxu0 0.0
    %540 = vmatprep.subr.mxu0 0.0
    %541 = vmatpush1.msra.mxu0 0.0
    %542 = vmatprep.subr.mxu0 0.0
    %543 = vmatpush1.msra.mxu0 0.0
    %544 = vmatprep.subr.mxu0 0.0
    %545 = vmatpush1.msra.mxu0 0.0
    %546 = vmatprep.subr.mxu0 0.0
    %547 = vmatpush1.msra.mxu0 0.0
    %548 = vmatprep.subr.mxu0 0.0
    %549 = vmatpush1.msra.mxu0 0.0
    %550 = vmatprep.subr.mxu0 0.0
    %551 = vmatpush1.msra.mxu0 0.0
    %552 = vmatprep.subr.mxu0 0.0
    %553 = vmatpush1.msra.mxu0 0.0
    %554 = vmatprep.subr.mxu0 0.0
    %555 = vmatpush1.msra.mxu0 0.0
    %556 = vmatprep.subr.mxu0 0.0
    %557 = vmatpush1.msra.mxu0 0.0
    %558 = vmatprep.subr.mxu0 0.0
    %559 = vmatpush1.msra.mxu0 0.0
    %560 = vmatprep.subr.mxu0 0.0
    %561 = vmatpush1.msra.mxu0 0.0
    %562 = vmatprep.subr.mxu0 0.0
    %563 = vmatpush1.msra.mxu0 0.0
    %564 = vmatprep.subr.mxu0 0.0
    %565 = vmatpush1.msra.mxu0 0.0
    %566 = vmatprep.subr.mxu0 0.0
    %567 = vmatpush1.msra.mxu0 0.0
    %568 = vmatprep.subr.mxu0 0.0
    %569 = vmatpush1.msra.mxu0 0.0
    %570 = vmatprep.subr.mxu0 0.0
    %571 = vmatpush1.msra.mxu0 0.0
    %572 = vmatprep.subr.mxu0 0.0
    %573 = vmatpush1.msra.mxu0 0.0
    %574 = vmatprep.subr.mxu0 0.0
    %575 = vmatpush1.msra.mxu0 0.0
    %576 = vmatprep.subr.mxu0 0.0
    %577 = vmatpush1.msra.mxu0 0.0
    %578 = vmatprep.subr.mxu0 0.0
    %579 = vmatpush1.msra.mxu0 0.0
    %580 = vmatprep.subr.mxu0 0.0
    %581 = vmatpush1.msra.mxu0 0.0
    %582 = vmatprep.mubr.f32.mxu0 0.0
    %583 = vmatmul.mubr.f32.gmra.mrb[0].mxu0 %v246
    %v584 = vpop.f32.mrb[0].mxu0
    %v585 = vadd.f32 %v516, %v584
    %v586 = vpop.f32.mrb[0].mxu0
    %587 = vmatprep.mubr.f32.mxu0 0.0
    %588 = vmatmul.mubr.f32.gmra.mrb[0].mxu0 %v249
    %v589 = vpop.f32.mrb[0].mxu0
    %v590 = vadd.f32 %v516, %v589
    %v591 = vpop.f32.mrb[0].mxu0
    %592 = vmatprep.mubr.f32.mxu0 0.0
    %593 = vmatmul.mubr.f32.gmra.mrb[0].mxu0 %v252
    %v594 = vpop.f32.mrb[0].mxu0
    %v595 = vadd.f32 %v516, %v594
    %v596 = vpop.f32.mrb[0].mxu0
    %597 = vmatprep.mubr.f32.mxu0 0.0
    %598 = vmatmul.mubr.f32.gmra.mrb[0].mxu0 %v255
    %v599 = vpop.f32.mrb[0].mxu0
    %v600 = vadd.f32 %v516, %v599
    %v601 = vpop.f32.mrb[0].mxu0
    %602 = vmatprep.mubr.f32.mxu0 0.0
    %603 = vmatmul.mubr.f32.gmra.mrb[0].mxu0 %v258
    %v604 = vpop.f32.mrb[0].mxu0
    %v605 = vadd.f32 %v516, %v604
    %v606 = vpop.f32.mrb[0].mxu0
    %607 = vmatprep.mubr.f32.mxu0 0.0
    %608 = vmatmul.mubr.f32.gmra.mrb[0].mxu0 %v261
    %v609 = vpop.f32.mrb[0].mxu0
    %v610 = vadd.f32 %v516, %v609
    %v611 = vpop.f32.mrb[0].mxu0
    %612 = vmatprep.mubr.f32.mxu0 0.0
    %613 = vmatmul.mubr.f32.gmra.mrb[0].mxu0 %v264
    %v614 = vpop.f32.mrb[0].mxu0
    %v615 = vadd.f32 %v516, %v614
    %v616 = vpop.f32.mrb[0].mxu0
    %617 = vmatprep.mubr.f32.mxu0 0.0
    %618 = vmatmul.mubr.f32.gmra.mrb[0].mxu0 %v267
    %v619 = vpop.f32.mrb[0].mxu0
    %v620 = vadd.f32 %v516, %v619
    %v621 = vpop.f32.mrb[0].mxu0
    %622 = vdwg.mxu0
    %623 = vst.msk [vmem:[#allocation5] sm:$0xff] %vm374, %v585
    %624 = vst.msk [vmem:[#allocation5 + $0x8] sm:$0xff] %vm374, %v590
    %625 = vst.msk [vmem:[#allocation5 + $0x10] sm:$0xff] %vm374, %v595
    %626 = vst.msk [vmem:[#allocation5 + $0x18] sm:$0xff] %vm374, %v600
    %627 = vst.msk [vmem:[#allocation5 + $0x20] sm:$0xff] %vm374, %v605
    %628 = vst.msk [vmem:[#allocation5 + $0x28] sm:$0xff] %vm374, %v610
    %629 = vst.msk [vmem:[#allocation5 + $0x30] sm:$0xff] %vm374, %v615
    %630 = vst.msk [vmem:[#allocation5 + $0x38] sm:$0xff] %vm374, %v620
    %v631 = vld [vmem:[%s11] sm:$0xff]
    %v632 = vld [vmem:[%s11 + $0x8] sm:$0xff]
    %v633 = vld [vmem:[%s11 + $0x10] sm:$0xff]
    %v634 = vld [vmem:[%s11 + $0x18] sm:$0xff]
    %v635 = vld [vmem:[%s11 + $0x20] sm:$0xff]
    %v636 = vld [vmem:[%s11 + $0x28] sm:$0xff]
    %v637 = vld [vmem:[%s11 + $0x30] sm:$0xff]
    %v638 = vld [vmem:[%s11 + $0x38] sm:$0xff]
    %v639 = vld [vmem:[%s12] sm:$0xff]
    %v640 = vld [vmem:[%s12 + $0x8] sm:$0xff]
    %v641 = vld [vmem:[%s12 + $0x10] sm:$0xff]
    %v642 = vld [vmem:[%s12 + $0x18] sm:$0xff]
    %v643 = vld [vmem:[%s12 + $0x20] sm:$0xff]
    %v644 = vld [vmem:[%s12 + $0x28] sm:$0xff]
    %v645 = vld [vmem:[%s12 + $0x30] sm:$0xff]
    %v646 = vld [vmem:[%s12 + $0x38] sm:$0xff]
    %v647 = vld [vmem:[%s13] sm:$0xff]
    %v648 = vld [vmem:[%s13 + $0x8] sm:$0xff]
    %v649 = vld [vmem:[%s13 + $0x10] sm:$0xff]
    %v650 = vld [vmem:[%s13 + $0x18] sm:$0xff]
    %v651 = vld [vmem:[%s13 + $0x20] sm:$0xff]
    %v652 = vld [vmem:[%s13 + $0x28] sm:$0xff]
    %v653 = vld [vmem:[%s13 + $0x30] sm:$0xff]
    %v654 = vld [vmem:[%s13 + $0x38] sm:$0xff]
    %v655 = vld [vmem:[%s14] sm:$0x1]
    %v657 = vsel %vm374, 0.0, 0
    %659 = vmatprep.subr.mxu0 0.0
    %660 = vmatpush1.msra.mxu0 %v631
    %661 = vmatprep.subr.mxu0 0.0
    %662 = vmatpush1.msra.mxu0 %v632
    %663 = vmatprep.subr.mxu0 0.0
    %664 = vmatpush1.msra.mxu0 %v633
    %665 = vmatprep.subr.mxu0 0.0
    %666 = vmatpush1.msra.mxu0 %v634
    %667 = vmatprep.subr.mxu0 0.0
    %668 = vmatpush1.msra.mxu0 %v635
    %669 = vmatprep.subr.mxu0 0.0
    %670 = vmatpush1.msra.mxu0 %v636
    %671 = vmatprep.subr.mxu0 0.0
    %672 = vmatpush1.msra.mxu0 %v637
    %673 = vmatprep.subr.mxu0 0.0
    %674 = vmatpush1.msra.mxu0 %v638
    %675 = vmatprep.subr.mxu0 0.0
    %676 = vmatpush1.msra.mxu0 0.0
    %677 = vmatprep.subr.mxu0 0.0
    %678 = vmatpush1.msra.mxu0 0.0
    %679 = vmatprep.subr.mxu0 0.0
    %680 = vmatpush1.msra.mxu0 0.0
    %681 = vmatprep.subr.mxu0 0.0
    %682 = vmatpush1.msra.mxu0 0.0
    %683 = vmatprep.subr.mxu0 0.0
    %684 = vmatpush1.msra.mxu0 0.0
    %685 = vmatprep.subr.mxu0 0.0
    %686 = vmatpush1.msra.mxu0 0.0
    %687 = vmatprep.subr.mxu0 0.0
    %688 = vmatpush1.msra.mxu0 0.0
    %689 = vmatprep.subr.mxu0 0.0
    %690 = vmatpush1.msra.mxu0 0.0
    %691 = vmatprep.subr.mxu0 0.0
    %692 = vmatpush1.msra.mxu0 0.0
    %693 = vmatprep.subr.mxu0 0.0
    %694 = vmatpush1.msra.mxu0 0.0
    %695 = vmatprep.subr.mxu0 0.0
    %696 = vmatpush1.msra.mxu0 0.0
    %697 = vmatprep.subr.mxu0 0.0
    %698 = vmatpush1.msra.mxu0 0.0
    %699 = vmatprep.subr.mxu0 0.0
    %700 = vmatpush1.msra.mxu0 0.0
    %701 = vmatprep.subr.mxu0 0.0
    %702 = vmatpush1.msra.mxu0 0.0
    %703 = vmatprep.subr.mxu0 0.0
    %704 = vmatpush1.msra.mxu0 0.0
    %705 = vmatprep.subr.mxu0 0.0
    %706 = vmatpush1.msra.mxu0 0.0
    %707 = vmatprep.subr.mxu0 0.0
    %708 = vmatpush1.msra.mxu0 0.0
    %709 = vmatprep.subr.mxu0 0.0
    %710 = vmatpush1.msra.mxu0 0.0
    %711 = vmatprep.subr.mxu0 0.0
    %712 = vmatpush1.msra.mxu0 0.0
    %713 = vmatprep.subr.mxu0 0.0
    %714 = vmatpush1.msra.mxu0 0.0
    %715 = vmatprep.subr.mxu0 0.0
    %716 = vmatpush1.msra.mxu0 0.0
    %717 = vmatprep.subr.mxu0 0.0
    %718 = vmatpush1.msra.mxu0 0.0
    %719 = vmatprep.subr.mxu0 0.0
    %720 = vmatpush1.msra.mxu0 0.0
    %721 = vmatprep.subr.mxu0 0.0
    %722 = vmatpush1.msra.mxu0 0.0
    %723 = vmatprep.mubr.f32.mxu0 0.0
    %724 = vmatmul.mubr.f32.gmra.mrb[0].mxu0 %v657
    %v725 = vpop.f32.mrb[0].mxu0
    %v726 = vadd.f32 0.0, %v725
    %v727 = vpop.f32.mrb[0].mxu0
    %728 = vdwg.mxu0
    %729 = vmatprep.subr.mxu0 0.0
    %730 = vmatpush1.msra.mxu0 %v639
    %731 = vmatprep.subr.mxu0 0.0
    %732 = vmatpush1.msra.mxu0 %v640
    %733 = vmatprep.subr.mxu0 0.0
    %734 = vmatpush1.msra.mxu0 %v641
    %735 = vmatprep.subr.mxu0 0.0
    %736 = vmatpush1.msra.mxu0 %v642
    %737 = vmatprep.subr.mxu0 0.0
    %738 = vmatpush1.msra.mxu0 %v643
    %739 = vmatprep.subr.mxu0 0.0
    %740 = vmatpush1.msra.mxu0 %v644
    %741 = vmatprep.subr.mxu0 0.0
    %742 = vmatpush1.msra.mxu0 %v645
    %743 = vmatprep.subr.mxu0 0.0
    %744 = vmatpush1.msra.mxu0 %v646
    %745 = vmatprep.subr.mxu0 0.0
    %746 = vmatpush1.msra.mxu0 0.0
    %747 = vmatprep.subr.mxu0 0.0
    %748 = vmatpush1.msra.mxu0 0.0
    %749 = vmatprep.subr.mxu0 0.0
    %750 = vmatpush1.msra.mxu0 0.0
    %751 = vmatprep.subr.mxu0 0.0
    %752 = vmatpush1.msra.mxu0 0.0
    %753 = vmatprep.subr.mxu0 0.0
    %754 = vmatpush1.msra.mxu0 0.0
    %755 = vmatprep.subr.mxu0 0.0
    %756 = vmatpush1.msra.mxu0 0.0
    %757 = vmatprep.subr.mxu0 0.0
    %758 = vmatpush1.msra.mxu0 0.0
    %759 = vmatprep.subr.mxu0 0.0
    %760 = vmatpush1.msra.mxu0 0.0
    %761 = vmatprep.subr.mxu0 0.0
    %762 = vmatpush1.msra.mxu0 0.0
    %763 = vmatprep.subr.mxu0 0.0
    %764 = vmatpush1.msra.mxu0 0.0
    %765 = vmatprep.subr.mxu0 0.0
    %766 = vmatpush1.msra.mxu0 0.0
    %767 = vmatprep.subr.mxu0 0.0
    %768 = vmatpush1.msra.mxu0 0.0
    %769 = vmatprep.subr.mxu0 0.0
    %770 = vmatpush1.msra.mxu0 0.0
    %771 = vmatprep.subr.mxu0 0.0
    %772 = vmatpush1.msra.mxu0 0.0
    %773 = vmatprep.subr.mxu0 0.0
    %774 = vmatpush1.msra.mxu0 0.0
    %775 = vmatprep.subr.mxu0 0.0
    %776 = vmatpush1.msra.mxu0 0.0
    %777 = vmatprep.subr.mxu0 0.0
    %778 = vmatpush1.msra.mxu0 0.0
    %779 = vmatprep.subr.mxu0 0.0
    %780 = vmatpush1.msra.mxu0 0.0
    %781 = vmatprep.subr.mxu0 0.0
    %782 = vmatpush1.msra.mxu0 0.0
    %783 = vmatprep.subr.mxu0 0.0
    %784 = vmatpush1.msra.mxu0 0.0
    %785 = vmatprep.subr.mxu0 0.0
    %786 = vmatpush1.msra.mxu0 0.0
    %787 = vmatprep.subr.mxu0 0.0
    %788 = vmatpush1.msra.mxu0 0.0
    %789 = vmatprep.subr.mxu0 0.0
    %790 = vmatpush1.msra.mxu0 0.0
    %791 = vmatprep.subr.mxu0 0.0
    %792 = vmatpush1.msra.mxu0 0.0
    %793 = vmatprep.mubr.f32.mxu0 0.0
    %794 = vmatmul.mubr.f32.gmra.mrb[0].mxu0 %v657
    %v795 = vpop.f32.mrb[0].mxu0
    %v796 = vadd.f32 0.0, %v795
    %v797 = vpop.f32.mrb[0].mxu0
    %798 = vdwg.mxu0
    %v800 = vlaneseq
    %v801 = vshrl.u32 %v800, 7
    %v802 = vsub.s32 0, %v801
    %v803 = vrot.slane %v655, %v802
    %805 = vmatprep.subr.mxu0 0.0
    %806 = vmatpush1.msra.mxu0 %v647
    %807 = vmatprep.subr.mxu0 0.0
    %808 = vmatpush1.msra.mxu0 %v648
    %809 = vmatprep.subr.mxu0 0.0
    %810 = vmatpush1.msra.mxu0 %v649
    %811 = vmatprep.subr.mxu0 0.0
    %812 = vmatpush1.msra.mxu0 %v650
    %813 = vmatprep.subr.mxu0 0.0
    %814 = vmatpush1.msra.mxu0 %v651
    %815 = vmatprep.subr.mxu0 0.0
    %816 = vmatpush1.msra.mxu0 %v652
    %817 = vmatprep.subr.mxu0 0.0
    %818 = vmatpush1.msra.mxu0 %v653
    %819 = vmatprep.subr.mxu0 0.0
    %820 = vmatpush1.msra.mxu0 %v654
    %821 = vmatprep.subr.mxu0 0.0
    %822 = vmatpush1.msra.mxu0 0.0
    %823 = vmatprep.subr.mxu0 0.0
    %824 = vmatpush1.msra.mxu0 0.0
    %825 = vmatprep.subr.mxu0 0.0
    %826 = vmatpush1.msra.mxu0 0.0
    %827 = vmatprep.subr.mxu0 0.0
    %828 = vmatpush1.msra.mxu0 0.0
    %829 = vmatprep.subr.mxu0 0.0
    %830 = vmatpush1.msra.mxu0 0.0
    %831 = vmatprep.subr.mxu0 0.0
    %832 = vmatpush1.msra.mxu0 0.0
    %833 = vmatprep.subr.mxu0 0.0
    %834 = vmatpush1.msra.mxu0 0.0
    %835 = vmatprep.subr.mxu0 0.0
    %836 = vmatpush1.msra.mxu0 0.0
    %837 = vmatprep.subr.mxu0 0.0
    %838 = vmatpush1.msra.mxu0 0.0
    %839 = vmatprep.subr.mxu0 0.0
    %840 = vmatpush1.msra.mxu0 0.0
    %841 = vmatprep.subr.mxu0 0.0
    %842 = vmatpush1.msra.mxu0 0.0
    %843 = vmatprep.subr.mxu0 0.0
    %844 = vmatpush1.msra.mxu0 0.0
    %845 = vmatprep.subr.mxu0 0.0
    %846 = vmatpush1.msra.mxu0 0.0
    %847 = vmatprep.subr.mxu0 0.0
    %848 = vmatpush1.msra.mxu0 0.0
    %849 = vmatprep.subr.mxu0 0.0
    %850 = vmatpush1.msra.mxu0 0.0
    %851 = vmatprep.subr.mxu0 0.0
    %852 = vmatpush1.msra.mxu0 0.0
    %853 = vmatprep.subr.mxu0 0.0
    %854 = vmatpush1.msra.mxu0 0.0
    %855 = vmatprep.subr.mxu0 0.0
    %856 = vmatpush1.msra.mxu0 0.0
    %857 = vmatprep.subr.mxu0 0.0
    %858 = vmatpush1.msra.mxu0 0.0
    %859 = vmatprep.subr.mxu0 0.0
    %860 = vmatpush1.msra.mxu0 0.0
    %861 = vmatprep.subr.mxu0 0.0
    %862 = vmatpush1.msra.mxu0 0.0
    %863 = vmatprep.subr.mxu0 0.0
    %864 = vmatpush1.msra.mxu0 0.0
    %865 = vmatprep.subr.mxu0 0.0
    %866 = vmatpush1.msra.mxu0 0.0
    %867 = vmatprep.subr.mxu0 0.0
    %868 = vmatpush1.msra.mxu0 0.0
    %869 = vmatprep.mubr.f32.mxu0 0.0
    %870 = vmatmul.mubr.f32.gmra.mrb[0].mxu0 %v657
    %v871 = vpop.f32.mrb[0].mxu0
    %v872 = vadd.f32 %v803, %v871
    %v873 = vpop.f32.mrb[0].mxu0
    %874 = vdwg.mxu0
    %v875 = vld [vmem:[#allocation3] sm:$0xff]
    %v876 = vadd.f32 %v875, %v726
    %v877 = vxor.u32 %v876, 2147483648
    %v878 = vmul.f32 %v877, 1.442695
    %v879 = vpow.pop %v878
    %v880 = vadd.f32 %v879, 1.0
    %v881 = vrcp.pop %v880
    %v882 = vmul.f32 1.0, %v881
    %v883 = vld [vmem:[#allocation4] sm:$0xff]
    %v884 = vadd.f32 %v883, %v796
    %v885 = vxor.u32 %v884, 2147483648
    %v886 = vmul.f32 %v885, 1.442695
    %v887 = vpow.pop %v886
    %v888 = vadd.f32 %v887, 1.0
    %v889 = vrcp.pop %v888
    %v890 = vmul.f32 1.0, %v889
    %v891 = vld [vmem:[#allocation5] sm:$0xff]
    %v892 = vmul.f32 %v882, %v872
    %v893 = vadd.f32 %v891, %v892
    %v894 = vtanh.pop %v893
    %v895 = vsub.f32 1.0, %v890
    %v896 = vmul.f32 %v895, %v894
    %v897 = vmul.f32 %v890, 0.0
    %v898 = vadd.f32 %v896, %v897
    %899 = vst.msk [vmem:[#allocation6] sm:$0xff] %vm374, %v898
    %v901 = vsel %vm374, %v898, 0
    %903 = vmatprep.subr.mxu0 0.0
    %904 = vmatpush1.msra.mxu0 %v631
    %905 = vmatprep.subr.mxu0 0.0
    %906 = vmatpush1.msra.mxu0 %v632
    %907 = vmatprep.subr.mxu0 0.0
    %908 = vmatpush1.msra.mxu0 %v633
    %909 = vmatprep.subr.mxu0 0.0
    %910 = vmatpush1.msra.mxu0 %v634
    %911 = vmatprep.subr.mxu0 0.0
    %912 = vmatpush1.msra.mxu0 %v635
    %913 = vmatprep.subr.mxu0 0.0
    %914 = vmatpush1.msra.mxu0 %v636
    %915 = vmatprep.subr.mxu0 0.0
    %916 = vmatpush1.msra.mxu0 %v637
    %917 = vmatprep.subr.mxu0 0.0
    %918 = vmatpush1.msra.mxu0 %v638
    %919 = vmatprep.subr.mxu0 0.0
    %920 = vmatpush1.msra.mxu0 0.0
    %921 = vmatprep.subr.mxu0 0.0
    %922 = vmatpush1.msra.mxu0 0.0
    %923 = vmatprep.subr.mxu0 0.0
    %924 = vmatpush1.msra.mxu0 0.0
    %925 = vmatprep.subr.mxu0 0.0
    %926 = vmatpush1.msra.mxu0 0.0
    %927 = vmatprep.subr.mxu0 0.0
    %928 = vmatpush1.msra.mxu0 0.0
    %929 = vmatprep.subr.mxu0 0.0
    %930 = vmatpush1.msra.mxu0 0.0
    %931 = vmatprep.subr.mxu0 0.0
    %932 = vmatpush1.msra.mxu0 0.0
    %933 = vmatprep.subr.mxu0 0.0
    %934 = vmatpush1.msra.mxu0 0.0
    %935 = vmatprep.subr.mxu0 0.0
    %936 = vmatpush1.msra.mxu0 0.0
    %937 = vmatprep.subr.mxu0 0.0
    %938 = vmatpush1.msra.mxu0 0.0
    %939 = vmatprep.subr.mxu0 0.0
    %940 = vmatpush1.msra.mxu0 0.0
    %941 = vmatprep.subr.mxu0 0.0
    %942 = vmatpush1.msra.mxu0 0.0
    %943 = vmatprep.subr.mxu0 0.0
    %944 = vmatpush1.msra.mxu0 0.0
    %945 = vmatprep.subr.mxu0 0.0
    %946 = vmatpush1.msra.mxu0 0.0
    %947 = vmatprep.subr.mxu0 0.0
    %948 = vmatpush1.msra.mxu0 0.0
    %949 = vmatprep.subr.mxu0 0.0
    %950 = vmatpush1.msra.mxu0 0.0
    %951 = vmatprep.subr.mxu0 0.0
    %952 = vmatpush1.msra.mxu0 0.0
    %953 = vmatprep.subr.mxu0 0.0
    %954 = vmatpush1.msra.mxu0 0.0
    %955 = vmatprep.subr.mxu0 0.0
    %956 = vmatpush1.msra.mxu0 0.0
    %957 = vmatprep.subr.mxu0 0.0
    %958 = vmatpush1.msra.mxu0 0.0
    %959 = vmatprep.subr.mxu0 0.0
    %960 = vmatpush1.msra.mxu0 0.0
    %961 = vmatprep.subr.mxu0 0.0
    %962 = vmatpush1.msra.mxu0 0.0
    %963 = vmatprep.subr.mxu0 0.0
    %964 = vmatpush1.msra.mxu0 0.0
    %965 = vmatprep.subr.mxu0 0.0
    %966 = vmatpush1.msra.mxu0 0.0
    %967 = vmatprep.mubr.f32.mxu0 0.0
    %968 = vmatmul.mubr.f32.gmra.mrb[0].mxu0 %v901
    %v969 = vpop.f32.mrb[0].mxu0
    %v970 = vadd.f32 0.0, %v969
    %v971 = vpop.f32.mrb[0].mxu0
    %972 = vdwg.mxu0
    %973 = vmatprep.subr.mxu0 0.0
    %974 = vmatpush1.msra.mxu0 %v639
    %975 = vmatprep.subr.mxu0 0.0
    %976 = vmatpush1.msra.mxu0 %v640
    %977 = vmatprep.subr.mxu0 0.0
    %978 = vmatpush1.msra.mxu0 %v641
    %979 = vmatprep.subr.mxu0 0.0
    %980 = vmatpush1.msra.mxu0 %v642
    %981 = vmatprep.subr.mxu0 0.0
    %982 = vmatpush1.msra.mxu0 %v643
    %983 = vmatprep.subr.mxu0 0.0
    %984 = vmatpush1.msra.mxu0 %v644
    %985 = vmatprep.subr.mxu0 0.0
    %986 = vmatpush1.msra.mxu0 %v645
    %987 = vmatprep.subr.mxu0 0.0
    %988 = vmatpush1.msra.mxu0 %v646
    %989 = vmatprep.subr.mxu0 0.0
    %990 = vmatpush1.msra.mxu0 0.0
    %991 = vmatprep.subr.mxu0 0.0
    %992 = vmatpush1.msra.mxu0 0.0
    %993 = vmatprep.subr.mxu0 0.0
    %994 = vmatpush1.msra.mxu0 0.0
    %995 = vmatprep.subr.mxu0 0.0
    %996 = vmatpush1.msra.mxu0 0.0
    %997 = vmatprep.subr.mxu0 0.0
    %998 = vmatpush1.msra.mxu0 0.0
    %999 = vmatprep.subr.mxu0 0.0
    %1000 = vmatpush1.msra.mxu0 0.0
    %1001 = vmatprep.subr.mxu0 0.0
    %1002 = vmatpush1.msra.mxu0 0.0
    %1003 = vmatprep.subr.mxu0 0.0
    %1004 = vmatpush1.msra.mxu0 0.0
    %1005 = vmatprep.subr.mxu0 0.0
    %1006 = vmatpush1.msra.mxu0 0.0
    %1007 = vmatprep.subr.mxu0 0.0
    %1008 = vmatpush1.msra.mxu0 0.0
    %1009 = vmatprep.subr.mxu0 0.0
    %1010 = vmatpush1.msra.mxu0 0.0
    %1011 = vmatprep.subr.mxu0 0.0
    %1012 = vmatpush1.msra.mxu0 0.0
    %1013 = vmatprep.subr.mxu0 0.0
    %1014 = vmatpush1.msra.mxu0 0.0
    %1015 = vmatprep.subr.mxu0 0.0
    %1016 = vmatpush1.msra.mxu0 0.0
    %1017 = vmatprep.subr.mxu0 0.0
    %1018 = vmatpush1.msra.mxu0 0.0
    %1019 = vmatprep.subr.mxu0 0.0
    %1020 = vmatpush1.msra.mxu0 0.0
    %1021 = vmatprep.subr.mxu0 0.0
    %1022 = vmatpush1.msra.mxu0 0.0
    %1023 = vmatprep.subr.mxu0 0.0
    %1024 = vmatpush1.msra.mxu0 0.0
    %1025 = vmatprep.subr.mxu0 0.0
    %1026 = vmatpush1.msra.mxu0 0.0
    %1027 = vmatprep.subr.mxu0 0.0
    %1028 = vmatpush1.msra.mxu0 0.0
    %1029 = vmatprep.subr.mxu0 0.0
    %1030 = vmatpush1.msra.mxu0 0.0
    %1031 = vmatprep.subr.mxu0 0.0
    %1032 = vmatpush1.msra.mxu0 0.0
    %1033 = vmatprep.subr.mxu0 0.0
    %1034 = vmatpush1.msra.mxu0 0.0
    %1035 = vmatprep.subr.mxu0 0.0
    %1036 = vmatpush1.msra.mxu0 0.0
    %1037 = vmatprep.mubr.f32.mxu0 0.0
    %1038 = vmatmul.mubr.f32.gmra.mrb[0].mxu0 %v901
    %v1039 = vpop.f32.mrb[0].mxu0
    %v1040 = vadd.f32 0.0, %v1039
    %v1041 = vpop.f32.mrb[0].mxu0
    %1042 = vdwg.mxu0
    %1043 = vmatprep.subr.mxu0 0.0
    %1044 = vmatpush1.msra.mxu0 %v647
    %1045 = vmatprep.subr.mxu0 0.0
    %1046 = vmatpush1.msra.mxu0 %v648
    %1047 = vmatprep.subr.mxu0 0.0
    %1048 = vmatpush1.msra.mxu0 %v649
    %1049 = vmatprep.subr.mxu0 0.0
    %1050 = vmatpush1.msra.mxu0 %v650
    %1051 = vmatprep.subr.mxu0 0.0
    %1052 = vmatpush1.msra.mxu0 %v651
    %1053 = vmatprep.subr.mxu0 0.0
    %1054 = vmatpush1.msra.mxu0 %v652
    %1055 = vmatprep.subr.mxu0 0.0
    %1056 = vmatpush1.msra.mxu0 %v653
    %1057 = vmatprep.subr.mxu0 0.0
    %1058 = vmatpush1.msra.mxu0 %v654
    %1059 = vmatprep.subr.mxu0 0.0
    %1060 = vmatpush1.msra.mxu0 0.0
    %1061 = vmatprep.subr.mxu0 0.0
    %1062 = vmatpush1.msra.mxu0 0.0
    %1063 = vmatprep.subr.mxu0 0.0
    %1064 = vmatpush1.msra.mxu0 0.0
    %1065 = vmatprep.subr.mxu0 0.0
    %1066 = vmatpush1.msra.mxu0 0.0
    %1067 = vmatprep.subr.mxu0 0.0
    %1068 = vmatpush1.msra.mxu0 0.0
    %1069 = vmatprep.subr.mxu0 0.0
    %1070 = vmatpush1.msra.mxu0 0.0
    %1071 = vmatprep.subr.mxu0 0.0
    %1072 = vmatpush1.msra.mxu0 0.0
    %1073 = vmatprep.subr.mxu0 0.0
    %1074 = vmatpush1.msra.mxu0 0.0
    %1075 = vmatprep.subr.mxu0 0.0
    %1076 = vmatpush1.msra.mxu0 0.0
    %1077 = vmatprep.subr.mxu0 0.0
    %1078 = vmatpush1.msra.mxu0 0.0
    %1079 = vmatprep.subr.mxu0 0.0
    %1080 = vmatpush1.msra.mxu0 0.0
    %1081 = vmatprep.subr.mxu0 0.0
    %1082 = vmatpush1.msra.mxu0 0.0
    %1083 = vmatprep.subr.mxu0 0.0
    %1084 = vmatpush1.msra.mxu0 0.0
    %1085 = vmatprep.subr.mxu0 0.0
    %1086 = vmatpush1.msra.mxu0 0.0
    %1087 = vmatprep.subr.mxu0 0.0
    %1088 = vmatpush1.msra.mxu0 0.0
    %1089 = vmatprep.subr.mxu0 0.0
    %1090 = vmatpush1.msra.mxu0 0.0
    %1091 = vmatprep.subr.mxu0 0.0
    %1092 = vmatpush1.msra.mxu0 0.0
    %1093 = vmatprep.subr.mxu0 0.0
    %1094 = vmatpush1.msra.mxu0 0.0
    %1095 = vmatprep.subr.mxu0 0.0
    %1096 = vmatpush1.msra.mxu0 0.0
    %1097 = vmatprep.subr.mxu0 0.0
    %1098 = vmatpush1.msra.mxu0 0.0
    %1099 = vmatprep.subr.mxu0 0.0
    %1100 = vmatpush1.msra.mxu0 0.0
    %1101 = vmatprep.subr.mxu0 0.0
    %1102 = vmatpush1.msra.mxu0 0.0
    %1103 = vmatprep.subr.mxu0 0.0
    %1104 = vmatpush1.msra.mxu0 0.0
    %1105 = vmatprep.subr.mxu0 0.0
    %1106 = vmatpush1.msra.mxu0 0.0
    %1107 = vmatprep.mubr.f32.mxu0 0.0
    %1108 = vmatmul.mubr.f32.gmra.mrb[0].mxu0 %v901
    %v1109 = vpop.f32.mrb[0].mxu0
    %v1110 = vadd.f32 %v803, %v1109
    %v1111 = vpop.f32.mrb[0].mxu0
    %1112 = vdwg.mxu0
    %s1113 = scalar_lea.vmem [#allocation3], 8
    %v1114 = vld [vmem:[%s1113] sm:$0xff]
    %v1115 = vadd.f32 %v1114, %v970
    %v1116 = vxor.u32 %v1115, 2147483648
    %v1117 = vmul.f32 %v1116, 1.442695
    %v1118 = vpow.pop %v1117
    %v1119 = vadd.f32 %v1118, 1.0
    %v1120 = vrcp.pop %v1119
    %v1121 = vmul.f32 1.0, %v1120
    %s1122 = scalar_lea.vmem [#allocation4], 8
    %v1123 = vld [vmem:[%s1122] sm:$0xff]
    %v1124 = vadd.f32 %v1123, %v1040
    %v1125 = vxor.u32 %v1124, 2147483648
    %v1126 = vmul.f32 %v1125, 1.442695
    %v1127 = vpow.pop %v1126
    %v1128 = vadd.f32 %v1127, 1.0
    %v1129 = vrcp.pop %v1128
    %v1130 = vmul.f32 1.0, %v1129
    %s1131 = scalar_lea.vmem [#allocation5], 8
    %v1132 = vld [vmem:[%s1131] sm:$0xff]
    %v1133 = vmul.f32 %v1121, %v1110
    %v1134 = vadd.f32 %v1132, %v1133
    %v1135 = vtanh.pop %v1134
    %v1136 = vsub.f32 1.0, %v1130
    %v1137 = vmul.f32 %v1136, %v1135
    %v1138 = vmul.f32 %v1130, %v898
    %v1139 = vadd.f32 %v1137, %v1138
    %s1140 = scalar_lea.vmem [#allocation6], 8
    %1141 = vst.msk [vmem:[%s1140] sm:$0xff] %vm374, %v1139
    %v1143 = vsel %vm374, %v1139, 0
    %1145 = vmatprep.subr.mxu0 0.0
    %1146 = vmatpush1.msra.mxu0 %v631
    %1147 = vmatprep.subr.mxu0 0.0
    %1148 = vmatpush1.msra.mxu0 %v632
    %1149 = vmatprep.subr.mxu0 0.0
    %1150 = vmatpush1.msra.mxu0 %v633
    %1151 = vmatprep.subr.mxu0 0.0
    %1152 = vmatpush1.msra.mxu0 %v634
    %1153 = vmatprep.subr.mxu0 0.0
    %1154 = vmatpush1.msra.mxu0 %v635
    %1155 = vmatprep.subr.mxu0 0.0
    %1156 = vmatpush1.msra.mxu0 %v636
    %1157 = vmatprep.subr.mxu0 0.0
    %1158 = vmatpush1.msra.mxu0 %v637
    %1159 = vmatprep.subr.mxu0 0.0
    %1160 = vmatpush1.msra.mxu0 %v638
    %1161 = vmatprep.subr.mxu0 0.0
    %1162 = vmatpush1.msra.mxu0 0.0
    %1163 = vmatprep.subr.mxu0 0.0
    %1164 = vmatpush1.msra.mxu0 0.0
    %1165 = vmatprep.subr.mxu0 0.0
    %1166 = vmatpush1.msra.mxu0 0.0
    %1167 = vmatprep.subr.mxu0 0.0
    %1168 = vmatpush1.msra.mxu0 0.0
    %1169 = vmatprep.subr.mxu0 0.0
    %1170 = vmatpush1.msra.mxu0 0.0
    %1171 = vmatprep.subr.mxu0 0.0
    %1172 = vmatpush1.msra.mxu0 0.0
    %1173 = vmatprep.subr.mxu0 0.0
    %1174 = vmatpush1.msra.mxu0 0.0
    %1175 = vmatprep.subr.mxu0 0.0
    %1176 = vmatpush1.msra.mxu0 0.0
    %1177 = vmatprep.subr.mxu0 0.0
    %1178 = vmatpush1.msra.mxu0 0.0
    %1179 = vmatprep.subr.mxu0 0.0
    %1180 = vmatpush1.msra.mxu0 0.0
    %1181 = vmatprep.subr.mxu0 0.0
    %1182 = vmatpush1.msra.mxu0 0.0
    %1183 = vmatprep.subr.mxu0 0.0
    %1184 = vmatpush1.msra.mxu0 0.0
    %1185 = vmatprep.subr.mxu0 0.0
    %1186 = vmatpush1.msra.mxu0 0.0
    %1187 = vmatprep.subr.mxu0 0.0
    %1188 = vmatpush1.msra.mxu0 0.0
    %1189 = vmatprep.subr.mxu0 0.0
    %1190 = vmatpush1.msra.mxu0 0.0
    %1191 = vmatprep.subr.mxu0 0.0
    %1192 = vmatpush1.msra.mxu0 0.0
    %1193 = vmatprep.subr.mxu0 0.0
    %1194 = vmatpush1.msra.mxu0 0.0
    %1195 = vmatprep.subr.mxu0 0.0
    %1196 = vmatpush1.msra.mxu0 0.0
    %1197 = vmatprep.subr.mxu0 0.0
    %1198 = vmatpush1.msra.mxu0 0.0
    %1199 = vmatprep.subr.mxu0 0.0
    %1200 = vmatpush1.msra.mxu0 0.0
    %1201 = vmatprep.subr.mxu0 0.0
    %1202 = vmatpush1.msra.mxu0 0.0
    %1203 = vmatprep.subr.mxu0 0.0
    %1204 = vmatpush1.msra.mxu0 0.0
    %1205 = vmatprep.subr.mxu0 0.0
    %1206 = vmatpush1.msra.mxu0 0.0
    %1207 = vmatprep.subr.mxu0 0.0
    %1208 = vmatpush1.msra.mxu0 0.0
    %1209 = vmatprep.mubr.f32.mxu0 0.0
    %1210 = vmatmul.mubr.f32.gmra.mrb[0].mxu0 %v1143
    %v1211 = vpop.f32.mrb[0].mxu0
    %v1212 = vadd.f32 0.0, %v1211
    %v1213 = vpop.f32.mrb[0].mxu0
    %1214 = vdwg.mxu0
    %1215 = vmatprep.subr.mxu0 0.0
    %1216 = vmatpush1.msra.mxu0 %v639
    %1217 = vmatprep.subr.mxu0 0.0
    %1218 = vmatpush1.msra.mxu0 %v640
    %1219 = vmatprep.subr.mxu0 0.0
    %1220 = vmatpush1.msra.mxu0 %v641
    %1221 = vmatprep.subr.mxu0 0.0
    %1222 = vmatpush1.msra.mxu0 %v642
    %1223 = vmatprep.subr.mxu0 0.0
    %1224 = vmatpush1.msra.mxu0 %v643
    %1225 = vmatprep.subr.mxu0 0.0
    %1226 = vmatpush1.msra.mxu0 %v644
    %1227 = vmatprep.subr.mxu0 0.0
    %1228 = vmatpush1.msra.mxu0 %v645
    %1229 = vmatprep.subr.mxu0 0.0
    %1230 = vmatpush1.msra.mxu0 %v646
    %1231 = vmatprep.subr.mxu0 0.0
    %1232 = vmatpush1.msra.mxu0 0.0
    %1233 = vmatprep.subr.mxu0 0.0
    %1234 = vmatpush1.msra.mxu0 0.0
    %1235 = vmatprep.subr.mxu0 0.0
    %1236 = vmatpush1.msra.mxu0 0.0
    %1237 = vmatprep.subr.mxu0 0.0
    %1238 = vmatpush1.msra.mxu0 0.0
    %1239 = vmatprep.subr.mxu0 0.0
    %1240 = vmatpush1.msra.mxu0 0.0
    %1241 = vmatprep.subr.mxu0 0.0
    %1242 = vmatpush1.msra.mxu0 0.0
    %1243 = vmatprep.subr.mxu0 0.0
    %1244 = vmatpush1.msra.mxu0 0.0
    %1245 = vmatprep.subr.mxu0 0.0
    %1246 = vmatpush1.msra.mxu0 0.0
    %1247 = vmatprep.subr.mxu0 0.0
    %1248 = vmatpush1.msra.mxu0 0.0
    %1249 = vmatprep.subr.mxu0 0.0
    %1250 = vmatpush1.msra.mxu0 0.0
    %1251 = vmatprep.subr.mxu0 0.0
    %1252 = vmatpush1.msra.mxu0 0.0
    %1253 = vmatprep.subr.mxu0 0.0
    %1254 = vmatpush1.msra.mxu0 0.0
    %1255 = vmatprep.subr.mxu0 0.0
    %1256 = vmatpush1.msra.mxu0 0.0
    %1257 = vmatprep.subr.mxu0 0.0
    %1258 = vmatpush1.msra.mxu0 0.0
    %1259 = vmatprep.subr.mxu0 0.0
    %1260 = vmatpush1.msra.mxu0 0.0
    %1261 = vmatprep.subr.mxu0 0.0
    %1262 = vmatpush1.msra.mxu0 0.0
    %1263 = vmatprep.subr.mxu0 0.0
    %1264 = vmatpush1.msra.mxu0 0.0
    %1265 = vmatprep.subr.mxu0 0.0
    %1266 = vmatpush1.msra.mxu0 0.0
    %1267 = vmatprep.subr.mxu0 0.0
    %1268 = vmatpush1.msra.mxu0 0.0
    %1269 = vmatprep.subr.mxu0 0.0
    %1270 = vmatpush1.msra.mxu0 0.0
    %1271 = vmatprep.subr.mxu0 0.0
    %1272 = vmatpush1.msra.mxu0 0.0
    %1273 = vmatprep.subr.mxu0 0.0
    %1274 = vmatpush1.msra.mxu0 0.0
    %1275 = vmatprep.subr.mxu0 0.0
    %1276 = vmatpush1.msra.mxu0 0.0
    %1277 = vmatprep.subr.mxu0 0.0
    %1278 = vmatpush1.msra.mxu0 0.0
    %1279 = vmatprep.mubr.f32.mxu0 0.0
    %1280 = vmatmul.mubr.f32.gmra.mrb[0].mxu0 %v1143
    %v1281 = vpop.f32.mrb[0].mxu0
    %v1282 = vadd.f32 0.0, %v1281
    %v1283 = vpop.f32.mrb[0].mxu0
    %1284 = vdwg.mxu0
    %1285 = vmatprep.subr.mxu0 0.0
    %1286 = vmatpush1.msra.mxu0 %v647
    %1287 = vmatprep.subr.mxu0 0.0
    %1288 = vmatpush1.msra.mxu0 %v648
    %1289 = vmatprep.subr.mxu0 0.0
    %1290 = vmatpush1.msra.mxu0 %v649
    %1291 = vmatprep.subr.mxu0 0.0
    %1292 = vmatpush1.msra.mxu0 %v650
    %1293 = vmatprep.subr.mxu0 0.0
    %1294 = vmatpush1.msra.mxu0 %v651
    %1295 = vmatprep.subr.mxu0 0.0
    %1296 = vmatpush1.msra.mxu0 %v652
    %1297 = vmatprep.subr.mxu0 0.0
    %1298 = vmatpush1.msra.mxu0 %v653
    %1299 = vmatprep.subr.mxu0 0.0
    %1300 = vmatpush1.msra.mxu0 %v654
    %1301 = vmatprep.subr.mxu0 0.0
    %1302 = vmatpush1.msra.mxu0 0.0
    %1303 = vmatprep.subr.mxu0 0.0
    %1304 = vmatpush1.msra.mxu0 0.0
    %1305 = vmatprep.subr.mxu0 0.0
    %1306 = vmatpush1.msra.mxu0 0.0
    %1307 = vmatprep.subr.mxu0 0.0
    %1308 = vmatpush1.msra.mxu0 0.0
    %1309 = vmatprep.subr.mxu0 0.0
    %1310 = vmatpush1.msra.mxu0 0.0
    %1311 = vmatprep.subr.mxu0 0.0
    %1312 = vmatpush1.msra.mxu0 0.0
    %1313 = vmatprep.subr.mxu0 0.0
    %1314 = vmatpush1.msra.mxu0 0.0
    %1315 = vmatprep.subr.mxu0 0.0
    %1316 = vmatpush1.msra.mxu0 0.0
    %1317 = vmatprep.subr.mxu0 0.0
    %1318 = vmatpush1.msra.mxu0 0.0
    %1319 = vmatprep.subr.mxu0 0.0
    %1320 = vmatpush1.msra.mxu0 0.0
    %1321 = vmatprep.subr.mxu0 0.0
    %1322 = vmatpush1.msra.mxu0 0.0
    %1323 = vmatprep.subr.mxu0 0.0
    %1324 = vmatpush1.msra.mxu0 0.0
    %1325 = vmatprep.subr.mxu0 0.0
    %1326 = vmatpush1.msra.mxu0 0.0
    %1327 = vmatprep.subr.mxu0 0.0
    %1328 = vmatpush1.msra.mxu0 0.0
    %1329 = vmatprep.subr.mxu0 0.0
    %1330 = vmatpush1.msra.mxu0 0.0
    %1331 = vmatprep.subr.mxu0 0.0
    %1332 = vmatpush1.msra.mxu0 0.0
    %1333 = vmatprep.subr.mxu0 0.0
    %1334 = vmatpush1.msra.mxu0 0.0
    %1335 = vmatprep.subr.mxu0 0.0
    %1336 = vmatpush1.msra.mxu0 0.0
    %1337 = vmatprep.subr.mxu0 0.0
    %1338 = vmatpush1.msra.mxu0 0.0
    %1339 = vmatprep.subr.mxu0 0.0
    %1340 = vmatpush1.msra.mxu0 0.0
    %1341 = vmatprep.subr.mxu0 0.0
    %1342 = vmatpush1.msra.mxu0 0.0
    %1343 = vmatprep.subr.mxu0 0.0
    %1344 = vmatpush1.msra.mxu0 0.0
    %1345 = vmatprep.subr.mxu0 0.0
    %1346 = vmatpush1.msra.mxu0 0.0
    %1347 = vmatprep.subr.mxu0 0.0
    %1348 = vmatpush1.msra.mxu0 0.0
    %1349 = vmatprep.mubr.f32.mxu0 0.0
    %1350 = vmatmul.mubr.f32.gmra.mrb[0].mxu0 %v1143
    %v1351 = vpop.f32.mrb[0].mxu0
    %v1352 = vadd.f32 %v803, %v1351
    %v1353 = vpop.f32.mrb[0].mxu0
    %1354 = vdwg.mxu0
    %s1355 = scalar_lea.vmem [#allocation3], 16
    %v1356 = vld [vmem:[%s1355] sm:$0xff]
    %v1357 = vadd.f32 %v1356, %v1212
    %v1358 = vxor.u32 %v1357, 2147483648
    %v1359 = vmul.f32 %v1358, 1.442695
    %v1360 = vpow.pop %v1359
    %v1361 = vadd.f32 %v1360, 1.0
    %v1362 = vrcp.pop %v1361
    %v1363 = vmul.f32 1.0, %v1362
    %s1364 = scalar_lea.vmem [#allocation4], 16
    %v1365 = vld [vmem:[%s1364] sm:$0xff]
    %v1366 = vadd.f32 %v1365, %v1282
    %v1367 = vxor.u32 %v1366, 2147483648
    %v1368 = vmul.f32 %v1367, 1.442695
    %v1369 = vpow.pop %v1368
    %v1370 = vadd.f32 %v1369, 1.0
    %v1371 = vrcp.pop %v1370
    %v1372 = vmul.f32 1.0, %v1371
    %s1373 = scalar_lea.vmem [#allocation5], 16
    %v1374 = vld [vmem:[%s1373] sm:$0xff]
    %v1375 = vmul.f32 %v1363, %v1352
    %v1376 = vadd.f32 %v1374, %v1375
    %v1377 = vtanh.pop %v1376
    %v1378 = vsub.f32 1.0, %v1372
    %v1379 = vmul.f32 %v1378, %v1377
    %v1380 = vmul.f32 %v1372, %v1139
    %v1381 = vadd.f32 %v1379, %v1380
    %s1382 = scalar_lea.vmem [#allocation6], 16
    %1383 = vst.msk [vmem:[%s1382] sm:$0xff] %vm374, %v1381
    %v1385 = vsel %vm374, %v1381, 0
    %1387 = vmatprep.subr.mxu0 0.0
    %1388 = vmatpush1.msra.mxu0 %v631
    %1389 = vmatprep.subr.mxu0 0.0
    %1390 = vmatpush1.msra.mxu0 %v632
    %1391 = vmatprep.subr.mxu0 0.0
    %1392 = vmatpush1.msra.mxu0 %v633
    %1393 = vmatprep.subr.mxu0 0.0
    %1394 = vmatpush1.msra.mxu0 %v634
    %1395 = vmatprep.subr.mxu0 0.0
    %1396 = vmatpush1.msra.mxu0 %v635
    %1397 = vmatprep.subr.mxu0 0.0
    %1398 = vmatpush1.msra.mxu0 %v636
    %1399 = vmatprep.subr.mxu0 0.0
    %1400 = vmatpush1.msra.mxu0 %v637
    %1401 = vmatprep.subr.mxu0 0.0
    %1402 = vmatpush1.msra.mxu0 %v638
    %1403 = vmatprep.subr.mxu0 0.0
    %1404 = vmatpush1.msra.mxu0 0.0
    %1405 = vmatprep.subr.mxu0 0.0
    %1406 = vmatpush1.msra.mxu0 0.0
    %1407 = vmatprep.subr.mxu0 0.0
    %1408 = vmatpush1.msra.mxu0 0.0
    %1409 = vmatprep.subr.mxu0 0.0
    %1410 = vmatpush1.msra.mxu0 0.0
    %1411 = vmatprep.subr.mxu0 0.0
    %1412 = vmatpush1.msra.mxu0 0.0
    %1413 = vmatprep.subr.mxu0 0.0
    %1414 = vmatpush1.msra.mxu0 0.0
    %1415 = vmatprep.subr.mxu0 0.0
    %1416 = vmatpush1.msra.mxu0 0.0
    %1417 = vmatprep.subr.mxu0 0.0
    %1418 = vmatpush1.msra.mxu0 0.0
    %1419 = vmatprep.subr.mxu0 0.0
    %1420 = vmatpush1.msra.mxu0 0.0
    %1421 = vmatprep.subr.mxu0 0.0
    %1422 = vmatpush1.msra.mxu0 0.0
    %1423 = vmatprep.subr.mxu0 0.0
    %1424 = vmatpush1.msra.mxu0 0.0
    %1425 = vmatprep.subr.mxu0 0.0
    %1426 = vmatpush1.msra.mxu0 0.0
    %1427 = vmatprep.subr.mxu0 0.0
    %1428 = vmatpush1.msra.mxu0 0.0
    %1429 = vmatprep.subr.mxu0 0.0
    %1430 = vmatpush1.msra.mxu0 0.0
    %1431 = vmatprep.subr.mxu0 0.0
    %1432 = vmatpush1.msra.mxu0 0.0
    %1433 = vmatprep.subr.mxu0 0.0
    %1434 = vmatpush1.msra.mxu0 0.0
    %1435 = vmatprep.subr.mxu0 0.0
    %1436 = vmatpush1.msra.mxu0 0.0
    %1437 = vmatprep.subr.mxu0 0.0
    %1438 = vmatpush1.msra.mxu0 0.0
    %1439 = vmatprep.subr.mxu0 0.0
    %1440 = vmatpush1.msra.mxu0 0.0
    %1441 = vmatprep.subr.mxu0 0.0
    %1442 = vmatpush1.msra.mxu0 0.0
    %1443 = vmatprep.subr.mxu0 0.0
    %1444 = vmatpush1.msra.mxu0 0.0
    %1445 = vmatprep.subr.mxu0 0.0
    %1446 = vmatpush1.msra.mxu0 0.0
    %1447 = vmatprep.subr.mxu0 0.0
    %1448 = vmatpush1.msra.mxu0 0.0
    %1449 = vmatprep.subr.mxu0 0.0
    %1450 = vmatpush1.msra.mxu0 0.0
    %1451 = vmatprep.mubr.f32.mxu0 0.0
    %1452 = vmatmul.mubr.f32.gmra.mrb[0].mxu0 %v1385
    %v1453 = vpop.f32.mrb[0].mxu0
    %v1454 = vadd.f32 0.0, %v1453
    %v1455 = vpop.f32.mrb[0].mxu0
    %1456 = vdwg.mxu0
    %1457 = vmatprep.subr.mxu0 0.0
    %1458 = vmatpush1.msra.mxu0 %v639
    %1459 = vmatprep.subr.mxu0 0.0
    %1460 = vmatpush1.msra.mxu0 %v640
    %1461 = vmatprep.subr.mxu0 0.0
    %1462 = vmatpush1.msra.mxu0 %v641
    %1463 = vmatprep.subr.mxu0 0.0
    %1464 = vmatpush1.msra.mxu0 %v642
    %1465 = vmatprep.subr.mxu0 0.0
    %1466 = vmatpush1.msra.mxu0 %v643
    %1467 = vmatprep.subr.mxu0 0.0
    %1468 = vmatpush1.msra.mxu0 %v644
    %1469 = vmatprep.subr.mxu0 0.0
    %1470 = vmatpush1.msra.mxu0 %v645
    %1471 = vmatprep.subr.mxu0 0.0
    %1472 = vmatpush1.msra.mxu0 %v646
    %1473 = vmatprep.subr.mxu0 0.0
    %1474 = vmatpush1.msra.mxu0 0.0
    %1475 = vmatprep.subr.mxu0 0.0
    %1476 = vmatpush1.msra.mxu0 0.0
    %1477 = vmatprep.subr.mxu0 0.0
    %1478 = vmatpush1.msra.mxu0 0.0
    %1479 = vmatprep.subr.mxu0 0.0
    %1480 = vmatpush1.msra.mxu0 0.0
    %1481 = vmatprep.subr.mxu0 0.0
    %1482 = vmatpush1.msra.mxu0 0.0
    %1483 = vmatprep.subr.mxu0 0.0
    %1484 = vmatpush1.msra.mxu0 0.0
    %1485 = vmatprep.subr.mxu0 0.0
    %1486 = vmatpush1.msra.mxu0 0.0
    %1487 = vmatprep.subr.mxu0 0.0
    %1488 = vmatpush1.msra.mxu0 0.0
    %1489 = vmatprep.subr.mxu0 0.0
    %1490 = vmatpush1.msra.mxu0 0.0
    %1491 = vmatprep.subr.mxu0 0.0
    %1492 = vmatpush1.msra.mxu0 0.0
    %1493 = vmatprep.subr.mxu0 0.0
    %1494 = vmatpush1.msra.mxu0 0.0
    %1495 = vmatprep.subr.mxu0 0.0
    %1496 = vmatpush1.msra.mxu0 0.0
    %1497 = vmatprep.subr.mxu0 0.0
    %1498 = vmatpush1.msra.mxu0 0.0
    %1499 = vmatprep.subr.mxu0 0.0
    %1500 = vmatpush1.msra.mxu0 0.0
    %1501 = vmatprep.subr.mxu0 0.0
    %1502 = vmatpush1.msra.mxu0 0.0
    %1503 = vmatprep.subr.mxu0 0.0
    %1504 = vmatpush1.msra.mxu0 0.0
    %1505 = vmatprep.subr.mxu0 0.0
    %1506 = vmatpush1.msra.mxu0 0.0
    %1507 = vmatprep.subr.mxu0 0.0
    %1508 = vmatpush1.msra.mxu0 0.0
    %1509 = vmatprep.subr.mxu0 0.0
    %1510 = vmatpush1.msra.mxu0 0.0
    %1511 = vmatprep.subr.mxu0 0.0
    %1512 = vmatpush1.msra.mxu0 0.0
    %1513 = vmatprep.subr.mxu0 0.0
    %1514 = vmatpush1.msra.mxu0 0.0
    %1515 = vmatprep.subr.mxu0 0.0
    %1516 = vmatpush1.msra.mxu0 0.0
    %1517 = vmatprep.subr.mxu0 0.0
    %1518 = vmatpush1.msra.mxu0 0.0
    %1519 = vmatprep.subr.mxu0 0.0
    %1520 = vmatpush1.msra.mxu0 0.0
    %1521 = vmatprep.mubr.f32.mxu0 0.0
    %1522 = vmatmul.mubr.f32.gmra.mrb[0].mxu0 %v1385
    %v1523 = vpop.f32.mrb[0].mxu0
    %v1524 = vadd.f32 0.0, %v1523
    %v1525 = vpop.f32.mrb[0].mxu0
    %1526 = vdwg.mxu0
    %1527 = vmatprep.subr.mxu0 0.0
    %1528 = vmatpush1.msra.mxu0 %v647
    %1529 = vmatprep.subr.mxu0 0.0
    %1530 = vmatpush1.msra.mxu0 %v648
    %1531 = vmatprep.subr.mxu0 0.0
    %1532 = vmatpush1.msra.mxu0 %v649
    %1533 = vmatprep.subr.mxu0 0.0
    %1534 = vmatpush1.msra.mxu0 %v650
    %1535 = vmatprep.subr.mxu0 0.0
    %1536 = vmatpush1.msra.mxu0 %v651
    %1537 = vmatprep.subr.mxu0 0.0
    %1538 = vmatpush1.msra.mxu0 %v652
    %1539 = vmatprep.subr.mxu0 0.0
    %1540 = vmatpush1.msra.mxu0 %v653
    %1541 = vmatprep.subr.mxu0 0.0
    %1542 = vmatpush1.msra.mxu0 %v654
    %1543 = vmatprep.subr.mxu0 0.0
    %1544 = vmatpush1.msra.mxu0 0.0
    %1545 = vmatprep.subr.mxu0 0.0
    %1546 = vmatpush1.msra.mxu0 0.0
    %1547 = vmatprep.subr.mxu0 0.0
    %1548 = vmatpush1.msra.mxu0 0.0
    %1549 = vmatprep.subr.mxu0 0.0
    %1550 = vmatpush1.msra.mxu0 0.0
    %1551 = vmatprep.subr.mxu0 0.0
    %1552 = vmatpush1.msra.mxu0 0.0
    %1553 = vmatprep.subr.mxu0 0.0
    %1554 = vmatpush1.msra.mxu0 0.0
    %1555 = vmatprep.subr.mxu0 0.0
    %1556 = vmatpush1.msra.mxu0 0.0
    %1557 = vmatprep.subr.mxu0 0.0
    %1558 = vmatpush1.msra.mxu0 0.0
    %1559 = vmatprep.subr.mxu0 0.0
    %1560 = vmatpush1.msra.mxu0 0.0
    %1561 = vmatprep.subr.mxu0 0.0
    %1562 = vmatpush1.msra.mxu0 0.0
    %1563 = vmatprep.subr.mxu0 0.0
    %1564 = vmatpush1.msra.mxu0 0.0
    %1565 = vmatprep.subr.mxu0 0.0
    %1566 = vmatpush1.msra.mxu0 0.0
    %1567 = vmatprep.subr.mxu0 0.0
    %1568 = vmatpush1.msra.mxu0 0.0
    %1569 = vmatprep.subr.mxu0 0.0
    %1570 = vmatpush1.msra.mxu0 0.0
    %1571 = vmatprep.subr.mxu0 0.0
    %1572 = vmatpush1.msra.mxu0 0.0
    %1573 = vmatprep.subr.mxu0 0.0
    %1574 = vmatpush1.msra.mxu0 0.0
    %1575 = vmatprep.subr.mxu0 0.0
    %1576 = vmatpush1.msra.mxu0 0.0
    %1577 = vmatprep.subr.mxu0 0.0
    %1578 = vmatpush1.msra.mxu0 0.0
    %1579 = vmatprep.subr.mxu0 0.0
    %1580 = vmatpush1.msra.mxu0 0.0
    %1581 = vmatprep.subr.mxu0 0.0
    %1582 = vmatpush1.msra.mxu0 0.0
    %1583 = vmatprep.subr.mxu0 0.0
    %1584 = vmatpush1.msra.mxu0 0.0
    %1585 = vmatprep.subr.mxu0 0.0
    %1586 = vmatpush1.msra.mxu0 0.0
    %1587 = vmatprep.subr.mxu0 0.0
    %1588 = vmatpush1.msra.mxu0 0.0
    %1589 = vmatprep.subr.mxu0 0.0
    %1590 = vmatpush1.msra.mxu0 0.0
    %1591 = vmatprep.mubr.f32.mxu0 0.0
    %1592 = vmatmul.mubr.f32.gmra.mrb[0].mxu0 %v1385
    %v1593 = vpop.f32.mrb[0].mxu0
    %v1594 = vadd.f32 %v803, %v1593
    %v1595 = vpop.f32.mrb[0].mxu0
    %1596 = vdwg.mxu0
    %s1597 = scalar_lea.vmem [#allocation3], 24
    %v1598 = vld [vmem:[%s1597] sm:$0xff]
    %v1599 = vadd.f32 %v1598, %v1454
    %v1600 = vxor.u32 %v1599, 2147483648
    %v1601 = vmul.f32 %v1600, 1.442695
    %v1602 = vpow.pop %v1601
    %v1603 = vadd.f32 %v1602, 1.0
    %v1604 = vrcp.pop %v1603
    %v1605 = vmul.f32 1.0, %v1604
    %s1606 = scalar_lea.vmem [#allocation4], 24
    %v1607 = vld [vmem:[%s1606] sm:$0xff]
    %v1608 = vadd.f32 %v1607, %v1524
    %v1609 = vxor.u32 %v1608, 2147483648
    %v1610 = vmul.f32 %v1609, 1.442695
    %v1611 = vpow.pop %v1610
    %v1612 = vadd.f32 %v1611, 1.0
    %v1613 = vrcp.pop %v1612
    %v1614 = vmul.f32 1.0, %v1613
    %s1615 = scalar_lea.vmem [#allocation5], 24
    %v1616 = vld [vmem:[%s1615] sm:$0xff]
    %v1617 = vmul.f32 %v1605, %v1594
    %v1618 = vadd.f32 %v1616, %v1617
    %v1619 = vtanh.pop %v1618
    %v1620 = vsub.f32 1.0, %v1614
    %v1621 = vmul.f32 %v1620, %v1619
    %v1622 = vmul.f32 %v1614, %v1381
    %v1623 = vadd.f32 %v1621, %v1622
    %s1624 = scalar_lea.vmem [#allocation6], 24
    %1625 = vst.msk [vmem:[%s1624] sm:$0xff] %vm374, %v1623
    %v1627 = vsel %vm374, %v1623, 0
    %1629 = vmatprep.subr.mxu0 0.0
    %1630 = vmatpush1.msra.mxu0 %v631
    %1631 = vmatprep.subr.mxu0 0.0
    %1632 = vmatpush1.msra.mxu0 %v632
    %1633 = vmatprep.subr.mxu0 0.0
    %1634 = vmatpush1.msra.mxu0 %v633
    %1635 = vmatprep.subr.mxu0 0.0
    %1636 = vmatpush1.msra.mxu0 %v634
    %1637 = vmatprep.subr.mxu0 0.0
    %1638 = vmatpush1.msra.mxu0 %v635
    %1639 = vmatprep.subr.mxu0 0.0
    %1640 = vmatpush1.msra.mxu0 %v636
    %1641 = vmatprep.subr.mxu0 0.0
    %1642 = vmatpush1.msra.mxu0 %v637
    %1643 = vmatprep.subr.mxu0 0.0
    %1644 = vmatpush1.msra.mxu0 %v638
    %1645 = vmatprep.subr.mxu0 0.0
    %1646 = vmatpush1.msra.mxu0 0.0
    %1647 = vmatprep.subr.mxu0 0.0
    %1648 = vmatpush1.msra.mxu0 0.0
    %1649 = vmatprep.subr.mxu0 0.0
    %1650 = vmatpush1.msra.mxu0 0.0
    %1651 = vmatprep.subr.mxu0 0.0
    %1652 = vmatpush1.msra.mxu0 0.0
    %1653 = vmatprep.subr.mxu0 0.0
    %1654 = vmatpush1.msra.mxu0 0.0
    %1655 = vmatprep.subr.mxu0 0.0
    %1656 = vmatpush1.msra.mxu0 0.0
    %1657 = vmatprep.subr.mxu0 0.0
    %1658 = vmatpush1.msra.mxu0 0.0
    %1659 = vmatprep.subr.mxu0 0.0
    %1660 = vmatpush1.msra.mxu0 0.0
    %1661 = vmatprep.subr.mxu0 0.0
    %1662 = vmatpush1.msra.mxu0 0.0
    %1663 = vmatprep.subr.mxu0 0.0
    %1664 = vmatpush1.msra.mxu0 0.0
    %1665 = vmatprep.subr.mxu0 0.0
    %1666 = vmatpush1.msra.mxu0 0.0
    %1667 = vmatprep.subr.mxu0 0.0
    %1668 = vmatpush1.msra.mxu0 0.0
    %1669 = vmatprep.subr.mxu0 0.0
    %1670 = vmatpush1.msra.mxu0 0.0
    %1671 = vmatprep.subr.mxu0 0.0
    %1672 = vmatpush1.msra.mxu0 0.0
    %1673 = vmatprep.subr.mxu0 0.0
    %1674 = vmatpush1.msra.mxu0 0.0
    %1675 = vmatprep.subr.mxu0 0.0
    %1676 = vmatpush1.msra.mxu0 0.0
    %1677 = vmatprep.subr.mxu0 0.0
    %1678 = vmatpush1.msra.mxu0 0.0
    %1679 = vmatprep.subr.mxu0 0.0
    %1680 = vmatpush1.msra.mxu0 0.0
    %1681 = vmatprep.subr.mxu0 0.0
    %1682 = vmatpush1.msra.mxu0 0.0
    %1683 = vmatprep.subr.mxu0 0.0
    %1684 = vmatpush1.msra.mxu0 0.0
    %1685 = vmatprep.subr.mxu0 0.0
    %1686 = vmatpush1.msra.mxu0 0.0
    %1687 = vmatprep.subr.mxu0 0.0
    %1688 = vmatpush1.msra.mxu0 0.0
    %1689 = vmatprep.subr.mxu0 0.0
    %1690 = vmatpush1.msra.mxu0 0.0
    %1691 = vmatprep.subr.mxu0 0.0
    %1692 = vmatpush1.msra.mxu0 0.0
    %1693 = vmatprep.mubr.f32.mxu0 0.0
    %1694 = vmatmul.mubr.f32.gmra.mrb[0].mxu0 %v1627
    %v1695 = vpop.f32.mrb[0].mxu0
    %v1696 = vadd.f32 0.0, %v1695
    %v1697 = vpop.f32.mrb[0].mxu0
    %1698 = vdwg.mxu0
    %1699 = vmatprep.subr.mxu0 0.0
    %1700 = vmatpush1.msra.mxu0 %v639
    %1701 = vmatprep.subr.mxu0 0.0
    %1702 = vmatpush1.msra.mxu0 %v640
    %1703 = vmatprep.subr.mxu0 0.0
    %1704 = vmatpush1.msra.mxu0 %v641
    %1705 = vmatprep.subr.mxu0 0.0
    %1706 = vmatpush1.msra.mxu0 %v642
    %1707 = vmatprep.subr.mxu0 0.0
    %1708 = vmatpush1.msra.mxu0 %v643
    %1709 = vmatprep.subr.mxu0 0.0
    %1710 = vmatpush1.msra.mxu0 %v644
    %1711 = vmatprep.subr.mxu0 0.0
    %1712 = vmatpush1.msra.mxu0 %v645
    %1713 = vmatprep.subr.mxu0 0.0
    %1714 = vmatpush1.msra.mxu0 %v646
    %1715 = vmatprep.subr.mxu0 0.0
    %1716 = vmatpush1.msra.mxu0 0.0
    %1717 = vmatprep.subr.mxu0 0.0
    %1718 = vmatpush1.msra.mxu0 0.0
    %1719 = vmatprep.subr.mxu0 0.0
    %1720 = vmatpush1.msra.mxu0 0.0
    %1721 = vmatprep.subr.mxu0 0.0
    %1722 = vmatpush1.msra.mxu0 0.0
    %1723 = vmatprep.subr.mxu0 0.0
    %1724 = vmatpush1.msra.mxu0 0.0
    %1725 = vmatprep.subr.mxu0 0.0
    %1726 = vmatpush1.msra.mxu0 0.0
    %1727 = vmatprep.subr.mxu0 0.0
    %1728 = vmatpush1.msra.mxu0 0.0
    %1729 = vmatprep.subr.mxu0 0.0
    %1730 = vmatpush1.msra.mxu0 0.0
    %1731 = vmatprep.subr.mxu0 0.0
    %1732 = vmatpush1.msra.mxu0 0.0
    %1733 = vmatprep.subr.mxu0 0.0
    %1734 = vmatpush1.msra.mxu0 0.0
    %1735 = vmatprep.subr.mxu0 0.0
    %1736 = vmatpush1.msra.mxu0 0.0
    %1737 = vmatprep.subr.mxu0 0.0
    %1738 = vmatpush1.msra.mxu0 0.0
    %1739 = vmatprep.subr.mxu0 0.0
    %1740 = vmatpush1.msra.mxu0 0.0
    %1741 = vmatprep.subr.mxu0 0.0
    %1742 = vmatpush1.msra.mxu0 0.0
    %1743 = vmatprep.subr.mxu0 0.0
    %1744 = vmatpush1.msra.mxu0 0.0
    %1745 = vmatprep.subr.mxu0 0.0
    %1746 = vmatpush1.msra.mxu0 0.0
    %1747 = vmatprep.subr.mxu0 0.0
    %1748 = vmatpush1.msra.mxu0 0.0
    %1749 = vmatprep.subr.mxu0 0.0
    %1750 = vmatpush1.msra.mxu0 0.0
    %1751 = vmatprep.subr.mxu0 0.0
    %1752 = vmatpush1.msra.mxu0 0.0
    %1753 = vmatprep.subr.mxu0 0.0
    %1754 = vmatpush1.msra.mxu0 0.0
    %1755 = vmatprep.subr.mxu0 0.0
    %1756 = vmatpush1.msra.mxu0 0.0
    %1757 = vmatprep.subr.mxu0 0.0
    %1758 = vmatpush1.msra.mxu0 0.0
    %1759 = vmatprep.subr.mxu0 0.0
    %1760 = vmatpush1.msra.mxu0 0.0
    %1761 = vmatprep.subr.mxu0 0.0
    %1762 = vmatpush1.msra.mxu0 0.0
    %1763 = vmatprep.mubr.f32.mxu0 0.0
    %1764 = vmatmul.mubr.f32.gmra.mrb[0].mxu0 %v1627
    %v1765 = vpop.f32.mrb[0].mxu0
    %v1766 = vadd.f32 0.0, %v1765
    %v1767 = vpop.f32.mrb[0].mxu0
    %1768 = vdwg.mxu0
    %1769 = vmatprep.subr.mxu0 0.0
    %1770 = vmatpush1.msra.mxu0 %v647
    %1771 = vmatprep.subr.mxu0 0.0
    %1772 = vmatpush1.msra.mxu0 %v648
    %1773 = vmatprep.subr.mxu0 0.0
    %1774 = vmatpush1.msra.mxu0 %v649
    %1775 = vmatprep.subr.mxu0 0.0
    %1776 = vmatpush1.msra.mxu0 %v650
    %1777 = vmatprep.subr.mxu0 0.0
    %1778 = vmatpush1.msra.mxu0 %v651
    %1779 = vmatprep.subr.mxu0 0.0
    %1780 = vmatpush1.msra.mxu0 %v652
    %1781 = vmatprep.subr.mxu0 0.0
    %1782 = vmatpush1.msra.mxu0 %v653
    %1783 = vmatprep.subr.mxu0 0.0
    %1784 = vmatpush1.msra.mxu0 %v654
    %1785 = vmatprep.subr.mxu0 0.0
    %1786 = vmatpush1.msra.mxu0 0.0
    %1787 = vmatprep.subr.mxu0 0.0
    %1788 = vmatpush1.msra.mxu0 0.0
    %1789 = vmatprep.subr.mxu0 0.0
    %1790 = vmatpush1.msra.mxu0 0.0
    %1791 = vmatprep.subr.mxu0 0.0
    %1792 = vmatpush1.msra.mxu0 0.0
    %1793 = vmatprep.subr.mxu0 0.0
    %1794 = vmatpush1.msra.mxu0 0.0
    %1795 = vmatprep.subr.mxu0 0.0
    %1796 = vmatpush1.msra.mxu0 0.0
    %1797 = vmatprep.subr.mxu0 0.0
    %1798 = vmatpush1.msra.mxu0 0.0
    %1799 = vmatprep.subr.mxu0 0.0
    %1800 = vmatpush1.msra.mxu0 0.0
    %1801 = vmatprep.subr.mxu0 0.0
    %1802 = vmatpush1.msra.mxu0 0.0
    %1803 = vmatprep.subr.mxu0 0.0
    %1804 = vmatpush1.msra.mxu0 0.0
    %1805 = vmatprep.subr.mxu0 0.0
    %1806 = vmatpush1.msra.mxu0 0.0
    %1807 = vmatprep.subr.mxu0 0.0
    %1808 = vmatpush1.msra.mxu0 0.0
    %1809 = vmatprep.subr.mxu0 0.0
    %1810 = vmatpush1.msra.mxu0 0.0
    %1811 = vmatprep.subr.mxu0 0.0
    %1812 = vmatpush1.msra.mxu0 0.0
    %1813 = vmatprep.subr.mxu0 0.0
    %1814 = vmatpush1.msra.mxu0 0.0
    %1815 = vmatprep.subr.mxu0 0.0
    %1816 = vmatpush1.msra.mxu0 0.0
    %1817 = vmatprep.subr.mxu0 0.0
    %1818 = vmatpush1.msra.mxu0 0.0
    %1819 = vmatprep.subr.mxu0 0.0
    %1820 = vmatpush1.msra.mxu0 0.0
    %1821 = vmatprep.subr.mxu0 0.0
    %1822 = vmatpush1.msra.mxu0 0.0
    %1823 = vmatprep.subr.mxu0 0.0
    %1824 = vmatpush1.msra.mxu0 0.0
    %1825 = vmatprep.subr.mxu0 0.0
    %1826 = vmatpush1.msra.mxu0 0.0
    %1827 = vmatprep.subr.mxu0 0.0
    %1828 = vmatpush1.msra.mxu0 0.0
    %1829 = vmatprep.subr.mxu0 0.0
    %1830 = vmatpush1.msra.mxu0 0.0
    %1831 = vmatprep.subr.mxu0 0.0
    %1832 = vmatpush1.msra.mxu0 0.0
    %1833 = vmatprep.mubr.f32.mxu0 0.0
    %1834 = vmatmul.mubr.f32.gmra.mrb[0].mxu0 %v1627
    %v1835 = vpop.f32.mrb[0].mxu0
    %v1836 = vadd.f32 %v803, %v1835
    %v1837 = vpop.f32.mrb[0].mxu0
    %1838 = vdwg.mxu0
    %s1839 = scalar_lea.vmem [#allocation3], 32
    %v1840 = vld [vmem:[%s1839] sm:$0xff]
    %v1841 = vadd.f32 %v1840, %v1696
    %v1842 = vxor.u32 %v1841, 2147483648
    %v1843 = vmul.f32 %v1842, 1.442695
    %v1844 = vpow.pop %v1843
    %v1845 = vadd.f32 %v1844, 1.0
    %v1846 = vrcp.pop %v1845
    %v1847 = vmul.f32 1.0, %v1846
    %s1848 = scalar_lea.vmem [#allocation4], 32
    %v1849 = vld [vmem:[%s1848] sm:$0xff]
    %v1850 = vadd.f32 %v1849, %v1766
    %v1851 = vxor.u32 %v1850, 2147483648
    %v1852 = vmul.f32 %v1851, 1.442695
    %v1853 = vpow.pop %v1852
    %v1854 = vadd.f32 %v1853, 1.0
    %v1855 = vrcp.pop %v1854
    %v1856 = vmul.f32 1.0, %v1855
    %s1857 = scalar_lea.vmem [#allocation5], 32
    %v1858 = vld [vmem:[%s1857] sm:$0xff]
    %v1859 = vmul.f32 %v1847, %v1836
    %v1860 = vadd.f32 %v1858, %v1859
    %v1861 = vtanh.pop %v1860
    %v1862 = vsub.f32 1.0, %v1856
    %v1863 = vmul.f32 %v1862, %v1861
    %v1864 = vmul.f32 %v1856, %v1623
    %v1865 = vadd.f32 %v1863, %v1864
    %s1866 = scalar_lea.vmem [#allocation6], 32
    %1867 = vst.msk [vmem:[%s1866] sm:$0xff] %vm374, %v1865
    %v1869 = vsel %vm374, %v1865, 0
    %1871 = vmatprep.subr.mxu0 0.0
    %1872 = vmatpush1.msra.mxu0 %v631
    %1873 = vmatprep.subr.mxu0 0.0
    %1874 = vmatpush1.msra.mxu0 %v632
    %1875 = vmatprep.subr.mxu0 0.0
    %1876 = vmatpush1.msra.mxu0 %v633
    %1877 = vmatprep.subr.mxu0 0.0
    %1878 = vmatpush1.msra.mxu0 %v634
    %1879 = vmatprep.subr.mxu0 0.0
    %1880 = vmatpush1.msra.mxu0 %v635
    %1881 = vmatprep.subr.mxu0 0.0
    %1882 = vmatpush1.msra.mxu0 %v636
    %1883 = vmatprep.subr.mxu0 0.0
    %1884 = vmatpush1.msra.mxu0 %v637
    %1885 = vmatprep.subr.mxu0 0.0
    %1886 = vmatpush1.msra.mxu0 %v638
    %1887 = vmatprep.subr.mxu0 0.0
    %1888 = vmatpush1.msra.mxu0 0.0
    %1889 = vmatprep.subr.mxu0 0.0
    %1890 = vmatpush1.msra.mxu0 0.0
    %1891 = vmatprep.subr.mxu0 0.0
    %1892 = vmatpush1.msra.mxu0 0.0
    %1893 = vmatprep.subr.mxu0 0.0
    %1894 = vmatpush1.msra.mxu0 0.0
    %1895 = vmatprep.subr.mxu0 0.0
    %1896 = vmatpush1.msra.mxu0 0.0
    %1897 = vmatprep.subr.mxu0 0.0
    %1898 = vmatpush1.msra.mxu0 0.0
    %1899 = vmatprep.subr.mxu0 0.0
    %1900 = vmatpush1.msra.mxu0 0.0
    %1901 = vmatprep.subr.mxu0 0.0
    %1902 = vmatpush1.msra.mxu0 0.0
    %1903 = vmatprep.subr.mxu0 0.0
    %1904 = vmatpush1.msra.mxu0 0.0
    %1905 = vmatprep.subr.mxu0 0.0
    %1906 = vmatpush1.msra.mxu0 0.0
    %1907 = vmatprep.subr.mxu0 0.0
    %1908 = vmatpush1.msra.mxu0 0.0
    %1909 = vmatprep.subr.mxu0 0.0
    %1910 = vmatpush1.msra.mxu0 0.0
    %1911 = vmatprep.subr.mxu0 0.0
    %1912 = vmatpush1.msra.mxu0 0.0
    %1913 = vmatprep.subr.mxu0 0.0
    %1914 = vmatpush1.msra.mxu0 0.0
    %1915 = vmatprep.subr.mxu0 0.0
    %1916 = vmatpush1.msra.mxu0 0.0
    %1917 = vmatprep.subr.mxu0 0.0
    %1918 = vmatpush1.msra.mxu0 0.0
    %1919 = vmatprep.subr.mxu0 0.0
    %1920 = vmatpush1.msra.mxu0 0.0
    %1921 = vmatprep.subr.mxu0 0.0
    %1922 = vmatpush1.msra.mxu0 0.0
    %1923 = vmatprep.subr.mxu0 0.0
    %1924 = vmatpush1.msra.mxu0 0.0
    %1925 = vmatprep.subr.mxu0 0.0
    %1926 = vmatpush1.msra.mxu0 0.0
    %1927 = vmatprep.subr.mxu0 0.0
    %1928 = vmatpush1.msra.mxu0 0.0
    %1929 = vmatprep.subr.mxu0 0.0
    %1930 = vmatpush1.msra.mxu0 0.0
    %1931 = vmatprep.subr.mxu0 0.0
    %1932 = vmatpush1.msra.mxu0 0.0
    %1933 = vmatprep.subr.mxu0 0.0
    %1934 = vmatpush1.msra.mxu0 0.0
    %1935 = vmatprep.mubr.f32.mxu0 0.0
    %1936 = vmatmul.mubr.f32.gmra.mrb[0].mxu0 %v1869
    %v1937 = vpop.f32.mrb[0].mxu0
    %v1938 = vadd.f32 0.0, %v1937
    %v1939 = vpop.f32.mrb[0].mxu0
    %1940 = vdwg.mxu0
    %1941 = vmatprep.subr.mxu0 0.0
    %1942 = vmatpush1.msra.mxu0 %v639
    %1943 = vmatprep.subr.mxu0 0.0
    %1944 = vmatpush1.msra.mxu0 %v640
    %1945 = vmatprep.subr.mxu0 0.0
    %1946 = vmatpush1.msra.mxu0 %v641
    %1947 = vmatprep.subr.mxu0 0.0
    %1948 = vmatpush1.msra.mxu0 %v642
    %1949 = vmatprep.subr.mxu0 0.0
    %1950 = vmatpush1.msra.mxu0 %v643
    %1951 = vmatprep.subr.mxu0 0.0
    %1952 = vmatpush1.msra.mxu0 %v644
    %1953 = vmatprep.subr.mxu0 0.0
    %1954 = vmatpush1.msra.mxu0 %v645
    %1955 = vmatprep.subr.mxu0 0.0
    %1956 = vmatpush1.msra.mxu0 %v646
    %1957 = vmatprep.subr.mxu0 0.0
    %1958 = vmatpush1.msra.mxu0 0.0
    %1959 = vmatprep.subr.mxu0 0.0
    %1960 = vmatpush1.msra.mxu0 0.0
    %1961 = vmatprep.subr.mxu0 0.0
    %1962 = vmatpush1.msra.mxu0 0.0
    %1963 = vmatprep.subr.mxu0 0.0
    %1964 = vmatpush1.msra.mxu0 0.0
    %1965 = vmatprep.subr.mxu0 0.0
    %1966 = vmatpush1.msra.mxu0 0.0
    %1967 = vmatprep.subr.mxu0 0.0
    %1968 = vmatpush1.msra.mxu0 0.0
    %1969 = vmatprep.subr.mxu0 0.0
    %1970 = vmatpush1.msra.mxu0 0.0
    %1971 = vmatprep.subr.mxu0 0.0
    %1972 = vmatpush1.msra.mxu0 0.0
    %1973 = vmatprep.subr.mxu0 0.0
    %1974 = vmatpush1.msra.mxu0 0.0
    %1975 = vmatprep.subr.mxu0 0.0
    %1976 = vmatpush1.msra.mxu0 0.0
    %1977 = vmatprep.subr.mxu0 0.0
    %1978 = vmatpush1.msra.mxu0 0.0
    %1979 = vmatprep.subr.mxu0 0.0
    %1980 = vmatpush1.msra.mxu0 0.0
    %1981 = vmatprep.subr.mxu0 0.0
    %1982 = vmatpush1.msra.mxu0 0.0
    %1983 = vmatprep.subr.mxu0 0.0
    %1984 = vmatpush1.msra.mxu0 0.0
    %1985 = vmatprep.subr.mxu0 0.0
    %1986 = vmatpush1.msra.mxu0 0.0
    %1987 = vmatprep.subr.mxu0 0.0
    %1988 = vmatpush1.msra.mxu0 0.0
    %1989 = vmatprep.subr.mxu0 0.0
    %1990 = vmatpush1.msra.mxu0 0.0
    %1991 = vmatprep.subr.mxu0 0.0
    %1992 = vmatpush1.msra.mxu0 0.0
    %1993 = vmatprep.subr.mxu0 0.0
    %1994 = vmatpush1.msra.mxu0 0.0
    %1995 = vmatprep.subr.mxu0 0.0
    %1996 = vmatpush1.msra.mxu0 0.0
    %1997 = vmatprep.subr.mxu0 0.0
    %1998 = vmatpush1.msra.mxu0 0.0
    %1999 = vmatprep.subr.mxu0 0.0
    %2000 = vmatpush1.msra.mxu0 0.0
    %2001 = vmatprep.subr.mxu0 0.0
    %2002 = vmatpush1.msra.mxu0 0.0
    %2003 = vmatprep.subr.mxu0 0.0
    %2004 = vmatpush1.msra.mxu0 0.0
    %2005 = vmatprep.mubr.f32.mxu0 0.0
    %2006 = vmatmul.mubr.f32.gmra.mrb[0].mxu0 %v1869
    %v2007 = vpop.f32.mrb[0].mxu0
    %v2008 = vadd.f32 0.0, %v2007
    %v2009 = vpop.f32.mrb[0].mxu0
    %2010 = vdwg.mxu0
    %2011 = vmatprep.subr.mxu0 0.0
    %2012 = vmatpush1.msra.mxu0 %v647
    %2013 = vmatprep.subr.mxu0 0.0
    %2014 = vmatpush1.msra.mxu0 %v648
    %2015 = vmatprep.subr.mxu0 0.0
    %2016 = vmatpush1.msra.mxu0 %v649
    %2017 = vmatprep.subr.mxu0 0.0
    %2018 = vmatpush1.msra.mxu0 %v650
    %2019 = vmatprep.subr.mxu0 0.0
    %2020 = vmatpush1.msra.mxu0 %v651
    %2021 = vmatprep.subr.mxu0 0.0
    %2022 = vmatpush1.msra.mxu0 %v652
    %2023 = vmatprep.subr.mxu0 0.0
    %2024 = vmatpush1.msra.mxu0 %v653
    %2025 = vmatprep.subr.mxu0 0.0
    %2026 = vmatpush1.msra.mxu0 %v654
    %2027 = vmatprep.subr.mxu0 0.0
    %2028 = vmatpush1.msra.mxu0 0.0
    %2029 = vmatprep.subr.mxu0 0.0
    %2030 = vmatpush1.msra.mxu0 0.0
    %2031 = vmatprep.subr.mxu0 0.0
    %2032 = vmatpush1.msra.mxu0 0.0
    %2033 = vmatprep.subr.mxu0 0.0
    %2034 = vmatpush1.msra.mxu0 0.0
    %2035 = vmatprep.subr.mxu0 0.0
    %2036 = vmatpush1.msra.mxu0 0.0
    %2037 = vmatprep.subr.mxu0 0.0
    %2038 = vmatpush1.msra.mxu0 0.0
    %2039 = vmatprep.subr.mxu0 0.0
    %2040 = vmatpush1.msra.mxu0 0.0
    %2041 = vmatprep.subr.mxu0 0.0
    %2042 = vmatpush1.msra.mxu0 0.0
    %2043 = vmatprep.subr.mxu0 0.0
    %2044 = vmatpush1.msra.mxu0 0.0
    %2045 = vmatprep.subr.mxu0 0.0
    %2046 = vmatpush1.msra.mxu0 0.0
    %2047 = vmatprep.subr.mxu0 0.0
    %2048 = vmatpush1.msra.mxu0 0.0
    %2049 = vmatprep.subr.mxu0 0.0
    %2050 = vmatpush1.msra.mxu0 0.0
    %2051 = vmatprep.subr.mxu0 0.0
    %2052 = vmatpush1.msra.mxu0 0.0
    %2053 = vmatprep.subr.mxu0 0.0
    %2054 = vmatpush1.msra.mxu0 0.0
    %2055 = vmatprep.subr.mxu0 0.0
    %2056 = vmatpush1.msra.mxu0 0.0
    %2057 = vmatprep.subr.mxu0 0.0
    %2058 = vmatpush1.msra.mxu0 0.0
    %2059 = vmatprep.subr.mxu0 0.0
    %2060 = vmatpush1.msra.mxu0 0.0
    %2061 = vmatprep.subr.mxu0 0.0
    %2062 = vmatpush1.msra.mxu0 0.0
    %2063 = vmatprep.subr.mxu0 0.0
    %2064 = vmatpush1.msra.mxu0 0.0
    %2065 = vmatprep.subr.mxu0 0.0
    %2066 = vmatpush1.msra.mxu0 0.0
    %2067 = vmatprep.subr.mxu0 0.0
    %2068 = vmatpush1.msra.mxu0 0.0
    %2069 = vmatprep.subr.mxu0 0.0
    %2070 = vmatpush1.msra.mxu0 0.0
    %2071 = vmatprep.subr.mxu0 0.0
    %2072 = vmatpush1.msra.mxu0 0.0
    %2073 = vmatprep.subr.mxu0 0.0
    %2074 = vmatpush1.msra.mxu0 0.0
    %2075 = vmatprep.mubr.f32.mxu0 0.0
    %2076 = vmatmul.mubr.f32.gmra.mrb[0].mxu0 %v1869
    %v2077 = vpop.f32.mrb[0].mxu0
    %v2078 = vadd.f32 %v803, %v2077
    %v2079 = vpop.f32.mrb[0].mxu0
    %2080 = vdwg.mxu0
    %s2081 = scalar_lea.vmem [#allocation3], 40
    %v2082 = vld [vmem:[%s2081] sm:$0xff]
    %v2083 = vadd.f32 %v2082, %v1938
    %v2084 = vxor.u32 %v2083, 2147483648
    %v2085 = vmul.f32 %v2084, 1.442695
    %v2086 = vpow.pop %v2085
    %v2087 = vadd.f32 %v2086, 1.0
    %v2088 = vrcp.pop %v2087
    %v2089 = vmul.f32 1.0, %v2088
    %s2090 = scalar_lea.vmem [#allocation4], 40
    %v2091 = vld [vmem:[%s2090] sm:$0xff]
    %v2092 = vadd.f32 %v2091, %v2008
    %v2093 = vxor.u32 %v2092, 2147483648
    %v2094 = vmul.f32 %v2093, 1.442695
    %v2095 = vpow.pop %v2094
    %v2096 = vadd.f32 %v2095, 1.0
    %v2097 = vrcp.pop %v2096
    %v2098 = vmul.f32 1.0, %v2097
    %s2099 = scalar_lea.vmem [#allocation5], 40
    %v2100 = vld [vmem:[%s2099] sm:$0xff]
    %v2101 = vmul.f32 %v2089, %v2078
    %v2102 = vadd.f32 %v2100, %v2101
    %v2103 = vtanh.pop %v2102
    %v2104 = vsub.f32 1.0, %v2098
    %v2105 = vmul.f32 %v2104, %v2103
    %v2106 = vmul.f32 %v2098, %v1865
    %v2107 = vadd.f32 %v2105, %v2106
    %s2108 = scalar_lea.vmem [#allocation6], 40
    %2109 = vst.msk [vmem:[%s2108] sm:$0xff] %vm374, %v2107
    %v2111 = vsel %vm374, %v2107, 0
    %2113 = vmatprep.subr.mxu0 0.0
    %2114 = vmatpush1.msra.mxu0 %v631
    %2115 = vmatprep.subr.mxu0 0.0
    %2116 = vmatpush1.msra.mxu0 %v632
    %2117 = vmatprep.subr.mxu0 0.0
    %2118 = vmatpush1.msra.mxu0 %v633
    %2119 = vmatprep.subr.mxu0 0.0
    %2120 = vmatpush1.msra.mxu0 %v634
    %2121 = vmatprep.subr.mxu0 0.0
    %2122 = vmatpush1.msra.mxu0 %v635
    %2123 = vmatprep.subr.mxu0 0.0
    %2124 = vmatpush1.msra.mxu0 %v636
    %2125 = vmatprep.subr.mxu0 0.0
    %2126 = vmatpush1.msra.mxu0 %v637
    %2127 = vmatprep.subr.mxu0 0.0
    %2128 = vmatpush1.msra.mxu0 %v638
    %2129 = vmatprep.subr.mxu0 0.0
    %2130 = vmatpush1.msra.mxu0 0.0
    %2131 = vmatprep.subr.mxu0 0.0
    %2132 = vmatpush1.msra.mxu0 0.0
    %2133 = vmatprep.subr.mxu0 0.0
    %2134 = vmatpush1.msra.mxu0 0.0
    %2135 = vmatprep.subr.mxu0 0.0
    %2136 = vmatpush1.msra.mxu0 0.0
    %2137 = vmatprep.subr.mxu0 0.0
    %2138 = vmatpush1.msra.mxu0 0.0
    %2139 = vmatprep.subr.mxu0 0.0
    %2140 = vmatpush1.msra.mxu0 0.0
    %2141 = vmatprep.subr.mxu0 0.0
    %2142 = vmatpush1.msra.mxu0 0.0
    %2143 = vmatprep.subr.mxu0 0.0
    %2144 = vmatpush1.msra.mxu0 0.0
    %2145 = vmatprep.subr.mxu0 0.0
    %2146 = vmatpush1.msra.mxu0 0.0
    %2147 = vmatprep.subr.mxu0 0.0
    %2148 = vmatpush1.msra.mxu0 0.0
    %2149 = vmatprep.subr.mxu0 0.0
    %2150 = vmatpush1.msra.mxu0 0.0
    %2151 = vmatprep.subr.mxu0 0.0
    %2152 = vmatpush1.msra.mxu0 0.0
    %2153 = vmatprep.subr.mxu0 0.0
    %2154 = vmatpush1.msra.mxu0 0.0
    %2155 = vmatprep.subr.mxu0 0.0
    %2156 = vmatpush1.msra.mxu0 0.0
    %2157 = vmatprep.subr.mxu0 0.0
    %2158 = vmatpush1.msra.mxu0 0.0
    %2159 = vmatprep.subr.mxu0 0.0
    %2160 = vmatpush1.msra.mxu0 0.0
    %2161 = vmatprep.subr.mxu0 0.0
    %2162 = vmatpush1.msra.mxu0 0.0
    %2163 = vmatprep.subr.mxu0 0.0
    %2164 = vmatpush1.msra.mxu0 0.0
    %2165 = vmatprep.subr.mxu0 0.0
    %2166 = vmatpush1.msra.mxu0 0.0
    %2167 = vmatprep.subr.mxu0 0.0
    %2168 = vmatpush1.msra.mxu0 0.0
    %2169 = vmatprep.subr.mxu0 0.0
    %2170 = vmatpush1.msra.mxu0 0.0
    %2171 = vmatprep.subr.mxu0 0.0
    %2172 = vmatpush1.msra.mxu0 0.0
    %2173 = vmatprep.subr.mxu0 0.0
    %2174 = vmatpush1.msra.mxu0 0.0
    %2175 = vmatprep.subr.mxu0 0.0
    %2176 = vmatpush1.msra.mxu0 0.0
    %2177 = vmatprep.mubr.f32.mxu0 0.0
    %2178 = vmatmul.mubr.f32.gmra.mrb[0].mxu0 %v2111
    %v2179 = vpop.f32.mrb[0].mxu0
    %v2180 = vadd.f32 0.0, %v2179
    %v2181 = vpop.f32.mrb[0].mxu0
    %2182 = vdwg.mxu0
    %2183 = vmatprep.subr.mxu0 0.0
    %2184 = vmatpush1.msra.mxu0 %v639
    %2185 = vmatprep.subr.mxu0 0.0
    %2186 = vmatpush1.msra.mxu0 %v640
    %2187 = vmatprep.subr.mxu0 0.0
    %2188 = vmatpush1.msra.mxu0 %v641
    %2189 = vmatprep.subr.mxu0 0.0
    %2190 = vmatpush1.msra.mxu0 %v642
    %2191 = vmatprep.subr.mxu0 0.0
    %2192 = vmatpush1.msra.mxu0 %v643
    %2193 = vmatprep.subr.mxu0 0.0
    %2194 = vmatpush1.msra.mxu0 %v644
    %2195 = vmatprep.subr.mxu0 0.0
    %2196 = vmatpush1.msra.mxu0 %v645
    %2197 = vmatprep.subr.mxu0 0.0
    %2198 = vmatpush1.msra.mxu0 %v646
    %2199 = vmatprep.subr.mxu0 0.0
    %2200 = vmatpush1.msra.mxu0 0.0
    %2201 = vmatprep.subr.mxu0 0.0
    %2202 = vmatpush1.msra.mxu0 0.0
    %2203 = vmatprep.subr.mxu0 0.0
    %2204 = vmatpush1.msra.mxu0 0.0
    %2205 = vmatprep.subr.mxu0 0.0
    %2206 = vmatpush1.msra.mxu0 0.0
    %2207 = vmatprep.subr.mxu0 0.0
    %2208 = vmatpush1.msra.mxu0 0.0
    %2209 = vmatprep.subr.mxu0 0.0
    %2210 = vmatpush1.msra.mxu0 0.0
    %2211 = vmatprep.subr.mxu0 0.0
    %2212 = vmatpush1.msra.mxu0 0.0
    %2213 = vmatprep.subr.mxu0 0.0
    %2214 = vmatpush1.msra.mxu0 0.0
    %2215 = vmatprep.subr.mxu0 0.0
    %2216 = vmatpush1.msra.mxu0 0.0
    %2217 = vmatprep.subr.mxu0 0.0
    %2218 = vmatpush1.msra.mxu0 0.0
    %2219 = vmatprep.subr.mxu0 0.0
    %2220 = vmatpush1.msra.mxu0 0.0
    %2221 = vmatprep.subr.mxu0 0.0
    %2222 = vmatpush1.msra.mxu0 0.0
    %2223 = vmatprep.subr.mxu0 0.0
    %2224 = vmatpush1.msra.mxu0 0.0
    %2225 = vmatprep.subr.mxu0 0.0
    %2226 = vmatpush1.msra.mxu0 0.0
    %2227 = vmatprep.subr.mxu0 0.0
    %2228 = vmatpush1.msra.mxu0 0.0
    %2229 = vmatprep.subr.mxu0 0.0
    %2230 = vmatpush1.msra.mxu0 0.0
    %2231 = vmatprep.subr.mxu0 0.0
    %2232 = vmatpush1.msra.mxu0 0.0
    %2233 = vmatprep.subr.mxu0 0.0
    %2234 = vmatpush1.msra.mxu0 0.0
    %2235 = vmatprep.subr.mxu0 0.0
    %2236 = vmatpush1.msra.mxu0 0.0
    %2237 = vmatprep.subr.mxu0 0.0
    %2238 = vmatpush1.msra.mxu0 0.0
    %2239 = vmatprep.subr.mxu0 0.0
    %2240 = vmatpush1.msra.mxu0 0.0
    %2241 = vmatprep.subr.mxu0 0.0
    %2242 = vmatpush1.msra.mxu0 0.0
    %2243 = vmatprep.subr.mxu0 0.0
    %2244 = vmatpush1.msra.mxu0 0.0
    %2245 = vmatprep.subr.mxu0 0.0
    %2246 = vmatpush1.msra.mxu0 0.0
    %2247 = vmatprep.mubr.f32.mxu0 0.0
    %2248 = vmatmul.mubr.f32.gmra.mrb[0].mxu0 %v2111
    %v2249 = vpop.f32.mrb[0].mxu0
    %v2250 = vadd.f32 0.0, %v2249
    %v2251 = vpop.f32.mrb[0].mxu0
    %2252 = vdwg.mxu0
    %2253 = vmatprep.subr.mxu0 0.0
    %2254 = vmatpush1.msra.mxu0 %v647
    %2255 = vmatprep.subr.mxu0 0.0
    %2256 = vmatpush1.msra.mxu0 %v648
    %2257 = vmatprep.subr.mxu0 0.0
    %2258 = vmatpush1.msra.mxu0 %v649
    %2259 = vmatprep.subr.mxu0 0.0
    %2260 = vmatpush1.msra.mxu0 %v650
    %2261 = vmatprep.subr.mxu0 0.0
    %2262 = vmatpush1.msra.mxu0 %v651
    %2263 = vmatprep.subr.mxu0 0.0
    %2264 = vmatpush1.msra.mxu0 %v652
    %2265 = vmatprep.subr.mxu0 0.0
    %2266 = vmatpush1.msra.mxu0 %v653
    %2267 = vmatprep.subr.mxu0 0.0
    %2268 = vmatpush1.msra.mxu0 %v654
    %2269 = vmatprep.subr.mxu0 0.0
    %2270 = vmatpush1.msra.mxu0 0.0
    %2271 = vmatprep.subr.mxu0 0.0
    %2272 = vmatpush1.msra.mxu0 0.0
    %2273 = vmatprep.subr.mxu0 0.0
    %2274 = vmatpush1.msra.mxu0 0.0
    %2275 = vmatprep.subr.mxu0 0.0
    %2276 = vmatpush1.msra.mxu0 0.0
    %2277 = vmatprep.subr.mxu0 0.0
    %2278 = vmatpush1.msra.mxu0 0.0
    %2279 = vmatprep.subr.mxu0 0.0
    %2280 = vmatpush1.msra.mxu0 0.0
    %2281 = vmatprep.subr.mxu0 0.0
    %2282 = vmatpush1.msra.mxu0 0.0
    %2283 = vmatprep.subr.mxu0 0.0
    %2284 = vmatpush1.msra.mxu0 0.0
    %2285 = vmatprep.subr.mxu0 0.0
    %2286 = vmatpush1.msra.mxu0 0.0
    %2287 = vmatprep.subr.mxu0 0.0
    %2288 = vmatpush1.msra.mxu0 0.0
    %2289 = vmatprep.subr.mxu0 0.0
    %2290 = vmatpush1.msra.mxu0 0.0
    %2291 = vmatprep.subr.mxu0 0.0
    %2292 = vmatpush1.msra.mxu0 0.0
    %2293 = vmatprep.subr.mxu0 0.0
    %2294 = vmatpush1.msra.mxu0 0.0
    %2295 = vmatprep.subr.mxu0 0.0
    %2296 = vmatpush1.msra.mxu0 0.0
    %2297 = vmatprep.subr.mxu0 0.0
    %2298 = vmatpush1.msra.mxu0 0.0
    %2299 = vmatprep.subr.mxu0 0.0
    %2300 = vmatpush1.msra.mxu0 0.0
    %2301 = vmatprep.subr.mxu0 0.0
    %2302 = vmatpush1.msra.mxu0 0.0
    %2303 = vmatprep.subr.mxu0 0.0
    %2304 = vmatpush1.msra.mxu0 0.0
    %2305 = vmatprep.subr.mxu0 0.0
    %2306 = vmatpush1.msra.mxu0 0.0
    %2307 = vmatprep.subr.mxu0 0.0
    %2308 = vmatpush1.msra.mxu0 0.0
    %2309 = vmatprep.subr.mxu0 0.0
    %2310 = vmatpush1.msra.mxu0 0.0
    %2311 = vmatprep.subr.mxu0 0.0
    %2312 = vmatpush1.msra.mxu0 0.0
    %2313 = vmatprep.subr.mxu0 0.0
    %2314 = vmatpush1.msra.mxu0 0.0
    %2315 = vmatprep.subr.mxu0 0.0
    %2316 = vmatpush1.msra.mxu0 0.0
    %2317 = vmatprep.mubr.f32.mxu0 0.0
    %2318 = vmatmul.mubr.f32.gmra.mrb[0].mxu0 %v2111
    %v2319 = vpop.f32.mrb[0].mxu0
    %v2320 = vadd.f32 %v803, %v2319
    %v2321 = vpop.f32.mrb[0].mxu0
    %2322 = vdwg.mxu0
    %s2323 = scalar_lea.vmem [#allocation3], 48
    %v2324 = vld [vmem:[%s2323] sm:$0xff]
    %v2325 = vadd.f32 %v2324, %v2180
    %v2326 = vxor.u32 %v2325, 2147483648
    %v2327 = vmul.f32 %v2326, 1.442695
    %v2328 = vpow.pop %v2327
    %v2329 = vadd.f32 %v2328, 1.0
    %v2330 = vrcp.pop %v2329
    %v2331 = vmul.f32 1.0, %v2330
    %s2332 = scalar_lea.vmem [#allocation4], 48
    %v2333 = vld [vmem:[%s2332] sm:$0xff]
    %v2334 = vadd.f32 %v2333, %v2250
    %v2335 = vxor.u32 %v2334, 2147483648
    %v2336 = vmul.f32 %v2335, 1.442695
    %v2337 = vpow.pop %v2336
    %v2338 = vadd.f32 %v2337, 1.0
    %v2339 = vrcp.pop %v2338
    %v2340 = vmul.f32 1.0, %v2339
    %s2341 = scalar_lea.vmem [#allocation5], 48
    %v2342 = vld [vmem:[%s2341] sm:$0xff]
    %v2343 = vmul.f32 %v2331, %v2320
    %v2344 = vadd.f32 %v2342, %v2343
    %v2345 = vtanh.pop %v2344
    %v2346 = vsub.f32 1.0, %v2340
    %v2347 = vmul.f32 %v2346, %v2345
    %v2348 = vmul.f32 %v2340, %v2107
    %v2349 = vadd.f32 %v2347, %v2348
    %s2350 = scalar_lea.vmem [#allocation6], 48
    %2351 = vst.msk [vmem:[%s2350] sm:$0xff] %vm374, %v2349
    %v2353 = vsel %vm374, %v2349, 0
    %2355 = vmatprep.subr.mxu0 0.0
    %2356 = vmatpush1.msra.mxu0 %v631
    %2357 = vmatprep.subr.mxu0 0.0
    %2358 = vmatpush1.msra.mxu0 %v632
    %2359 = vmatprep.subr.mxu0 0.0
    %2360 = vmatpush1.msra.mxu0 %v633
    %2361 = vmatprep.subr.mxu0 0.0
    %2362 = vmatpush1.msra.mxu0 %v634
    %2363 = vmatprep.subr.mxu0 0.0
    %2364 = vmatpush1.msra.mxu0 %v635
    %2365 = vmatprep.subr.mxu0 0.0
    %2366 = vmatpush1.msra.mxu0 %v636
    %2367 = vmatprep.subr.mxu0 0.0
    %2368 = vmatpush1.msra.mxu0 %v637
    %2369 = vmatprep.subr.mxu0 0.0
    %2370 = vmatpush1.msra.mxu0 %v638
    %2371 = vmatprep.subr.mxu0 0.0
    %2372 = vmatpush1.msra.mxu0 0.0
    %2373 = vmatprep.subr.mxu0 0.0
    %2374 = vmatpush1.msra.mxu0 0.0
    %2375 = vmatprep.subr.mxu0 0.0
    %2376 = vmatpush1.msra.mxu0 0.0
    %2377 = vmatprep.subr.mxu0 0.0
    %2378 = vmatpush1.msra.mxu0 0.0
    %2379 = vmatprep.subr.mxu0 0.0
    %2380 = vmatpush1.msra.mxu0 0.0
    %2381 = vmatprep.subr.mxu0 0.0
    %2382 = vmatpush1.msra.mxu0 0.0
    %2383 = vmatprep.subr.mxu0 0.0
    %2384 = vmatpush1.msra.mxu0 0.0
    %2385 = vmatprep.subr.mxu0 0.0
    %2386 = vmatpush1.msra.mxu0 0.0
    %2387 = vmatprep.subr.mxu0 0.0
    %2388 = vmatpush1.msra.mxu0 0.0
    %2389 = vmatprep.subr.mxu0 0.0
    %2390 = vmatpush1.msra.mxu0 0.0
    %2391 = vmatprep.subr.mxu0 0.0
    %2392 = vmatpush1.msra.mxu0 0.0
    %2393 = vmatprep.subr.mxu0 0.0
    %2394 = vmatpush1.msra.mxu0 0.0
    %2395 = vmatprep.subr.mxu0 0.0
    %2396 = vmatpush1.msra.mxu0 0.0
    %2397 = vmatprep.subr.mxu0 0.0
    %2398 = vmatpush1.msra.mxu0 0.0
    %2399 = vmatprep.subr.mxu0 0.0
    %2400 = vmatpush1.msra.mxu0 0.0
    %2401 = vmatprep.subr.mxu0 0.0
    %2402 = vmatpush1.msra.mxu0 0.0
    %2403 = vmatprep.subr.mxu0 0.0
    %2404 = vmatpush1.msra.mxu0 0.0
    %2405 = vmatprep.subr.mxu0 0.0
    %2406 = vmatpush1.msra.mxu0 0.0
    %2407 = vmatprep.subr.mxu0 0.0
    %2408 = vmatpush1.msra.mxu0 0.0
    %2409 = vmatprep.subr.mxu0 0.0
    %2410 = vmatpush1.msra.mxu0 0.0
    %2411 = vmatprep.subr.mxu0 0.0
    %2412 = vmatpush1.msra.mxu0 0.0
    %2413 = vmatprep.subr.mxu0 0.0
    %2414 = vmatpush1.msra.mxu0 0.0
    %2415 = vmatprep.subr.mxu0 0.0
    %2416 = vmatpush1.msra.mxu0 0.0
    %2417 = vmatprep.subr.mxu0 0.0
    %2418 = vmatpush1.msra.mxu0 0.0
    %2419 = vmatprep.mubr.f32.mxu0 0.0
    %2420 = vmatmul.mubr.f32.gmra.mrb[0].mxu0 %v2353
    %v2421 = vpop.f32.mrb[0].mxu0
    %v2422 = vadd.f32 0.0, %v2421
    %v2423 = vpop.f32.mrb[0].mxu0
    %2424 = vdwg.mxu0
    %2425 = vmatprep.subr.mxu0 0.0
    %2426 = vmatpush1.msra.mxu0 %v639
    %2427 = vmatprep.subr.mxu0 0.0
    %2428 = vmatpush1.msra.mxu0 %v640
    %2429 = vmatprep.subr.mxu0 0.0
    %2430 = vmatpush1.msra.mxu0 %v641
    %2431 = vmatprep.subr.mxu0 0.0
    %2432 = vmatpush1.msra.mxu0 %v642
    %2433 = vmatprep.subr.mxu0 0.0
    %2434 = vmatpush1.msra.mxu0 %v643
    %2435 = vmatprep.subr.mxu0 0.0
    %2436 = vmatpush1.msra.mxu0 %v644
    %2437 = vmatprep.subr.mxu0 0.0
    %2438 = vmatpush1.msra.mxu0 %v645
    %2439 = vmatprep.subr.mxu0 0.0
    %2440 = vmatpush1.msra.mxu0 %v646
    %2441 = vmatprep.subr.mxu0 0.0
    %2442 = vmatpush1.msra.mxu0 0.0
    %2443 = vmatprep.subr.mxu0 0.0
    %2444 = vmatpush1.msra.mxu0 0.0
    %2445 = vmatprep.subr.mxu0 0.0
    %2446 = vmatpush1.msra.mxu0 0.0
    %2447 = vmatprep.subr.mxu0 0.0
    %2448 = vmatpush1.msra.mxu0 0.0
    %2449 = vmatprep.subr.mxu0 0.0
    %2450 = vmatpush1.msra.mxu0 0.0
    %2451 = vmatprep.subr.mxu0 0.0
    %2452 = vmatpush1.msra.mxu0 0.0
    %2453 = vmatprep.subr.mxu0 0.0
    %2454 = vmatpush1.msra.mxu0 0.0
    %2455 = vmatprep.subr.mxu0 0.0
    %2456 = vmatpush1.msra.mxu0 0.0
    %2457 = vmatprep.subr.mxu0 0.0
    %2458 = vmatpush1.msra.mxu0 0.0
    %2459 = vmatprep.subr.mxu0 0.0
    %2460 = vmatpush1.msra.mxu0 0.0
    %2461 = vmatprep.subr.mxu0 0.0
    %2462 = vmatpush1.msra.mxu0 0.0
    %2463 = vmatprep.subr.mxu0 0.0
    %2464 = vmatpush1.msra.mxu0 0.0
    %2465 = vmatprep.subr.mxu0 0.0
    %2466 = vmatpush1.msra.mxu0 0.0
    %2467 = vmatprep.subr.mxu0 0.0
    %2468 = vmatpush1.msra.mxu0 0.0
    %2469 = vmatprep.subr.mxu0 0.0
    %2470 = vmatpush1.msra.mxu0 0.0
    %2471 = vmatprep.subr.mxu0 0.0
    %2472 = vmatpush1.msra.mxu0 0.0
    %2473 = vmatprep.subr.mxu0 0.0
    %2474 = vmatpush1.msra.mxu0 0.0
    %2475 = vmatprep.subr.mxu0 0.0
    %2476 = vmatpush1.msra.mxu0 0.0
    %2477 = vmatprep.subr.mxu0 0.0
    %2478 = vmatpush1.msra.mxu0 0.0
    %2479 = vmatprep.subr.mxu0 0.0
    %2480 = vmatpush1.msra.mxu0 0.0
    %2481 = vmatprep.subr.mxu0 0.0
    %2482 = vmatpush1.msra.mxu0 0.0
    %2483 = vmatprep.subr.mxu0 0.0
    %2484 = vmatpush1.msra.mxu0 0.0
    %2485 = vmatprep.subr.mxu0 0.0
    %2486 = vmatpush1.msra.mxu0 0.0
    %2487 = vmatprep.subr.mxu0 0.0
    %2488 = vmatpush1.msra.mxu0 0.0
    %2489 = vmatprep.mubr.f32.mxu0 0.0
    %2490 = vmatmul.mubr.f32.gmra.mrb[0].mxu0 %v2353
    %v2491 = vpop.f32.mrb[0].mxu0
    %v2492 = vadd.f32 0.0, %v2491
    %v2493 = vpop.f32.mrb[0].mxu0
    %2494 = vdwg.mxu0
    %2495 = vmatprep.subr.mxu0 0.0
    %2496 = vmatpush1.msra.mxu0 %v647
    %2497 = vmatprep.subr.mxu0 0.0
    %2498 = vmatpush1.msra.mxu0 %v648
    %2499 = vmatprep.subr.mxu0 0.0
    %2500 = vmatpush1.msra.mxu0 %v649
    %2501 = vmatprep.subr.mxu0 0.0
    %2502 = vmatpush1.msra.mxu0 %v650
    %2503 = vmatprep.subr.mxu0 0.0
    %2504 = vmatpush1.msra.mxu0 %v651
    %2505 = vmatprep.subr.mxu0 0.0
    %2506 = vmatpush1.msra.mxu0 %v652
    %2507 = vmatprep.subr.mxu0 0.0
    %2508 = vmatpush1.msra.mxu0 %v653
    %2509 = vmatprep.subr.mxu0 0.0
    %2510 = vmatpush1.msra.mxu0 %v654
    %2511 = vmatprep.subr.mxu0 0.0
    %2512 = vmatpush1.msra.mxu0 0.0
    %2513 = vmatprep.subr.mxu0 0.0
    %2514 = vmatpush1.msra.mxu0 0.0
    %2515 = vmatprep.subr.mxu0 0.0
    %2516 = vmatpush1.msra.mxu0 0.0
    %2517 = vmatprep.subr.mxu0 0.0
    %2518 = vmatpush1.msra.mxu0 0.0
    %2519 = vmatprep.subr.mxu0 0.0
    %2520 = vmatpush1.msra.mxu0 0.0
    %2521 = vmatprep.subr.mxu0 0.0
    %2522 = vmatpush1.msra.mxu0 0.0
    %2523 = vmatprep.subr.mxu0 0.0
    %2524 = vmatpush1.msra.mxu0 0.0
    %2525 = vmatprep.subr.mxu0 0.0
    %2526 = vmatpush1.msra.mxu0 0.0
    %2527 = vmatprep.subr.mxu0 0.0
    %2528 = vmatpush1.msra.mxu0 0.0
    %2529 = vmatprep.subr.mxu0 0.0
    %2530 = vmatpush1.msra.mxu0 0.0
    %2531 = vmatprep.subr.mxu0 0.0
    %2532 = vmatpush1.msra.mxu0 0.0
    %2533 = vmatprep.subr.mxu0 0.0
    %2534 = vmatpush1.msra.mxu0 0.0
    %2535 = vmatprep.subr.mxu0 0.0
    %2536 = vmatpush1.msra.mxu0 0.0
    %2537 = vmatprep.subr.mxu0 0.0
    %2538 = vmatpush1.msra.mxu0 0.0
    %2539 = vmatprep.subr.mxu0 0.0
    %2540 = vmatpush1.msra.mxu0 0.0
    %2541 = vmatprep.subr.mxu0 0.0
    %2542 = vmatpush1.msra.mxu0 0.0
    %2543 = vmatprep.subr.mxu0 0.0
    %2544 = vmatpush1.msra.mxu0 0.0
    %2545 = vmatprep.subr.mxu0 0.0
    %2546 = vmatpush1.msra.mxu0 0.0
    %2547 = vmatprep.subr.mxu0 0.0
    %2548 = vmatpush1.msra.mxu0 0.0
    %2549 = vmatprep.subr.mxu0 0.0
    %2550 = vmatpush1.msra.mxu0 0.0
    %2551 = vmatprep.subr.mxu0 0.0
    %2552 = vmatpush1.msra.mxu0 0.0
    %2553 = vmatprep.subr.mxu0 0.0
    %2554 = vmatpush1.msra.mxu0 0.0
    %2555 = vmatprep.subr.mxu0 0.0
    %2556 = vmatpush1.msra.mxu0 0.0
    %2557 = vmatprep.subr.mxu0 0.0
    %2558 = vmatpush1.msra.mxu0 0.0
    %2559 = vmatprep.mubr.f32.mxu0 0.0
    %2560 = vmatmul.mubr.f32.gmra.mrb[0].mxu0 %v2353
    %v2561 = vpop.f32.mrb[0].mxu0
    %v2562 = vadd.f32 %v803, %v2561
    %v2563 = vpop.f32.mrb[0].mxu0
    %2564 = vdwg.mxu0
    %s2565 = scalar_lea.vmem [#allocation3], 56
    %v2566 = vld [vmem:[%s2565] sm:$0xff]
    %v2567 = vadd.f32 %v2566, %v2422
    %v2568 = vxor.u32 %v2567, 2147483648
    %v2569 = vmul.f32 %v2568, 1.442695
    %v2570 = vpow.pop %v2569
    %v2571 = vadd.f32 %v2570, 1.0
    %v2572 = vrcp.pop %v2571
    %v2573 = vmul.f32 1.0, %v2572
    %s2574 = scalar_lea.vmem [#allocation4], 56
    %v2575 = vld [vmem:[%s2574] sm:$0xff]
    %v2576 = vadd.f32 %v2575, %v2492
    %v2577 = vxor.u32 %v2576, 2147483648
    %v2578 = vmul.f32 %v2577, 1.442695
    %v2579 = vpow.pop %v2578
    %v2580 = vadd.f32 %v2579, 1.0
    %v2581 = vrcp.pop %v2580
    %v2582 = vmul.f32 1.0, %v2581
    %s2583 = scalar_lea.vmem [#allocation5], 56
    %v2584 = vld [vmem:[%s2583] sm:$0xff]
    %v2585 = vmul.f32 %v2573, %v2562
    %v2586 = vadd.f32 %v2584, %v2585
    %v2587 = vtanh.pop %v2586
    %v2588 = vsub.f32 1.0, %v2582
    %v2589 = vmul.f32 %v2588, %v2587
    %v2590 = vmul.f32 %v2582, %v2349
    %v2591 = vadd.f32 %v2589, %v2590
    %s2592 = scalar_lea.vmem [#allocation6], 56
    %2593 = vst.msk [vmem:[%s2592] sm:$0xff] %vm374, %v2591
    %v2594 = vld [vmem:[#allocation6] sm:$0xff]
    %v2595 = vld [vmem:[#allocation6 + $0x8] sm:$0xff]
    %v2596 = vld [vmem:[#allocation6 + $0x10] sm:$0xff]
    %v2597 = vld [vmem:[#allocation6 + $0x18] sm:$0xff]
    %v2598 = vld [vmem:[#allocation6 + $0x20] sm:$0xff]
    %v2599 = vld [vmem:[#allocation6 + $0x28] sm:$0xff]
    %v2600 = vld [vmem:[#allocation6 + $0x30] sm:$0xff]
    %v2601 = vld [vmem:[#allocation6 + $0x38] sm:$0xff]
    %v2602 = vld [vmem:[%s1] sm:$0xff]
    %v2603 = vld [vmem:[%s1 + $0x8] sm:$0xff]
    %v2604 = vld [vmem:[%s1 + $0x10] sm:$0xff]
    %v2605 = vld [vmem:[%s1 + $0x18] sm:$0xff]
    %v2606 = vld [vmem:[%s1 + $0x20] sm:$0xff]
    %v2607 = vld [vmem:[%s1 + $0x28] sm:$0xff]
    %v2608 = vld [vmem:[%s1 + $0x30] sm:$0xff]
    %v2609 = vld [vmem:[%s1 + $0x38] sm:$0xff]
    %v2610 = vld [vmem:[%s15] sm:$0x1]
    %v2612 = vlaneseq
    %v2613 = vshrl.u32 %v2612, 7
    %v2614 = vsub.s32 0, %v2613
    %v2615 = vrot.slane %v2610, %v2614
    %v2617 = vmul.f32 %v2594, %v2615
    %v2618 = vmul.f32 %v2595, %v2615
    %v2619 = vmul.f32 %v2596, %v2615
    %v2620 = vmul.f32 %v2597, %v2615
    %v2621 = vmul.f32 %v2598, %v2615
    %v2622 = vmul.f32 %v2599, %v2615
    %v2623 = vmul.f32 %v2600, %v2615
    %v2624 = vmul.f32 %v2601, %v2615
    %v2625 = vsel %vm374, %v2617, 0.0
    %2626 = vadd.xlane.f32.xlu0 %v2625
    %v2627 = vpop.xlane.xlu0 %2626
    %v2628 = vsel %vm374, %v2618, 0.0
    %2629 = vadd.xlane.f32.xlu0 %v2628
    %v2630 = vpop.xlane.xlu0 %2629
    %v2631 = vsel %vm374, %v2619, 0.0
    %2632 = vadd.xlane.f32.xlu0 %v2631
    %v2633 = vpop.xlane.xlu0 %2632
    %v2634 = vsel %vm374, %v2620, 0.0
    %2635 = vadd.xlane.f32.xlu0 %v2634
    %v2636 = vpop.xlane.xlu0 %2635
    %v2637 = vsel %vm374, %v2621, 0.0
    %2638 = vadd.xlane.f32.xlu0 %v2637
    %v2639 = vpop.xlane.xlu0 %2638
    %v2640 = vsel %vm374, %v2622, 0.0
    %2641 = vadd.xlane.f32.xlu0 %v2640
    %v2642 = vpop.xlane.xlu0 %2641
    %v2643 = vsel %vm374, %v2623, 0.0
    %2644 = vadd.xlane.f32.xlu0 %v2643
    %v2645 = vpop.xlane.xlu0 %2644
    %v2646 = vsel %vm374, %v2624, 0.0
    %2647 = vadd.xlane.f32.xlu0 %v2646
    %v2648 = vpop.xlane.xlu0 %2647
    %v2649 = vld [vmem:[#allocation7] sm:$0x1]
    %v2651 = vlaneseq
    %v2652 = vshrl.u32 %v2651, 7
    %v2653 = vsub.s32 0, %v2652
    %v2654 = vrot.slane %v2649, %v2653
    %v2656 = vadd.f32 %v2627, %v2654
    %v2657 = vadd.f32 %v2630, %v2654
    %v2658 = vadd.f32 %v2633, %v2654
    %v2659 = vadd.f32 %v2636, %v2654
    %v2660 = vadd.f32 %v2639, %v2654
    %v2661 = vadd.f32 %v2642, %v2654
    %v2662 = vadd.f32 %v2645, %v2654
    %v2663 = vadd.f32 %v2648, %v2654
    %v2664 = vmul.f32 %v2656, 1.442695
    %v2665 = vpow.pop %v2664
    %v2666 = vmul.f32 %v2657, 1.442695
    %v2667 = vpow.pop %v2666
    %v2668 = vmul.f32 %v2658, 1.442695
    %v2669 = vpow.pop %v2668
    %v2670 = vmul.f32 %v2659, 1.442695
    %v2671 = vpow.pop %v2670
    %v2672 = vmul.f32 %v2660, 1.442695
    %v2673 = vpow.pop %v2672
    %v2674 = vmul.f32 %v2661, 1.442695
    %v2675 = vpow.pop %v2674
    %v2676 = vmul.f32 %v2662, 1.442695
    %v2677 = vpow.pop %v2676
    %v2678 = vmul.f32 %v2663, 1.442695
    %v2679 = vpow.pop %v2678
    %v2680 = vmul.f32 %v2665, %v2602
    %v2681 = vmul.f32 %v2667, %v2603
    %v2682 = vmul.f32 %v2669, %v2604
    %v2683 = vmul.f32 %v2671, %v2605
    %v2684 = vmul.f32 %v2673, %v2606
    %v2685 = vmul.f32 %v2675, %v2607
    %v2686 = vmul.f32 %v2677, %v2608
    %v2687 = vmul.f32 %v2679, %v2609
    %v2688 = vld [vmem:[#allocation8] sm:$0xff]
    %v2690 = vsel %vm374, %v2688, 0
    %2692 = vmatprep.subr.mxu0 0.0
    %2693 = vmatpush1.msra.mxu0 %v2680
    %2694 = vmatprep.subr.mxu0 0.0
    %2695 = vmatpush1.msra.mxu0 %v2681
    %2696 = vmatprep.subr.mxu0 0.0
    %2697 = vmatpush1.msra.mxu0 %v2682
    %2698 = vmatprep.subr.mxu0 0.0
    %2699 = vmatpush1.msra.mxu0 %v2683
    %2700 = vmatprep.subr.mxu0 0.0
    %2701 = vmatpush1.msra.mxu0 %v2684
    %2702 = vmatprep.subr.mxu0 0.0
    %2703 = vmatpush1.msra.mxu0 %v2685
    %2704 = vmatprep.subr.mxu0 0.0
    %2705 = vmatpush1.msra.mxu0 %v2686
    %2706 = vmatprep.subr.mxu0 0.0
    %2707 = vmatpush1.msra.mxu0 %v2687
    %2708 = vmatprep.subr.mxu0 0.0
    %2709 = vmatpush1.msra.mxu0 0.0
    %2710 = vmatprep.subr.mxu0 0.0
    %2711 = vmatpush1.msra.mxu0 0.0
    %2712 = vmatprep.subr.mxu0 0.0
    %2713 = vmatpush1.msra.mxu0 0.0
    %2714 = vmatprep.subr.mxu0 0.0
    %2715 = vmatpush1.msra.mxu0 0.0
    %2716 = vmatprep.subr.mxu0 0.0
    %2717 = vmatpush1.msra.mxu0 0.0
    %2718 = vmatprep.subr.mxu0 0.0
    %2719 = vmatpush1.msra.mxu0 0.0
    %2720 = vmatprep.subr.mxu0 0.0
    %2721 = vmatpush1.msra.mxu0 0.0
    %2722 = vmatprep.subr.mxu0 0.0
    %2723 = vmatpush1.msra.mxu0 0.0
    %2724 = vmatprep.subr.mxu0 0.0
    %2725 = vmatpush1.msra.mxu0 0.0
    %2726 = vmatprep.subr.mxu0 0.0
    %2727 = vmatpush1.msra.mxu0 0.0
    %2728 = vmatprep.subr.mxu0 0.0
    %2729 = vmatpush1.msra.mxu0 0.0
    %2730 = vmatprep.subr.mxu0 0.0
    %2731 = vmatpush1.msra.mxu0 0.0
    %2732 = vmatprep.subr.mxu0 0.0
    %2733 = vmatpush1.msra.mxu0 0.0
    %2734 = vmatprep.subr.mxu0 0.0
    %2735 = vmatpush1.msra.mxu0 0.0
    %2736 = vmatprep.subr.mxu0 0.0
    %2737 = vmatpush1.msra.mxu0 0.0
    %2738 = vmatprep.subr.mxu0 0.0
    %2739 = vmatpush1.msra.mxu0 0.0
    %2740 = vmatprep.subr.mxu0 0.0
    %2741 = vmatpush1.msra.mxu0 0.0
    %2742 = vmatprep.subr.mxu0 0.0
    %2743 = vmatpush1.msra.mxu0 0.0
    %2744 = vmatprep.subr.mxu0 0.0
    %2745 = vmatpush1.msra.mxu0 0.0
    %2746 = vmatprep.subr.mxu0 0.0
    %2747 = vmatpush1.msra.mxu0 0.0
    %2748 = vmatprep.subr.mxu0 0.0
    %2749 = vmatpush1.msra.mxu0 0.0
    %2750 = vmatprep.subr.mxu0 0.0
    %2751 = vmatpush1.msra.mxu0 0.0
    %2752 = vmatprep.subr.mxu0 0.0
    %2753 = vmatpush1.msra.mxu0 0.0
    %2754 = vmatprep.subr.mxu0 0.0
    %2755 = vmatpush1.msra.mxu0 0.0
    %2756 = vmatprep.mubr.f32.mxu0 0.0
    %2757 = vmatmul.mubr.f32.gmra.mrb[0].mxu0 %v2690
    %v2758 = vpop.f32.mrb[0].mxu0
    %v2759 = vadd.f32 0.0, %v2758
    %v2760 = vpop.f32.mrb[0].mxu0
    %2761 = vdwg.mxu0
    %v2762 = vld [vmem:[%s3] sm:$0xff]
    %v2763 = vld [vmem:[%s3 + $0x8] sm:$0xff]
    %v2764 = vld [vmem:[%s3 + $0x10] sm:$0xff]
    %v2765 = vld [vmem:[%s3 + $0x18] sm:$0xff]
    %v2766 = vld [vmem:[%s3 + $0x20] sm:$0xff]
    %v2767 = vld [vmem:[%s3 + $0x28] sm:$0xff]
    %v2768 = vld [vmem:[%s3 + $0x30] sm:$0xff]
    %v2769 = vld [vmem:[%s3 + $0x38] sm:$0xff]
    %vm2770 = vcmask 64512
    %v2772 = vsel %vm2770, %v2762, 0
    %v2775 = vsel %vm2770, %v2763, 0
    %v2778 = vsel %vm2770, %v2764, 0
    %v2781 = vsel %vm2770, %v2765, 0
    %v2784 = vsel %vm2770, %v2766, 0
    %v2787 = vsel %vm2770, %v2767, 0
    %v2790 = vsel %vm2770, %v2768, 0
    %v2793 = vsel %vm2770, %v2769, 0
    %2795 = vmatprep.subr.mxu0 0.0
    %2796 = vmatpush1.msra.mxu0 %v2759
    %2797 = vmatprep.subr.mxu0 0.0
    %2798 = vmatpush1.msra.mxu0 0.0
    %2799 = vmatprep.subr.mxu0 0.0
    %2800 = vmatpush1.msra.mxu0 0.0
    %2801 = vmatprep.subr.mxu0 0.0
    %2802 = vmatpush1.msra.mxu0 0.0
    %2803 = vmatprep.subr.mxu0 0.0
    %2804 = vmatpush1.msra.mxu0 0.0
    %2805 = vmatprep.subr.mxu0 0.0
    %2806 = vmatpush1.msra.mxu0 0.0
    %2807 = vmatprep.subr.mxu0 0.0
    %2808 = vmatpush1.msra.mxu0 0.0
    %2809 = vmatprep.subr.mxu0 0.0
    %2810 = vmatpush1.msra.mxu0 0.0
    %2811 = vmatprep.subr.mxu0 0.0
    %2812 = vmatpush1.msra.mxu0 0.0
    %2813 = vmatprep.subr.mxu0 0.0
    %2814 = vmatpush1.msra.mxu0 0.0
    %2815 = vmatprep.subr.mxu0 0.0
    %2816 = vmatpush1.msra.mxu0 0.0
    %2817 = vmatprep.subr.mxu0 0.0
    %2818 = vmatpush1.msra.mxu0 0.0
    %2819 = vmatprep.subr.mxu0 0.0
    %2820 = vmatpush1.msra.mxu0 0.0
    %2821 = vmatprep.subr.mxu0 0.0
    %2822 = vmatpush1.msra.mxu0 0.0
    %2823 = vmatprep.subr.mxu0 0.0
    %2824 = vmatpush1.msra.mxu0 0.0
    %2825 = vmatprep.subr.mxu0 0.0
    %2826 = vmatpush1.msra.mxu0 0.0
    %2827 = vmatprep.subr.mxu0 0.0
    %2828 = vmatpush1.msra.mxu0 0.0
    %2829 = vmatprep.subr.mxu0 0.0
    %2830 = vmatpush1.msra.mxu0 0.0
    %2831 = vmatprep.subr.mxu0 0.0
    %2832 = vmatpush1.msra.mxu0 0.0
    %2833 = vmatprep.subr.mxu0 0.0
    %2834 = vmatpush1.msra.mxu0 0.0
    %2835 = vmatprep.subr.mxu0 0.0
    %2836 = vmatpush1.msra.mxu0 0.0
    %2837 = vmatprep.subr.mxu0 0.0
    %2838 = vmatpush1.msra.mxu0 0.0
    %2839 = vmatprep.subr.mxu0 0.0
    %2840 = vmatpush1.msra.mxu0 0.0
    %2841 = vmatprep.subr.mxu0 0.0
    %2842 = vmatpush1.msra.mxu0 0.0
    %2843 = vmatprep.subr.mxu0 0.0
    %2844 = vmatpush1.msra.mxu0 0.0
    %2845 = vmatprep.subr.mxu0 0.0
    %2846 = vmatpush1.msra.mxu0 0.0
    %2847 = vmatprep.subr.mxu0 0.0
    %2848 = vmatpush1.msra.mxu0 0.0
    %2849 = vmatprep.subr.mxu0 0.0
    %2850 = vmatpush1.msra.mxu0 0.0
    %2851 = vmatprep.subr.mxu0 0.0
    %2852 = vmatpush1.msra.mxu0 0.0
    %2853 = vmatprep.subr.mxu0 0.0
    %2854 = vmatpush1.msra.mxu0 0.0
    %2855 = vmatprep.subr.mxu0 0.0
    %2856 = vmatpush1.msra.mxu0 0.0
    %2857 = vmatprep.subr.mxu0 0.0
    %2858 = vmatpush1.msra.mxu0 0.0
    %2859 = vmatprep.mubr.f32.mxu0 0.0
    %2860 = vmatmul.mubr.f32.gmra.mrb[0].mxu0 %v2772
    %v2861 = vpop.f32.mrb[0].mxu0
    %v2862 = vadd.f32 1e-30, %v2861
    %v2863 = vpop.f32.mrb[0].mxu0
    %2864 = vmatprep.mubr.f32.mxu0 0.0
    %2865 = vmatmul.mubr.f32.gmra.mrb[0].mxu0 %v2775
    %v2866 = vpop.f32.mrb[0].mxu0
    %v2867 = vadd.f32 1e-30, %v2866
    %v2868 = vpop.f32.mrb[0].mxu0
    %2869 = vmatprep.mubr.f32.mxu0 0.0
    %2870 = vmatmul.mubr.f32.gmra.mrb[0].mxu0 %v2778
    %v2871 = vpop.f32.mrb[0].mxu0
    %v2872 = vadd.f32 1e-30, %v2871
    %v2873 = vpop.f32.mrb[0].mxu0
    %2874 = vmatprep.mubr.f32.mxu0 0.0
    %2875 = vmatmul.mubr.f32.gmra.mrb[0].mxu0 %v2781
    %v2876 = vpop.f32.mrb[0].mxu0
    %v2877 = vadd.f32 1e-30, %v2876
    %v2878 = vpop.f32.mrb[0].mxu0
    %2879 = vmatprep.mubr.f32.mxu0 0.0
    %2880 = vmatmul.mubr.f32.gmra.mrb[0].mxu0 %v2784
    %v2881 = vpop.f32.mrb[0].mxu0
    %v2882 = vadd.f32 1e-30, %v2881
    %v2883 = vpop.f32.mrb[0].mxu0
    %2884 = vmatprep.mubr.f32.mxu0 0.0
    %2885 = vmatmul.mubr.f32.gmra.mrb[0].mxu0 %v2787
    %v2886 = vpop.f32.mrb[0].mxu0
    %v2887 = vadd.f32 1e-30, %v2886
    %v2888 = vpop.f32.mrb[0].mxu0
    %2889 = vmatprep.mubr.f32.mxu0 0.0
    %2890 = vmatmul.mubr.f32.gmra.mrb[0].mxu0 %v2790
    %v2891 = vpop.f32.mrb[0].mxu0
    %v2892 = vadd.f32 1e-30, %v2891
    %v2893 = vpop.f32.mrb[0].mxu0
    %2894 = vmatprep.mubr.f32.mxu0 0.0
    %2895 = vmatmul.mubr.f32.gmra.mrb[0].mxu0 %v2793
    %v2896 = vpop.f32.mrb[0].mxu0
    %v2897 = vadd.f32 1e-30, %v2896
    %v2898 = vpop.f32.mrb[0].mxu0
    %2899 = vdwg.mxu0
    %v2900 = vrcp.pop %v2862
    %v2901 = vrcp.pop %v2867
    %v2902 = vrcp.pop %v2872
    %v2903 = vrcp.pop %v2877
    %v2904 = vrcp.pop %v2882
    %v2905 = vrcp.pop %v2887
    %v2906 = vrcp.pop %v2892
    %v2907 = vrcp.pop %v2897
    %v2908 = vmul.f32 %v2680, %v2900
    %v2909 = vmul.f32 %v2681, %v2901
    %v2910 = vmul.f32 %v2682, %v2902
    %v2911 = vmul.f32 %v2683, %v2903
    %v2912 = vmul.f32 %v2684, %v2904
    %v2913 = vmul.f32 %v2685, %v2905
    %v2914 = vmul.f32 %v2686, %v2906
    %v2915 = vmul.f32 %v2687, %v2907
    %vm2916 = vcmask 7168
    %2917 = vst.msk [vmem:[%s22] sm:$0xff] %vm2916, %v2908
    %2918 = vst.msk [vmem:[%s22 + $0x8] sm:$0xff] %vm2916, %v2909
    %2919 = vst.msk [vmem:[%s22 + $0x10] sm:$0xff] %vm2916, %v2910
    %2920 = vst.msk [vmem:[%s22 + $0x18] sm:$0xff] %vm2916, %v2911
    %2921 = vst.msk [vmem:[%s22 + $0x20] sm:$0xff] %vm2916, %v2912
    %2922 = vst.msk [vmem:[%s22 + $0x28] sm:$0xff] %vm2916, %v2913
    %2923 = vst.msk [vmem:[%s22 + $0x30] sm:$0xff] %vm2916, %v2914
    %2924 = vst.msk [vmem:[%s22 + $0x38] sm:$0xff] %vm2916, %v2915
    %v2925 = vld [vmem:[%s17] sm:$0xff]
    %v2926 = vld [vmem:[%s17 + $0x8] sm:$0xff]
    %v2927 = vld [vmem:[%s17 + $0x10] sm:$0xff]
    %v2928 = vld [vmem:[%s17 + $0x18] sm:$0xff]
    %v2929 = vld [vmem:[%s17 + $0x20] sm:$0xff]
    %v2930 = vld [vmem:[%s17 + $0x28] sm:$0xff]
    %v2931 = vld [vmem:[%s17 + $0x30] sm:$0xff]
    %v2932 = vld [vmem:[%s17 + $0x38] sm:$0xff]
    %v2933 = vld [vmem:[%s18] sm:$0x1]
    %v2935 = vlaneseq
    %v2936 = vshrl.u32 %v2935, 7
    %v2937 = vsub.s32 0, %v2936
    %v2938 = vrot.slane %v2933, %v2937
    %v2941 = vsel %vm374, %v2594, 0
    %v2944 = vsel %vm374, %v2595, 0
    %v2947 = vsel %vm374, %v2596, 0
    %v2950 = vsel %vm374, %v2597, 0
    %v2953 = vsel %vm374, %v2598, 0
    %v2956 = vsel %vm374, %v2599, 0
    %v2959 = vsel %vm374, %v2600, 0
    %v2962 = vsel %vm374, %v2601, 0
    %2964 = vmatprep.subr.mxu0 0.0
    %2965 = vmatpush1.msra.mxu0 %v2925
    %2966 = vmatprep.subr.mxu0 0.0
    %2967 = vmatpush1.msra.mxu0 %v2926
    %2968 = vmatprep.subr.mxu0 0.0
    %2969 = vmatpush1.msra.mxu0 %v2927
    %2970 = vmatprep.subr.mxu0 0.0
    %2971 = vmatpush1.msra.mxu0 %v2928
    %2972 = vmatprep.subr.mxu0 0.0
    %2973 = vmatpush1.msra.mxu0 %v2929
    %2974 = vmatprep.subr.mxu0 0.0
    %2975 = vmatpush1.msra.mxu0 %v2930
    %2976 = vmatprep.subr.mxu0 0.0
    %2977 = vmatpush1.msra.mxu0 %v2931
    %2978 = vmatprep.subr.mxu0 0.0
    %2979 = vmatpush1.msra.mxu0 %v2932
    %2980 = vmatprep.subr.mxu0 0.0
    %2981 = vmatpush1.msra.mxu0 0.0
    %2982 = vmatprep.subr.mxu0 0.0
    %2983 = vmatpush1.msra.mxu0 0.0
    %2984 = vmatprep.subr.mxu0 0.0
    %2985 = vmatpush1.msra.mxu0 0.0
    %2986 = vmatprep.subr.mxu0 0.0
    %2987 = vmatpush1.msra.mxu0 0.0
    %2988 = vmatprep.subr.mxu0 0.0
    %2989 = vmatpush1.msra.mxu0 0.0
    %2990 = vmatprep.subr.mxu0 0.0
    %2991 = vmatpush1.msra.mxu0 0.0
    %2992 = vmatprep.subr.mxu0 0.0
    %2993 = vmatpush1.msra.mxu0 0.0
    %2994 = vmatprep.subr.mxu0 0.0
    %2995 = vmatpush1.msra.mxu0 0.0
    %2996 = vmatprep.subr.mxu0 0.0
    %2997 = vmatpush1.msra.mxu0 0.0
    %2998 = vmatprep.subr.mxu0 0.0
    %2999 = vmatpush1.msra.mxu0 0.0
    %3000 = vmatprep.subr.mxu0 0.0
    %3001 = vmatpush1.msra.mxu0 0.0
    %3002 = vmatprep.subr.mxu0 0.0
    %3003 = vmatpush1.msra.mxu0 0.0
    %3004 = vmatprep.subr.mxu0 0.0
    %3005 = vmatpush1.msra.mxu0 0.0
    %3006 = vmatprep.subr.mxu0 0.0
    %3007 = vmatpush1.msra.mxu0 0.0
    %3008 = vmatprep.subr.mxu0 0.0
    %3009 = vmatpush1.msra.mxu0 0.0
    %3010 = vmatprep.subr.mxu0 0.0
    %3011 = vmatpush1.msra.mxu0 0.0
    %3012 = vmatprep.subr.mxu0 0.0
    %3013 = vmatpush1.msra.mxu0 0.0
    %3014 = vmatprep.subr.mxu0 0.0
    %3015 = vmatpush1.msra.mxu0 0.0
    %3016 = vmatprep.subr.mxu0 0.0
    %3017 = vmatpush1.msra.mxu0 0.0
    %3018 = vmatprep.subr.mxu0 0.0
    %3019 = vmatpush1.msra.mxu0 0.0
    %3020 = vmatprep.subr.mxu0 0.0
    %3021 = vmatpush1.msra.mxu0 0.0
    %3022 = vmatprep.subr.mxu0 0.0
    %3023 = vmatpush1.msra.mxu0 0.0
    %3024 = vmatprep.subr.mxu0 0.0
    %3025 = vmatpush1.msra.mxu0 0.0
    %3026 = vmatprep.subr.mxu0 0.0
    %3027 = vmatpush1.msra.mxu0 0.0
    %3028 = vmatprep.mubr.f32.mxu0 0.0
    %3029 = vmatmul.mubr.f32.gmra.mrb[0].mxu0 %v2941
    %v3030 = vpop.f32.mrb[0].mxu0
    %v3031 = vadd.f32 %v2938, %v3030
    %v3032 = vpop.f32.mrb[0].mxu0
    %3033 = vmatprep.mubr.f32.mxu0 0.0
    %3034 = vmatmul.mubr.f32.gmra.mrb[0].mxu0 %v2944
    %v3035 = vpop.f32.mrb[0].mxu0
    %v3036 = vadd.f32 %v2938, %v3035
    %v3037 = vpop.f32.mrb[0].mxu0
    %3038 = vmatprep.mubr.f32.mxu0 0.0
    %3039 = vmatmul.mubr.f32.gmra.mrb[0].mxu0 %v2947
    %v3040 = vpop.f32.mrb[0].mxu0
    %v3041 = vadd.f32 %v2938, %v3040
    %v3042 = vpop.f32.mrb[0].mxu0
    %3043 = vmatprep.mubr.f32.mxu0 0.0
    %3044 = vmatmul.mubr.f32.gmra.mrb[0].mxu0 %v2950
    %v3045 = vpop.f32.mrb[0].mxu0
    %v3046 = vadd.f32 %v2938, %v3045
    %v3047 = vpop.f32.mrb[0].mxu0
    %3048 = vmatprep.mubr.f32.mxu0 0.0
    %3049 = vmatmul.mubr.f32.gmra.mrb[0].mxu0 %v2953
    %v3050 = vpop.f32.mrb[0].mxu0
    %v3051 = vadd.f32 %v2938, %v3050
    %v3052 = vpop.f32.mrb[0].mxu0
    %3053 = vmatprep.mubr.f32.mxu0 0.0
    %3054 = vmatmul.mubr.f32.gmra.mrb[0].mxu0 %v2956
    %v3055 = vpop.f32.mrb[0].mxu0
    %v3056 = vadd.f32 %v2938, %v3055
    %v3057 = vpop.f32.mrb[0].mxu0
    %3058 = vmatprep.mubr.f32.mxu0 0.0
    %3059 = vmatmul.mubr.f32.gmra.mrb[0].mxu0 %v2959
    %v3060 = vpop.f32.mrb[0].mxu0
    %v3061 = vadd.f32 %v2938, %v3060
    %v3062 = vpop.f32.mrb[0].mxu0
    %3063 = vmatprep.mubr.f32.mxu0 0.0
    %3064 = vmatmul.mubr.f32.gmra.mrb[0].mxu0 %v2962
    %v3065 = vpop.f32.mrb[0].mxu0
    %v3066 = vadd.f32 %v2938, %v3065
    %v3067 = vpop.f32.mrb[0].mxu0
    %3068 = vdwg.mxu0
    %3070 = vset.pattern.permute.xlu0 0
    %3071 = vperm.xlu0 %3070, %v2602
    %v3072 = vpop.permute.xlu0 %3071
    %3075 = vset.pattern.permute.xlu0 0
    %3076 = vperm.xlu0 %3075, %v2603
    %v3077 = vpop.permute.xlu0 %3076
    %3080 = vset.pattern.permute.xlu0 0
    %3081 = vperm.xlu0 %3080, %v2604
    %v3082 = vpop.permute.xlu0 %3081
    %3085 = vset.pattern.permute.xlu0 0
    %3086 = vperm.xlu0 %3085, %v2605
    %v3087 = vpop.permute.xlu0 %3086
    %3090 = vset.pattern.permute.xlu0 0
    %3091 = vperm.xlu0 %3090, %v2606
    %v3092 = vpop.permute.xlu0 %3091
    %3095 = vset.pattern.permute.xlu0 0
    %3096 = vperm.xlu0 %3095, %v2607
    %v3097 = vpop.permute.xlu0 %3096
    %3100 = vset.pattern.permute.xlu0 0
    %3101 = vperm.xlu0 %3100, %v2608
    %v3102 = vpop.permute.xlu0 %3101
    %3105 = vset.pattern.permute.xlu0 0
    %3106 = vperm.xlu0 %3105, %v2609
    %v3107 = vpop.permute.xlu0 %3106
    %v3109 = vmul.f32 %v3031, %v3072
    %v3110 = vmul.f32 %v3036, %v3077
    %v3111 = vmul.f32 %v3041, %v3082
    %v3112 = vmul.f32 %v3046, %v3087
    %v3113 = vmul.f32 %v3051, %v3092
    %v3114 = vmul.f32 %v3056, %v3097
    %v3115 = vmul.f32 %v3061, %v3102
    %v3116 = vmul.f32 %v3066, %v3107
    %v3117 = vtanh.pop %v3109
    %v3118 = vtanh.pop %v3110
    %v3119 = vtanh.pop %v3111
    %v3120 = vtanh.pop %v3112
    %v3121 = vtanh.pop %v3113
    %v3122 = vtanh.pop %v3114
    %v3123 = vtanh.pop %v3115
    %v3124 = vtanh.pop %v3116
    %3125 = vst.msk [vmem:[%s23] sm:$0xff] %vm225, %v3117
    %3126 = vst.msk [vmem:[%s23 + $0x8] sm:$0xff] %vm225, %v3118
    %3127 = vst.msk [vmem:[%s23 + $0x10] sm:$0xff] %vm225, %v3119
    %3128 = vst.msk [vmem:[%s23 + $0x18] sm:$0xff] %vm225, %v3120
    %3129 = vst.msk [vmem:[%s23 + $0x20] sm:$0xff] %vm225, %v3121
    %3130 = vst.msk [vmem:[%s23 + $0x28] sm:$0xff] %vm225, %v3122
    %3131 = vst.msk [vmem:[%s23 + $0x30] sm:$0xff] %vm225, %v3123
    %3132 = vst.msk [vmem:[%s23 + $0x38] sm:$0xff] %vm225, %v3124
    %v3133 = vld [vmem:[#allocation8] sm:$0xff]
    %3135 = vset.pattern.permute.xlu0 0
    %3136 = vperm.xlu0 %3135, %v2908
    %v3137 = vpop.permute.xlu0 %3136
    %3140 = vset.pattern.permute.xlu0 0
    %3141 = vperm.xlu0 %3140, %v2909
    %v3142 = vpop.permute.xlu0 %3141
    %3145 = vset.pattern.permute.xlu0 0
    %3146 = vperm.xlu0 %3145, %v2910
    %v3147 = vpop.permute.xlu0 %3146
    %3150 = vset.pattern.permute.xlu0 0
    %3151 = vperm.xlu0 %3150, %v2911
    %v3152 = vpop.permute.xlu0 %3151
    %3155 = vset.pattern.permute.xlu0 0
    %3156 = vperm.xlu0 %3155, %v2912
    %v3157 = vpop.permute.xlu0 %3156
    %3160 = vset.pattern.permute.xlu0 0
    %3161 = vperm.xlu0 %3160, %v2913
    %v3162 = vpop.permute.xlu0 %3161
    %3165 = vset.pattern.permute.xlu0 0
    %3166 = vperm.xlu0 %3165, %v2914
    %v3167 = vpop.permute.xlu0 %3166
    %3170 = vset.pattern.permute.xlu0 0
    %3171 = vperm.xlu0 %3170, %v2915
    %v3172 = vpop.permute.xlu0 %3171
    %v3174 = vmul.f32 %v3137, %v3117
    %v3175 = vmul.f32 %v3142, %v3118
    %v3176 = vmul.f32 %v3147, %v3119
    %v3177 = vmul.f32 %v3152, %v3120
    %v3178 = vmul.f32 %v3157, %v3121
    %v3179 = vmul.f32 %v3162, %v3122
    %v3180 = vmul.f32 %v3167, %v3123
    %v3181 = vmul.f32 %v3172, %v3124
    %v3182 = vmul.f32 %v3174, %v187
    %v3183 = vmul.f32 %v3175, %v192
    %v3184 = vmul.f32 %v3176, %v197
    %v3185 = vmul.f32 %v3177, %v202
    %v3186 = vmul.f32 %v3178, %v207
    %v3187 = vmul.f32 %v3179, %v212
    %v3188 = vmul.f32 %v3180, %v217
    %v3189 = vmul.f32 %v3181, %v222
    %v3191 = vsel %vm374, %v3133, 0
    %3193 = vmatprep.subr.mxu0 0.0
    %3194 = vmatpush1.msra.mxu0 %v3182
    %3195 = vmatprep.subr.mxu0 0.0
    %3196 = vmatpush1.msra.mxu0 %v3183
    %3197 = vmatprep.subr.mxu0 0.0
    %3198 = vmatpush1.msra.mxu0 %v3184
    %3199 = vmatprep.subr.mxu0 0.0
    %3200 = vmatpush1.msra.mxu0 %v3185
    %3201 = vmatprep.subr.mxu0 0.0
    %3202 = vmatpush1.msra.mxu0 %v3186
    %3203 = vmatprep.subr.mxu0 0.0
    %3204 = vmatpush1.msra.mxu0 %v3187
    %3205 = vmatprep.subr.mxu0 0.0
    %3206 = vmatpush1.msra.mxu0 %v3188
    %3207 = vmatprep.subr.mxu0 0.0
    %3208 = vmatpush1.msra.mxu0 %v3189
    %3209 = vmatprep.subr.mxu0 0.0
    %3210 = vmatpush1.msra.mxu0 0.0
    %3211 = vmatprep.subr.mxu0 0.0
    %3212 = vmatpush1.msra.mxu0 0.0
    %3213 = vmatprep.subr.mxu0 0.0
    %3214 = vmatpush1.msra.mxu0 0.0
    %3215 = vmatprep.subr.mxu0 0.0
    %3216 = vmatpush1.msra.mxu0 0.0
    %3217 = vmatprep.subr.mxu0 0.0
    %3218 = vmatpush1.msra.mxu0 0.0
    %3219 = vmatprep.subr.mxu0 0.0
    %3220 = vmatpush1.msra.mxu0 0.0
    %3221 = vmatprep.subr.mxu0 0.0
    %3222 = vmatpush1.msra.mxu0 0.0
    %3223 = vmatprep.subr.mxu0 0.0
    %3224 = vmatpush1.msra.mxu0 0.0
    %3225 = vmatprep.subr.mxu0 0.0
    %3226 = vmatpush1.msra.mxu0 0.0
    %3227 = vmatprep.subr.mxu0 0.0
    %3228 = vmatpush1.msra.mxu0 0.0
    %3229 = vmatprep.subr.mxu0 0.0
    %3230 = vmatpush1.msra.mxu0 0.0
    %3231 = vmatprep.subr.mxu0 0.0
    %3232 = vmatpush1.msra.mxu0 0.0
    %3233 = vmatprep.subr.mxu0 0.0
    %3234 = vmatpush1.msra.mxu0 0.0
    %3235 = vmatprep.subr.mxu0 0.0
    %3236 = vmatpush1.msra.mxu0 0.0
    %3237 = vmatprep.subr.mxu0 0.0
    %3238 = vmatpush1.msra.mxu0 0.0
    %3239 = vmatprep.subr.mxu0 0.0
    %3240 = vmatpush1.msra.mxu0 0.0
    %3241 = vmatprep.subr.mxu0 0.0
    %3242 = vmatpush1.msra.mxu0 0.0
    %3243 = vmatprep.subr.mxu0 0.0
    %3244 = vmatpush1.msra.mxu0 0.0
    %3245 = vmatprep.subr.mxu0 0.0
    %3246 = vmatpush1.msra.mxu0 0.0
    %3247 = vmatprep.subr.mxu0 0.0
    %3248 = vmatpush1.msra.mxu0 0.0
    %3249 = vmatprep.subr.mxu0 0.0
    %3250 = vmatpush1.msra.mxu0 0.0
    %3251 = vmatprep.subr.mxu0 0.0
    %3252 = vmatpush1.msra.mxu0 0.0
    %3253 = vmatprep.subr.mxu0 0.0
    %3254 = vmatpush1.msra.mxu0 0.0
    %3255 = vmatprep.subr.mxu0 0.0
    %3256 = vmatpush1.msra.mxu0 0.0
    %3257 = vmatprep.mubr.f32.mxu0 0.0
    %3258 = vmatmul.mubr.f32.gmra.mrb[0].mxu0 %v3191
    %v3259 = vpop.f32.mrb[0].mxu0
    %v3260 = vadd.f32 0.0, %v3259
    %v3261 = vpop.f32.mrb[0].mxu0
    %3262 = vdwg.mxu0
    %v3263 = vld [vmem:[%s19] sm:$0xff]
    %v3264 = vld [vmem:[%s19 + $0x8] sm:$0xff]
    %v3265 = vld [vmem:[%s19 + $0x10] sm:$0xff]
    %v3266 = vld [vmem:[%s19 + $0x18] sm:$0xff]
    %v3267 = vld [vmem:[%s20] sm:$0x1]
    %v3269 = vlaneseq
    %v3270 = vshrl.u32 %v3269, 7
    %v3271 = vsub.s32 0, %v3270
    %v3272 = vrot.slane %v3267, %v3271
    %v3275 = vsel %vm225, %v3260, 0
    %3277 = vmatprep.subr.mxu0 0.0
    %3278 = vmatpush1.msra.mxu0 %v3263
    %3279 = vmatprep.subr.mxu0 0.0
    %3280 = vmatpush1.msra.mxu0 %v3264
    %3281 = vmatprep.subr.mxu0 0.0
    %3282 = vmatpush1.msra.mxu0 %v3265
    %3283 = vmatprep.subr.mxu0 0.0
    %3284 = vmatpush1.msra.mxu0 %v3266
    %3285 = vmatprep.subr.mxu0 0.0
    %3286 = vmatpush1.msra.mxu0 0.0
    %3287 = vmatprep.subr.mxu0 0.0
    %3288 = vmatpush1.msra.mxu0 0.0
    %3289 = vmatprep.subr.mxu0 0.0
    %3290 = vmatpush1.msra.mxu0 0.0
    %3291 = vmatprep.subr.mxu0 0.0
    %3292 = vmatpush1.msra.mxu0 0.0
    %3293 = vmatprep.subr.mxu0 0.0
    %3294 = vmatpush1.msra.mxu0 0.0
    %3295 = vmatprep.subr.mxu0 0.0
    %3296 = vmatpush1.msra.mxu0 0.0
    %3297 = vmatprep.subr.mxu0 0.0
    %3298 = vmatpush1.msra.mxu0 0.0
    %3299 = vmatprep.subr.mxu0 0.0
    %3300 = vmatpush1.msra.mxu0 0.0
    %3301 = vmatprep.subr.mxu0 0.0
    %3302 = vmatpush1.msra.mxu0 0.0
    %3303 = vmatprep.subr.mxu0 0.0
    %3304 = vmatpush1.msra.mxu0 0.0
    %3305 = vmatprep.subr.mxu0 0.0
    %3306 = vmatpush1.msra.mxu0 0.0
    %3307 = vmatprep.subr.mxu0 0.0
    %3308 = vmatpush1.msra.mxu0 0.0
    %3309 = vmatprep.subr.mxu0 0.0
    %3310 = vmatpush1.msra.mxu0 0.0
    %3311 = vmatprep.subr.mxu0 0.0
    %3312 = vmatpush1.msra.mxu0 0.0
    %3313 = vmatprep.subr.mxu0 0.0
    %3314 = vmatpush1.msra.mxu0 0.0
    %3315 = vmatprep.subr.mxu0 0.0
    %3316 = vmatpush1.msra.mxu0 0.0
    %3317 = vmatprep.subr.mxu0 0.0
    %3318 = vmatpush1.msra.mxu0 0.0
    %3319 = vmatprep.subr.mxu0 0.0
    %3320 = vmatpush1.msra.mxu0 0.0
    %3321 = vmatprep.subr.mxu0 0.0
    %3322 = vmatpush1.msra.mxu0 0.0
    %3323 = vmatprep.subr.mxu0 0.0
    %3324 = vmatpush1.msra.mxu0 0.0
    %3325 = vmatprep.subr.mxu0 0.0
    %3326 = vmatpush1.msra.mxu0 0.0
    %3327 = vmatprep.subr.mxu0 0.0
    %3328 = vmatpush1.msra.mxu0 0.0
    %3329 = vmatprep.subr.mxu0 0.0
    %3330 = vmatpush1.msra.mxu0 0.0
    %3331 = vmatprep.subr.mxu0 0.0
    %3332 = vmatpush1.msra.mxu0 0.0
    %3333 = vmatprep.subr.mxu0 0.0
    %3334 = vmatpush1.msra.mxu0 0.0
    %3335 = vmatprep.subr.mxu0 0.0
    %3336 = vmatpush1.msra.mxu0 0.0
    %3337 = vmatprep.subr.mxu0 0.0
    %3338 = vmatpush1.msra.mxu0 0.0
    %3339 = vmatprep.subr.mxu0 0.0
    %3340 = vmatpush1.msra.mxu0 0.0
    %3341 = vmatprep.mubr.f32.mxu0 0.0
    %3342 = vmatmul.mubr.f32.gmra.mrb[0].mxu0 %v3275
    %v3343 = vpop.f32.mrb[0].mxu0
    %v3344 = vadd.f32 %v3272, %v3343
    %v3345 = vpop.f32.mrb[0].mxu0
    %3346 = vdwg.mxu0
    %vm3347 = vcmask 15360
    %3348 = vst.msk [vmem:[%s21] sm:$0xff] %vm3347, %v3344
    // Predicated region
    $region90: #{tpu_custom_call.1} parent=1 // pred_check
      _
    $region91: #{tpu_custom_call.1} parent=1 // pred_check_branch
      %3350 = sbr.rel (0) target = $region93
    $region92: #{tpu_custom_call.1} parent=1 // pred_region
      _
    $region93: #{tpu_custom_call.1} parent=1 // pred_fallthru
      _
    // Predicated region
    $region94: #{tpu_custom_call.1} parent=1 // pred_check
      _
    $region95: #{tpu_custom_call.1} parent=1 // pred_check_branch
      %3352 = sbr.rel (0) target = $region97
    $region96: #{tpu_custom_call.1} parent=1 // pred_region
      _
    $region97: #{tpu_custom_call.1} parent=1 // pred_fallthru
      _
    // Predicated region
    $region98: #{tpu_custom_call.1} parent=1 // pred_check
      _
    $region99: #{tpu_custom_call.1} parent=1 // pred_check_branch
      %3354 = sbr.rel (0) target = $region101
    $region100: #{tpu_custom_call.1} parent=1 // pred_region
      _
    $region101: #{tpu_custom_call.1} parent=1 // pred_fallthru
      _
    // Predicated region
    $region102: #{tpu_custom_call.1} parent=1 // pred_check
      _
    $region103: #{tpu_custom_call.1} parent=1 // pred_check_branch
      %3356 = sbr.rel (0) target = $region105
    $region104: #{tpu_custom_call.1} parent=1 // pred_region
      _
    $region105: #{tpu_custom_call.1} parent=1 // pred_fallthru
      _
    // Predicated region
    $region106: #{tpu_custom_call.1} parent=1 // pred_check
      _
    $region107: #{tpu_custom_call.1} parent=1 // pred_check_branch
      %3358 = sbr.rel (0) target = $region109
    $region108: #{tpu_custom_call.1} parent=1 // pred_region
      _
    $region109: #{tpu_custom_call.1} parent=1 // pred_fallthru
      _
    // Predicated region
    $region110: #{tpu_custom_call.1} parent=1 // pred_check
      _
    $region111: #{tpu_custom_call.1} parent=1 // pred_check_branch
      %3360 = sbr.rel (0) target = $region113
    $region112: #{tpu_custom_call.1} parent=1 // pred_region
      _
    $region113: #{tpu_custom_call.1} parent=1 // pred_fallthru
      _
    %3361 = vsyncpa [#allocation9], 1

</llo_original>
